<compile_context>
chip_gen: v7x
topology: tpu7x:2x2x1
jax: 0.10.0
libtpu: 0.0.40
codegen_flags: <defaults>
</compile_context>

<pallas_src>
import functools

import jax
import jax.numpy as jnp
from jax import lax
from jax.experimental import pallas as pl
from jax.experimental.pallas import tpu as pltpu


# -----------------------------------------------------------------------------
# Fused BasicBlock kernel (one batch element per grid step)
# -----------------------------------------------------------------------------
def _basic_block_kernel(x_ref, w1_ref, b1_ref, w2_ref, b2_ref, o_ref,
                        xpad_ref, patch_ref, *, H, W, C, last):
    """Fused conv3x3+bn1+relu -> conv3x3+bn2 (+x) (+relu) for one image.

    x_ref    : (1, H, W, C)       input tile (NHWC), also the residual
    w1_ref   : (9C, C)            conv1 weights with bn1 scale folded in (im2col layout)
    b1_ref   : (1, C)  f32        folded bn1 bias
    w2_ref   : (9C, C)            conv2 weights with bn2 scale folded in
    b2_ref   : (1, C)  f32        folded bn2 bias
    o_ref    : (1, H, W, C)
    xpad_ref : (H+2, W+2, C)      VMEM scratch: zero-bordered image (reused by both convs)
    patch_ref: (H*W, 9C)          VMEM scratch: im2col patches
    """
    f32 = jnp.float32
    cdt = xpad_ref.dtype  # compute (MXU operand) dtype: f32 or bf16

    # ---- Zero ONLY the 1-pixel halo border (interior is overwritten below). ----
    # Done every grid step so the border stays valid when the batch axis is
    # sharded across TensorCores (each core owns its own scratch).
    zrow = jnp.zeros((1, W + 2, C), cdt)
    xpad_ref[0:1, :, :] = zrow
    xpad_ref[H + 1:H + 2, :, :] = zrow
    zcol = jnp.zeros((H, 1, C), cdt)
    xpad_ref[1:H + 1, 0:1, :] = zcol
    xpad_ref[1:H + 1, W + 1:W + 2, :] = zcol

    # Load the input tile once (used for both the halo fill and the residual).
    x_in = x_ref[0]
    xpad_ref[1:H + 1, 1:W + 1, :] = x_in.astype(cdt)

    def im2col_to_patch():
        # 9 shifted copies into the (H*W, 9C) patch buffer -> ONE MXU matmul
        # per conv (K = 9C) instead of 9 dot+accumulate round trips.
        for kh in range(3):
            for kw in range(3):
                col = (kh * 3 + kw) * C
                patch_ref[:, col:col + C] = (
                    xpad_ref[kh:kh + H, kw:kw + W, :].reshape(H * W, C))

    # ---- conv1 + folded bn1 + relu (intermediate never leaves VMEM). ----
    im2col_to_patch()
    mid = jnp.dot(patch_ref[...], w1_ref[...], preferred_element_type=f32)
    mid = jnp.maximum(mid + b1_ref[...], 0.0)

    # Reuse the same padded scratch for conv2 (its border is still zero).
    xpad_ref[1:H + 1, 1:W + 1, :] = mid.reshape(H, W, C).astype(cdt)

    # ---- conv2 + folded bn2 + residual (+ relu unless `last`), f32 epilogue. ----
    im2col_to_patch()
    out = jnp.dot(patch_ref[...], w2_ref[...], preferred_element_type=f32)
    out = out + b2_ref[...] + x_in.astype(f32).reshape(H * W, C)
    if not last:
        out = jnp.maximum(out, 0.0)
    o_ref[0] = out.reshape(H, W, C).astype(o_ref.dtype)


def basic_block_forward_nhwc(x_nhwc, w1m, b1, w2m, b2, *, last=False):
    """Fused BasicBlock on NHWC input with BN folded into im2col weights (9C, C)."""
    N, H, W, C = x_nhwc.shape
    assert w1m.shape == (9 * C, C) and w2m.shape == (9 * C, C), \
        "stride=1 / downsample=None requires inplanes == planes"
    cdt = w1m.dtype  # compute dtype (f32 or bf16)

    kernel = functools.partial(_basic_block_kernel, H=H, W=W, C=C, last=last)

    x_item = jnp.dtype(x_nhwc.dtype).itemsize
    c_item = jnp.dtype(cdt).itemsize

    cost = pl.CostEstimate(
        flops=2 * 2 * 9 * N * H * W * C * C,          # two 3x3 convs
        transcendentals=0,
        bytes_accessed=2 * N * H * W * C * x_item + 2 * (9 * C * C * c_item + C * 4))

    # Working-set estimate -> explicit scoped-VMEM limit (with headroom).
    ws = (2 * 2 * H * W * C * x_item               # double-buffered in/out tiles
          + 2 * 9 * C * C * c_item + 2 * C * 4     # untiled weights + biases
          + (H + 2) * (W + 2) * C * c_item         # padded scratch (reused)
          + H * W * 9 * C * c_item)                # im2col patch scratch
    vmem_limit = int(min(max(ws + ws // 4 + (2 << 20), 16 << 20), 64 << 20))

    return pl.pallas_call(
        kernel,
        out_shape=jax.ShapeDtypeStruct((N, H, W, C), x_nhwc.dtype),
        grid_spec=pltpu.PrefetchScalarGridSpec(
            num_scalar_prefetch=0,
            grid=(N,),
            in_specs=[
                pl.BlockSpec((1, H, W, C), lambda n: (n, 0, 0, 0)),
                # Weights / biases are constant across the grid: keep them whole
                # in VMEM (no per-step double-buffering).
                pl.BlockSpec(memory_space=pltpu.MemorySpace.VMEM),
                pl.BlockSpec(memory_space=pltpu.MemorySpace.VMEM),
                pl.BlockSpec(memory_space=pltpu.MemorySpace.VMEM),
                pl.BlockSpec(memory_space=pltpu.MemorySpace.VMEM),
            ],
            out_specs=pl.BlockSpec((1, H, W, C), lambda n: (n, 0, 0, 0)),
            scratch_shapes=[
                pltpu.VMEM((H + 2, W + 2, C), cdt),   # padded image / conv1 act (reused)
                pltpu.VMEM((H * W, 9 * C), cdt),      # im2col patches
            ],
        ),
        compiler_params=pltpu.CompilerParams(
            dimension_semantics=("parallel",),
            vmem_limit_bytes=vmem_limit),
        cost_estimate=cost,
    )(x_nhwc, w1m, b1, w2m, b2)


# -----------------------------------------------------------------------------
# BasicBlock wrapper (PyTorch NCHW interface)
# -----------------------------------------------------------------------------
def fold_bn_into_conv(w_hwio, gamma, beta, mean, var, eps=1e-5,
                      compute_dtype=jnp.float32):
    """Return (w_im2col, bias): bn(conv(x, w)) = im2col(x) @ w_im2col + bias.

    w_im2col has shape (kh*kw*Cin, Cout) with row ordering (kh, kw, cin), matching
    the patch construction in the kernel.
    """
    scale = gamma.astype(jnp.float32) / jnp.sqrt(var.astype(jnp.float32) + eps)
    w = w_hwio.astype(jnp.float32) * scale[None, None, None, :]
    kh, kw, cin, cout = w_hwio.shape
    w_mat = w.reshape(kh * kw * cin, cout).astype(compute_dtype)
    bias = (beta.astype(jnp.float32) - mean.astype(jnp.float32) * scale).reshape(1, -1)
    return w_mat, bias.astype(jnp.float32)


def basic_block_forward(x_nchw, params, *, last=False, compute_dtype=None):
    """BasicBlock forward, NCHW in/out. stride=1, downsample=None (residual = x).

    compute_dtype: dtype of the MXU operands (patch + folded weights).  Defaults to
    bf16 for bf16 inputs (peak MXU throughput on v5e/v6e/v7x) and f32 otherwise.
    Accumulation and the bias/residual/relu epilogue are always f32.
    """
    if compute_dtype is None:
        compute_dtype = (jnp.bfloat16 if x_nchw.dtype == jnp.bfloat16
                         else jnp.float32)

    x = jnp.transpose(x_nchw, (0, 2, 3, 1))  # NCHW -> NHWC

    w1m, b1 = fold_bn_into_conv(params["w1"], params["bn1_gamma"],
                                params["bn1_beta"], params["bn1_mean"],
                                params["bn1_var"], compute_dtype=compute_dtype)
    w2m, b2 = fold_bn_into_conv(params["w2"], params["bn2_gamma"],
                                params["bn2_beta"], params["bn2_mean"],
                                params["bn2_var"], compute_dtype=compute_dtype)

    out = basic_block_forward_nhwc(x, w1m, b1, w2m, b2, last=last)
    return jnp.transpose(out, (0, 3, 1, 2))  # NHWC -> NCHW


# -----------------------------------------------------------------------------
# Pure-JAX reference (for correctness check)
# -----------------------------------------------------------------------------
def basic_block_reference(x_nchw, params, *, last=False):
    def conv(x, w_hwio):
        w = jnp.transpose(w_hwio, (3, 2, 0, 1))  # HWIO -> OIHW
        return lax.conv_general_dilated(
            x, w, window_strides=(1, 1), padding=((1, 1), (1, 1)),
            dimension_numbers=("NCHW", "OIHW", "NCHW"))

    def bn(x, g, b, m, v, eps=1e-5):
        g, b, m, v = (a.reshape(1, -1, 1, 1) for a in (g, b, m, v))
        return (x - m) / jnp.sqrt(v + eps) * g + b

    out = conv(x_nchw, params["w1"])
    out = bn(out, params["bn1_gamma"], params["bn1_beta"],
             params["bn1_mean"], params["bn1_var"])
    out = jnp.maximum(out, 0.0)
    out = conv(out, params["w2"])
    out = bn(out, params["bn2_gamma"], params["bn2_beta"],
             params["bn2_mean"], params["bn2_var"])
    out = out + x_nchw
    if not last:
        out = jnp.maximum(out, 0.0)
    return out


# -----------------------------------------------------------------------------
# Main
# -----------------------------------------------------------------------------
if __name__ == "__main__":
    key = jax.random.PRNGKey(0)
    N, C, Hs, Ws = 2, 4, 16, 16          # inplanes == planes (downsample=None)
    planes = C

    k = iter(jax.random.split(key, 12))
    x = jax.random.normal(next(k), (N, C, Hs, Ws), jnp.float32)

    params = {
        # conv weights stored HWIO (kh, kw, Cin, Cout)
        "w1": jax.random.normal(next(k), (3, 3, C, planes), jnp.float32) * 0.1,
        "w2": jax.random.normal(next(k), (3, 3, planes, planes), jnp.float32) * 0.1,
        "bn1_gamma": jax.random.uniform(next(k), (planes,), jnp.float32, 0.5, 1.5),
        "bn1_beta":  jax.random.normal(next(k), (planes,), jnp.float32) * 0.1,
        "bn1_mean":  jax.random.normal(next(k), (planes,), jnp.float32) * 0.1,
        "bn1_var":   jax.random.uniform(next(k), (planes,), jnp.float32, 0.5, 1.5),
        "bn2_gamma": jax.random.uniform(next(k), (planes,), jnp.float32, 0.5, 1.5),
        "bn2_beta":  jax.random.normal(next(k), (planes,), jnp.float32) * 0.1,
        "bn2_mean":  jax.random.normal(next(k), (planes,), jnp.float32) * 0.1,
        "bn2_var":   jax.random.uniform(next(k), (planes,), jnp.float32, 0.5, 1.5),
    }

    ref = basic_block_reference(x, params, last=False)

    # f32 MXU path: bit-for-bit comparable to the reference.
    out = basic_block_forward(x, params, last=False)
    out = jax.block_until_ready(out)
    assert out.shape == (N, C, Hs, Ws)
    assert out.dtype == x.dtype
    max_err = jnp.max(jnp.abs(out - ref))
    assert jnp.allclose(out, ref, atol=1e-4, rtol=1e-4), f"f32 max err {max_err}"

    # bf16 MXU path (peak-throughput configuration): f32 accumulation/epilogue,
    # so only operand-rounding error vs the f32 reference (loose tolerance).
    x_bf16 = x.astype(jnp.bfloat16)
    out_bf = basic_block_forward(x_bf16, params, last=False)
    out_bf = jax.block_until_ready(out_bf)
    assert out_bf.shape == (N, C, Hs, Ws)
    assert out_bf.dtype == jnp.bfloat16
    bf_err = jnp.max(jnp.abs(out_bf.astype(jnp.float32) - ref))
    assert bf_err < 1.5e-1, f"bf16 max err {bf_err}"

    print("KERNEL_OK")
</pallas_src>

<mosaic_0001>
module attributes {stable_mosaic.version = 11 : i64} {
  func.func @_basic_block_kernel(%arg0: i32, %arg1: memref<1x16x16x4xf32, #tpu.memory_space<vmem>>, %arg2: memref<36x4xf32, #tpu.memory_space<vmem>>, %arg3: memref<1x4xf32, #tpu.memory_space<vmem>>, %arg4: memref<36x4xf32, #tpu.memory_space<vmem>>, %arg5: memref<1x4xf32, #tpu.memory_space<vmem>>, %arg6: memref<1x16x16x4xf32, #tpu.memory_space<vmem>>, %arg7: memref<18x18x4xf32, #tpu.memory_space<vmem>>, %arg8: memref<256x36xf32, #tpu.memory_space<vmem>>) attributes {dimension_semantics = [#tpu.dimension_semantics<parallel>], iteration_bounds = array<i64: 2>, scalar_prefetch = 0 : i64, scratch_operands = 2 : i64, tpu.core_type = #tpu.core_type<tc>, window_params = [{transform_indices = @transform_0, window_bounds = array<i64: 1, 16, 16, 4>}, {pipeline_mode = #tpu.pipeline_mode<synchronous>, transform_indices = @transform_1, window_bounds = array<i64: 36, 4>}, {pipeline_mode = #tpu.pipeline_mode<synchronous>, transform_indices = @transform_2, window_bounds = array<i64: 1, 4>}, {pipeline_mode = #tpu.pipeline_mode<synchronous>, transform_indices = @transform_3, window_bounds = array<i64: 36, 4>}, {pipeline_mode = #tpu.pipeline_mode<synchronous>, transform_indices = @transform_4, window_bounds = array<i64: 1, 4>}, {transform_indices = @transform_5, window_bounds = array<i64: 1, 16, 16, 4>}]} {
    %cst = arith.constant 0.000000e+00 : f32
    %0 = vector.broadcast %cst : f32 to vector<1x18x4xf32>
    %c0 = arith.constant 0 : index
    %c0_0 = arith.constant 0 : index
    %c0_1 = arith.constant 0 : index
    %1 = vector.load %arg7[%c0, %c0_0, %c0_1] : memref<18x18x4xf32, #tpu.memory_space<vmem>>, vector<1x18x4xf32>
    tpu.vector_store %arg7[%c0, %c0_0, %c0_1], %0 {strides = array<i32>} : memref<18x18x4xf32, #tpu.memory_space<vmem>>, vector<1x18x4xf32>,
    %c17 = arith.constant 17 : index
    %c0_2 = arith.constant 0 : index
    %c0_3 = arith.constant 0 : index
    %2 = vector.load %arg7[%c17, %c0_2, %c0_3] : memref<18x18x4xf32, #tpu.memory_space<vmem>>, vector<1x18x4xf32>
    tpu.vector_store %arg7[%c17, %c0_2, %c0_3], %0 {strides = array<i32>} : memref<18x18x4xf32, #tpu.memory_space<vmem>>, vector<1x18x4xf32>,
    %cst_4 = arith.constant 0.000000e+00 : f32
    %3 = vector.broadcast %cst_4 : f32 to vector<16x1x4xf32>
    %c1 = arith.constant 1 : index
    %c0_5 = arith.constant 0 : index
    %c0_6 = arith.constant 0 : index
    %4 = vector.load %arg7[%c1, %c0_5, %c0_6] : memref<18x18x4xf32, #tpu.memory_space<vmem>>, vector<16x1x4xf32>
    tpu.vector_store %arg7[%c1, %c0_5, %c0_6], %3 {strides = array<i32>} : memref<18x18x4xf32, #tpu.memory_space<vmem>>, vector<16x1x4xf32>,
    %c1_7 = arith.constant 1 : index
    %c17_8 = arith.constant 17 : index
    %c0_9 = arith.constant 0 : index
    %5 = vector.load %arg7[%c1_7, %c17_8, %c0_9] : memref<18x18x4xf32, #tpu.memory_space<vmem>>, vector<16x1x4xf32>
    tpu.vector_store %arg7[%c1_7, %c17_8, %c0_9], %3 {strides = array<i32>} : memref<18x18x4xf32, #tpu.memory_space<vmem>>, vector<16x1x4xf32>,
    %c0_10 = arith.constant 0 : index
    %c0_11 = arith.constant 0 : index
    %c0_12 = arith.constant 0 : index
    %c0_13 = arith.constant 0 : index
    %6 = vector.load %arg1[%c0_10, %c0_11, %c0_12, %c0_13] : memref<1x16x16x4xf32, #tpu.memory_space<vmem>>, vector<1x16x16x4xf32>
    %7 = vector.shape_cast %6 : vector<1x16x16x4xf32> to vector<16x16x4xf32>
    %c1_14 = arith.constant 1 : index
    %c1_15 = arith.constant 1 : index
    %c0_16 = arith.constant 0 : index
    %8 = vector.load %arg7[%c1_14, %c1_15, %c0_16] : memref<18x18x4xf32, #tpu.memory_space<vmem>>, vector<16x16x4xf32>
    tpu.vector_store %arg7[%c1_14, %c1_15, %c0_16], %7 {strides = array<i32>} : memref<18x18x4xf32, #tpu.memory_space<vmem>>, vector<16x16x4xf32>,
    %c0_17 = arith.constant 0 : index
    %c0_18 = arith.constant 0 : index
    %c0_19 = arith.constant 0 : index
    %9 = vector.load %arg7[%c0_17, %c0_18, %c0_19] : memref<18x18x4xf32, #tpu.memory_space<vmem>>, vector<16x16x4xf32>
    %10 = vector.shape_cast %9 : vector<16x16x4xf32> to vector<256x4xf32>
    %c0_20 = arith.constant 0 : index
    %c0_21 = arith.constant 0 : index
    %11 = vector.load %arg8[%c0_20, %c0_21] : memref<256x36xf32, #tpu.memory_space<vmem>>, vector<256x4xf32>
    tpu.vector_store %arg8[%c0_20, %c0_21], %10 {strides = array<i32>} : memref<256x36xf32, #tpu.memory_space<vmem>>, vector<256x4xf32>,
    %c0_22 = arith.constant 0 : index
    %c1_23 = arith.constant 1 : index
    %c0_24 = arith.constant 0 : index
    %12 = vector.load %arg7[%c0_22, %c1_23, %c0_24] : memref<18x18x4xf32, #tpu.memory_space<vmem>>, vector<16x16x4xf32>
    %13 = vector.shape_cast %12 : vector<16x16x4xf32> to vector<256x4xf32>
    %c0_25 = arith.constant 0 : index
    %c4 = arith.constant 4 : index
    %14 = vector.load %arg8[%c0_25, %c4] : memref<256x36xf32, #tpu.memory_space<vmem>>, vector<256x4xf32>
    tpu.vector_store %arg8[%c0_25, %c4], %13 {strides = array<i32>} : memref<256x36xf32, #tpu.memory_space<vmem>>, vector<256x4xf32>,
    %c0_26 = arith.constant 0 : index
    %c2 = arith.constant 2 : index
    %c0_27 = arith.constant 0 : index
    %15 = vector.load %arg7[%c0_26, %c2, %c0_27] : memref<18x18x4xf32, #tpu.memory_space<vmem>>, vector<16x16x4xf32>
    %16 = vector.shape_cast %15 : vector<16x16x4xf32> to vector<256x4xf32>
    %c0_28 = arith.constant 0 : index
    %c8 = arith.constant 8 : index
    %17 = vector.load %arg8[%c0_28, %c8] : memref<256x36xf32, #tpu.memory_space<vmem>>, vector<256x4xf32>
    tpu.vector_store %arg8[%c0_28, %c8], %16 {strides = array<i32>} : memref<256x36xf32, #tpu.memory_space<vmem>>, vector<256x4xf32>,
    %c1_29 = arith.constant 1 : index
    %c0_30 = arith.constant 0 : index
    %c0_31 = arith.constant 0 : index
    %18 = vector.load %arg7[%c1_29, %c0_30, %c0_31] : memref<18x18x4xf32, #tpu.memory_space<vmem>>, vector<16x16x4xf32>
    %19 = vector.shape_cast %18 : vector<16x16x4xf32> to vector<256x4xf32>
    %c0_32 = arith.constant 0 : index
    %c12 = arith.constant 12 : index
    %20 = vector.load %arg8[%c0_32, %c12] : memref<256x36xf32, #tpu.memory_space<vmem>>, vector<256x4xf32>
    tpu.vector_store %arg8[%c0_32, %c12], %19 {strides = array<i32>} : memref<256x36xf32, #tpu.memory_space<vmem>>, vector<256x4xf32>,
    %c1_33 = arith.constant 1 : index
    %c1_34 = arith.constant 1 : index
    %c0_35 = arith.constant 0 : index
    %21 = vector.load %arg7[%c1_33, %c1_34, %c0_35] : memref<18x18x4xf32, #tpu.memory_space<vmem>>, vector<16x16x4xf32>
    %22 = vector.shape_cast %21 : vector<16x16x4xf32> to vector<256x4xf32>
    %c0_36 = arith.constant 0 : index
    %c16 = arith.constant 16 : index
    %23 = vector.load %arg8[%c0_36, %c16] : memref<256x36xf32, #tpu.memory_space<vmem>>, vector<256x4xf32>
    tpu.vector_store %arg8[%c0_36, %c16], %22 {strides = array<i32>} : memref<256x36xf32, #tpu.memory_space<vmem>>, vector<256x4xf32>,
    %c1_37 = arith.constant 1 : index
    %c2_38 = arith.constant 2 : index
    %c0_39 = arith.constant 0 : index
    %24 = vector.load %arg7[%c1_37, %c2_38, %c0_39] : memref<18x18x4xf32, #tpu.memory_space<vmem>>, vector<16x16x4xf32>
    %25 = vector.shape_cast %24 : vector<16x16x4xf32> to vector<256x4xf32>
    %c0_40 = arith.constant 0 : index
    %c20 = arith.constant 20 : index
    %26 = vector.load %arg8[%c0_40, %c20] : memref<256x36xf32, #tpu.memory_space<vmem>>, vector<256x4xf32>
    tpu.vector_store %arg8[%c0_40, %c20], %25 {strides = array<i32>} : memref<256x36xf32, #tpu.memory_space<vmem>>, vector<256x4xf32>,
    %c2_41 = arith.constant 2 : index
    %c0_42 = arith.constant 0 : index
    %c0_43 = arith.constant 0 : index
    %27 = vector.load %arg7[%c2_41, %c0_42, %c0_43] : memref<18x18x4xf32, #tpu.memory_space<vmem>>, vector<16x16x4xf32>
    %28 = vector.shape_cast %27 : vector<16x16x4xf32> to vector<256x4xf32>
    %c0_44 = arith.constant 0 : index
    %c24 = arith.constant 24 : index
    %29 = vector.load %arg8[%c0_44, %c24] : memref<256x36xf32, #tpu.memory_space<vmem>>, vector<256x4xf32>
    tpu.vector_store %arg8[%c0_44, %c24], %28 {strides = array<i32>} : memref<256x36xf32, #tpu.memory_space<vmem>>, vector<256x4xf32>,
    %c2_45 = arith.constant 2 : index
    %c1_46 = arith.constant 1 : index
    %c0_47 = arith.constant 0 : index
    %30 = vector.load %arg7[%c2_45, %c1_46, %c0_47] : memref<18x18x4xf32, #tpu.memory_space<vmem>>, vector<16x16x4xf32>
    %31 = vector.shape_cast %30 : vector<16x16x4xf32> to vector<256x4xf32>
    %c0_48 = arith.constant 0 : index
    %c28 = arith.constant 28 : index
    %32 = vector.load %arg8[%c0_48, %c28] : memref<256x36xf32, #tpu.memory_space<vmem>>, vector<256x4xf32>
    tpu.vector_store %arg8[%c0_48, %c28], %31 {strides = array<i32>} : memref<256x36xf32, #tpu.memory_space<vmem>>, vector<256x4xf32>,
    %c2_49 = arith.constant 2 : index
    %c2_50 = arith.constant 2 : index
    %c0_51 = arith.constant 0 : index
    %33 = vector.load %arg7[%c2_49, %c2_50, %c0_51] : memref<18x18x4xf32, #tpu.memory_space<vmem>>, vector<16x16x4xf32>
    %34 = vector.shape_cast %33 : vector<16x16x4xf32> to vector<256x4xf32>
    %c0_52 = arith.constant 0 : index
    %c32 = arith.constant 32 : index
    %35 = vector.load %arg8[%c0_52, %c32] : memref<256x36xf32, #tpu.memory_space<vmem>>, vector<256x4xf32>
    tpu.vector_store %arg8[%c0_52, %c32], %34 {strides = array<i32>} : memref<256x36xf32, #tpu.memory_space<vmem>>, vector<256x4xf32>,
    %c0_53 = arith.constant 0 : index
    %c0_54 = arith.constant 0 : index
    %36 = vector.load %arg8[%c0_53, %c0_54] : memref<256x36xf32, #tpu.memory_space<vmem>>, vector<256x36xf32>
    %c0_55 = arith.constant 0 : index
    %c0_56 = arith.constant 0 : index
    %37 = vector.load %arg2[%c0_55, %c0_56] : memref<36x4xf32, #tpu.memory_space<vmem>>, vector<36x4xf32>
    %cst_57 = arith.constant dense<0.000000e+00> : vector<256x4xf32>
    %38 = tpu.matmul %36, %37, %cst_57 {dimension_numbers = #tpu.dot_dimension_numbers<[1], [0], [0], [1], [0, 0, 1, 1], [], []>} : vector<256x36xf32>, vector<36x4xf32>, vector<256x4xf32> -> vector<256x4xf32>
    %c0_58 = arith.constant 0 : index
    %c0_59 = arith.constant 0 : index
    %39 = vector.load %arg3[%c0_58, %c0_59] : memref<1x4xf32, #tpu.memory_space<vmem>>, vector<1x4xf32>
    %40 = vector.broadcast %39 : vector<1x4xf32> to vector<256x4xf32>
    %41 = arith.addf %38, %40 : vector<256x4xf32>
    %cst_60 = arith.constant 0.000000e+00 : f32
    %42 = vector.broadcast %cst_60 : f32 to vector<256x4xf32>
    %43 = arith.maximumf %41, %42 : vector<256x4xf32>
    %44 = vector.shape_cast %43 : vector<256x4xf32> to vector<16x16x4xf32>
    %c1_61 = arith.constant 1 : index
    %c1_62 = arith.constant 1 : index
    %c0_63 = arith.constant 0 : index
    %45 = vector.load %arg7[%c1_61, %c1_62, %c0_63] : memref<18x18x4xf32, #tpu.memory_space<vmem>>, vector<16x16x4xf32>
    tpu.vector_store %arg7[%c1_61, %c1_62, %c0_63], %44 {strides = array<i32>} : memref<18x18x4xf32, #tpu.memory_space<vmem>>, vector<16x16x4xf32>,
    %c0_64 = arith.constant 0 : index
    %c0_65 = arith.constant 0 : index
    %c0_66 = arith.constant 0 : index
    %46 = vector.load %arg7[%c0_64, %c0_65, %c0_66] : memref<18x18x4xf32, #tpu.memory_space<vmem>>, vector<16x16x4xf32>
    %47 = vector.shape_cast %46 : vector<16x16x4xf32> to vector<256x4xf32>
    %c0_67 = arith.constant 0 : index
    %c0_68 = arith.constant 0 : index
    %48 = vector.load %arg8[%c0_67, %c0_68] : memref<256x36xf32, #tpu.memory_space<vmem>>, vector<256x4xf32>
    tpu.vector_store %arg8[%c0_67, %c0_68], %47 {strides = array<i32>} : memref<256x36xf32, #tpu.memory_space<vmem>>, vector<256x4xf32>,
    %c0_69 = arith.constant 0 : index
    %c1_70 = arith.constant 1 : index
    %c0_71 = arith.constant 0 : index
    %49 = vector.load %arg7[%c0_69, %c1_70, %c0_71] : memref<18x18x4xf32, #tpu.memory_space<vmem>>, vector<16x16x4xf32>
    %50 = vector.shape_cast %49 : vector<16x16x4xf32> to vector<256x4xf32>
    %c0_72 = arith.constant 0 : index
    %c4_73 = arith.constant 4 : index
    %51 = vector.load %arg8[%c0_72, %c4_73] : memref<256x36xf32, #tpu.memory_space<vmem>>, vector<256x4xf32>
    tpu.vector_store %arg8[%c0_72, %c4_73], %50 {strides = array<i32>} : memref<256x36xf32, #tpu.memory_space<vmem>>, vector<256x4xf32>,
    %c0_74 = arith.constant 0 : index
    %c2_75 = arith.constant 2 : index
    %c0_76 = arith.constant 0 : index
    %52 = vector.load %arg7[%c0_74, %c2_75, %c0_76] : memref<18x18x4xf32, #tpu.memory_space<vmem>>, vector<16x16x4xf32>
    %53 = vector.shape_cast %52 : vector<16x16x4xf32> to vector<256x4xf32>
    %c0_77 = arith.constant 0 : index
    %c8_78 = arith.constant 8 : index
    %54 = vector.load %arg8[%c0_77, %c8_78] : memref<256x36xf32, #tpu.memory_space<vmem>>, vector<256x4xf32>
    tpu.vector_store %arg8[%c0_77, %c8_78], %53 {strides = array<i32>} : memref<256x36xf32, #tpu.memory_space<vmem>>, vector<256x4xf32>,
    %c1_79 = arith.constant 1 : index
    %c0_80 = arith.constant 0 : index
    %c0_81 = arith.constant 0 : index
    %55 = vector.load %arg7[%c1_79, %c0_80, %c0_81] : memref<18x18x4xf32, #tpu.memory_space<vmem>>, vector<16x16x4xf32>
    %56 = vector.shape_cast %55 : vector<16x16x4xf32> to vector<256x4xf32>
    %c0_82 = arith.constant 0 : index
    %c12_83 = arith.constant 12 : index
    %57 = vector.load %arg8[%c0_82, %c12_83] : memref<256x36xf32, #tpu.memory_space<vmem>>, vector<256x4xf32>
    tpu.vector_store %arg8[%c0_82, %c12_83], %56 {strides = array<i32>} : memref<256x36xf32, #tpu.memory_space<vmem>>, vector<256x4xf32>,
    %c1_84 = arith.constant 1 : index
    %c1_85 = arith.constant 1 : index
    %c0_86 = arith.constant 0 : index
    %58 = vector.load %arg7[%c1_84, %c1_85, %c0_86] : memref<18x18x4xf32, #tpu.memory_space<vmem>>, vector<16x16x4xf32>
    %59 = vector.shape_cast %58 : vector<16x16x4xf32> to vector<256x4xf32>
    %c0_87 = arith.constant 0 : index
    %c16_88 = arith.constant 16 : index
    %60 = vector.load %arg8[%c0_87, %c16_88] : memref<256x36xf32, #tpu.memory_space<vmem>>, vector<256x4xf32>
    tpu.vector_store %arg8[%c0_87, %c16_88], %59 {strides = array<i32>} : memref<256x36xf32, #tpu.memory_space<vmem>>, vector<256x4xf32>,
    %c1_89 = arith.constant 1 : index
    %c2_90 = arith.constant 2 : index
    %c0_91 = arith.constant 0 : index
    %61 = vector.load %arg7[%c1_89, %c2_90, %c0_91] : memref<18x18x4xf32, #tpu.memory_space<vmem>>, vector<16x16x4xf32>
    %62 = vector.shape_cast %61 : vector<16x16x4xf32> to vector<256x4xf32>
    %c0_92 = arith.constant 0 : index
    %c20_93 = arith.constant 20 : index
    %63 = vector.load %arg8[%c0_92, %c20_93] : memref<256x36xf32, #tpu.memory_space<vmem>>, vector<256x4xf32>
    tpu.vector_store %arg8[%c0_92, %c20_93], %62 {strides = array<i32>} : memref<256x36xf32, #tpu.memory_space<vmem>>, vector<256x4xf32>,
    %c2_94 = arith.constant 2 : index
    %c0_95 = arith.constant 0 : index
    %c0_96 = arith.constant 0 : index
    %64 = vector.load %arg7[%c2_94, %c0_95, %c0_96] : memref<18x18x4xf32, #tpu.memory_space<vmem>>, vector<16x16x4xf32>
    %65 = vector.shape_cast %64 : vector<16x16x4xf32> to vector<256x4xf32>
    %c0_97 = arith.constant 0 : index
    %c24_98 = arith.constant 24 : index
    %66 = vector.load %arg8[%c0_97, %c24_98] : memref<256x36xf32, #tpu.memory_space<vmem>>, vector<256x4xf32>
    tpu.vector_store %arg8[%c0_97, %c24_98], %65 {strides = array<i32>} : memref<256x36xf32, #tpu.memory_space<vmem>>, vector<256x4xf32>,
    %c2_99 = arith.constant 2 : index
    %c1_100 = arith.constant 1 : index
    %c0_101 = arith.constant 0 : index
    %67 = vector.load %arg7[%c2_99, %c1_100, %c0_101] : memref<18x18x4xf32, #tpu.memory_space<vmem>>, vector<16x16x4xf32>
    %68 = vector.shape_cast %67 : vector<16x16x4xf32> to vector<256x4xf32>
    %c0_102 = arith.constant 0 : index
    %c28_103 = arith.constant 28 : index
    %69 = vector.load %arg8[%c0_102, %c28_103] : memref<256x36xf32, #tpu.memory_space<vmem>>, vector<256x4xf32>
    tpu.vector_store %arg8[%c0_102, %c28_103], %68 {strides = array<i32>} : memref<256x36xf32, #tpu.memory_space<vmem>>, vector<256x4xf32>,
    %c2_104 = arith.constant 2 : index
    %c2_105 = arith.constant 2 : index
    %c0_106 = arith.constant 0 : index
    %70 = vector.load %arg7[%c2_104, %c2_105, %c0_106] : memref<18x18x4xf32, #tpu.memory_space<vmem>>, vector<16x16x4xf32>
    %71 = vector.shape_cast %70 : vector<16x16x4xf32> to vector<256x4xf32>
    %c0_107 = arith.constant 0 : index
    %c32_108 = arith.constant 32 : index
    %72 = vector.load %arg8[%c0_107, %c32_108] : memref<256x36xf32, #tpu.memory_space<vmem>>, vector<256x4xf32>
    tpu.vector_store %arg8[%c0_107, %c32_108], %71 {strides = array<i32>} : memref<256x36xf32, #tpu.memory_space<vmem>>, vector<256x4xf32>,
    %c0_109 = arith.constant 0 : index
    %c0_110 = arith.constant 0 : index
    %73 = vector.load %arg8[%c0_109, %c0_110] : memref<256x36xf32, #tpu.memory_space<vmem>>, vector<256x36xf32>
    %c0_111 = arith.constant 0 : index
    %c0_112 = arith.constant 0 : index
    %74 = vector.load %arg4[%c0_111, %c0_112] : memref<36x4xf32, #tpu.memory_space<vmem>>, vector<36x4xf32>
    %cst_113 = arith.constant dense<0.000000e+00> : vector<256x4xf32>
    %75 = tpu.matmul %73, %74, %cst_113 {dimension_numbers = #tpu.dot_dimension_numbers<[1], [0], [0], [1], [0, 0, 1, 1], [], []>} : vector<256x36xf32>, vector<36x4xf32>, vector<256x4xf32> -> vector<256x4xf32>
    %c0_114 = arith.constant 0 : index
    %c0_115 = arith.constant 0 : index
    %76 = vector.load %arg5[%c0_114, %c0_115] : memref<1x4xf32, #tpu.memory_space<vmem>>, vector<1x4xf32>
    %77 = vector.broadcast %76 : vector<1x4xf32> to vector<256x4xf32>
    %78 = arith.addf %75, %77 : vector<256x4xf32>
    %79 = vector.shape_cast %7 : vector<16x16x4xf32> to vector<256x4xf32>
    %80 = arith.addf %78, %79 : vector<256x4xf32>
    %cst_116 = arith.constant 0.000000e+00 : f32
    %81 = vector.broadcast %cst_116 : f32 to vector<256x4xf32>
    %82 = arith.maximumf %80, %81 : vector<256x4xf32>
    %83 = vector.shape_cast %82 : vector<256x4xf32> to vector<16x16x4xf32>
    %c0_117 = arith.constant 0 : index
    %c0_118 = arith.constant 0 : index
    %c0_119 = arith.constant 0 : index
    %c0_120 = arith.constant 0 : index
    %84 = vector.load %arg6[%c0_117, %c0_118, %c0_119, %c0_120] : memref<1x16x16x4xf32, #tpu.memory_space<vmem>>, vector<1x16x16x4xf32>
    %85 = vector.shape_cast %84 : vector<1x16x16x4xf32> to vector<16x16x4xf32>
    %86 = vector.shape_cast %83 : vector<16x16x4xf32> to vector<1x16x16x4xf32>
    tpu.vector_store %arg6[%c0_117, %c0_118, %c0_119, %c0_120], %86 {strides = array<i32>} : memref<1x16x16x4xf32, #tpu.memory_space<vmem>>, vector<1x16x16x4xf32>,
    return
  }
  func.func @transform_0(%arg0: i32) -> (i32, i32, i32, i32) {
    %c0_i32 = arith.constant 0 : i32
    %c0_i32_0 = arith.constant 0 : i32
    %c0_i32_1 = arith.constant 0 : i32
    %c0_i32_2 = arith.constant 0 : i32
    return %arg0, %c0_i32, %c0_i32_0, %c0_i32_1 : i32, i32, i32, i32
  }
  func.func @transform_1(%arg0: i32) -> (i32, i32) {
    %c0_i32 = arith.constant 0 : i32
    %c0_i32_0 = arith.constant 0 : i32
    %c0_i32_1 = arith.constant 0 : i32
    return %c0_i32, %c0_i32_0 : i32, i32
  }
  func.func @transform_2(%arg0: i32) -> (i32, i32) {
    %c0_i32 = arith.constant 0 : i32
    %c0_i32_0 = arith.constant 0 : i32
    %c0_i32_1 = arith.constant 0 : i32
    return %c0_i32, %c0_i32_0 : i32, i32
  }
  func.func @transform_3(%arg0: i32) -> (i32, i32) {
    %c0_i32 = arith.constant 0 : i32
    %c0_i32_0 = arith.constant 0 : i32
    %c0_i32_1 = arith.constant 0 : i32
    return %c0_i32, %c0_i32_0 : i32, i32
  }
  func.func @transform_4(%arg0: i32) -> (i32, i32) {
    %c0_i32 = arith.constant 0 : i32
    %c0_i32_0 = arith.constant 0 : i32
    %c0_i32_1 = arith.constant 0 : i32
    return %c0_i32, %c0_i32_0 : i32, i32
  }
  func.func @transform_5(%arg0: i32) -> (i32, i32, i32, i32) {
    %c0_i32 = arith.constant 0 : i32
    %c0_i32_0 = arith.constant 0 : i32
    %c0_i32_1 = arith.constant 0 : i32
    %c0_i32_2 = arith.constant 0 : i32
    return %arg0, %c0_i32, %c0_i32_0, %c0_i32_1 : i32, i32, i32, i32
  }
}

</mosaic_0001>

<llo_original>
// kernel: tpu_custom_call.1
$region0: #{tpu_custom_call.1}
  #allocation0 [shape = 'u32[]', space=smem, size = 0x4, offset = 0x4, fixed_abs, tag = 'smem constant byte address 0x4 - core index']
  #allocation1 [shape = 'u32[144,128]{1,0:T(1,128)}', space=vmem, size = 0x12000, scoped, tag = 'internal scratch']
  #allocation2 [shape = 'f32[18,18,4]{2,1,0:T(8,128)}', space=vmem, size = 0x36000, scoped, tag = 'scratch operand']
  #allocation3 [shape = 'f32[256,36]{1,0:T(8,128)}', space=vmem, size = 0x20000, scoped, tag = 'scratch operand']
  %s0 = inlined_call_operand.vmem [shape: f32[2,16,16,4], index: 0, kind: input, shape index: {}]
  %s1 = inlined_call_operand.vmem [shape: f32[36,4], index: 1, kind: input, shape index: {}]
  %s2 = inlined_call_operand.vmem [shape: f32[1,4], index: 2, kind: input, shape index: {}]
  %s3 = inlined_call_operand.vmem [shape: f32[36,4], index: 3, kind: input, shape index: {}]
  %s4 = inlined_call_operand.vmem [shape: f32[1,4], index: 4, kind: input, shape index: {}]
  %s5 = inlined_call_operand.vmem [shape: f32[2,16,16,4], index: 5, kind: output, shape index: {}]
  %s6 = sld [smem:[#allocation0]]
  $region53: #{tpu_custom_call.1} parent=0
    _
  %s8 = ssub.s32 1, %s6
  %s9 = scalar_select 0, %s8, %s6
  loop: start=0, step=1, limit=4
  $region2: #{tpu_custom_call.1} parent=0 // loop_pre_header
    _
  $region3: #{tpu_custom_call.1} parent=0 // loop_header
    %s11 = sphi 0, %s15
    %p12 = scmp.ge.s32.totalorder %s11, 4
    %s21 = sphi 0, %s23
    %s24 = sphi 0, %s21
    %s25 = sphi 0, %s24
    %s41 = sphi 0, %s25
    %s45 = sphi 0, %s45
    %s47 = sphi 0, %s45
    %s48 = sphi 0, %s47
    %s62 = sphi 0, %s48
    %s66 = sphi 0, %s66
    %s68 = sphi 0, %s66
    %s69 = sphi 0, %s68
    %s83 = sphi 0, %s69
    %s87 = sphi 0, %s87
    %s89 = sphi 0, %s87
    %s90 = sphi 0, %s89
    %s104 = sphi 0, %s90
    %s108 = sphi 0, %s108
    %s110 = sphi 0, %s108
    %s111 = sphi 0, %s110
    %s125 = sphi 0, %s111
    %s131 = sphi 0, %s133
    %s134 = sphi 0, %s131
    %s135 = sphi 0, %s134
    %s151 = sphi 0, %s135
  $region4: #{tpu_custom_call.1} parent=0 // loop_header_branch
    %14 = sbr.rel (%p12) target = $region8
  $region5: #{tpu_custom_call.1} parent=0 // loop_body
    %s16 = ssub.s32 %s11, 1
    %s17 = ssub.s32 %s11, 2
    %s18 = sadd.s32 %s11, 1
    %s19 = ssub.s32 %s11, %s18
    %p20 = scmp.eq.s32.totalorder %s19, 0
    %s22 = sadd.s32 %s21, 1
    %s23 = scalar_select %p20, %s21, %s22
    %p26 = pneg %p20
    %p27 = scmp.eq.s32.totalorder %s11, 1
    %p28 = por %p26, %p27
    %p29 = scmp.ne.s32.totalorder %s21, %s24
    %p30 = scmp.eq.s32.totalorder %s11, 0
    %p31 = por %p29, %p30
    %p32 = scmp.ne.s32.totalorder %s21, %s24
    %p33 = scmp.eq.s32.totalorder %s16, 1
    %p34 = por %p32, %p33
    %p35 = scmp.ne.s32.totalorder %s24, %s25
    %p36 = scmp.eq.s32.totalorder %s16, 0
    %p37 = por %p35, %p36
    %p38 = scmp.ne.s32.totalorder %s24, %s25
    %p39 = scmp.eq.s32.totalorder %s17, 1
    %p40 = por %p38, %p39
    %p42 = scmp.ne.s32.totalorder %s25, %s41
    %p43 = scmp.eq.s32.totalorder %s17, 0
    %p44 = por %p42, %p43
    %s46 = sadd.s32 %s45, 1
    %p49 = scmp.eq.s32.totalorder %s11, 1
    %p50 = scmp.ne.s32.totalorder %s45, %s47
    %p51 = scmp.eq.s32.totalorder %s11, 0
    %p52 = por %p50, %p51
    %p53 = scmp.ne.s32.totalorder %s45, %s47
    %p54 = scmp.eq.s32.totalorder %s16, 1
    %p55 = por %p53, %p54
    %p56 = scmp.ne.s32.totalorder %s47, %s48
    %p57 = scmp.eq.s32.totalorder %s16, 0
    %p58 = por %p56, %p57
    %p59 = scmp.ne.s32.totalorder %s47, %s48
    %p60 = scmp.eq.s32.totalorder %s17, 1
    %p61 = por %p59, %p60
    %p63 = scmp.ne.s32.totalorder %s48, %s62
    %p64 = scmp.eq.s32.totalorder %s17, 0
    %p65 = por %p63, %p64
    %s67 = sadd.s32 %s66, 1
    %p70 = scmp.eq.s32.totalorder %s11, 1
    %p71 = scmp.ne.s32.totalorder %s66, %s68
    %p72 = scmp.eq.s32.totalorder %s11, 0
    %p73 = por %p71, %p72
    %p74 = scmp.ne.s32.totalorder %s66, %s68
    %p75 = scmp.eq.s32.totalorder %s16, 1
    %p76 = por %p74, %p75
    %p77 = scmp.ne.s32.totalorder %s68, %s69
    %p78 = scmp.eq.s32.totalorder %s16, 0
    %p79 = por %p77, %p78
    %p80 = scmp.ne.s32.totalorder %s68, %s69
    %p81 = scmp.eq.s32.totalorder %s17, 1
    %p82 = por %p80, %p81
    %p84 = scmp.ne.s32.totalorder %s69, %s83
    %p85 = scmp.eq.s32.totalorder %s17, 0
    %p86 = por %p84, %p85
    %s88 = sadd.s32 %s87, 1
    %p91 = scmp.eq.s32.totalorder %s11, 1
    %p92 = scmp.ne.s32.totalorder %s87, %s89
    %p93 = scmp.eq.s32.totalorder %s11, 0
    %p94 = por %p92, %p93
    %p95 = scmp.ne.s32.totalorder %s87, %s89
    %p96 = scmp.eq.s32.totalorder %s16, 1
    %p97 = por %p95, %p96
    %p98 = scmp.ne.s32.totalorder %s89, %s90
    %p99 = scmp.eq.s32.totalorder %s16, 0
    %p100 = por %p98, %p99
    %p101 = scmp.ne.s32.totalorder %s89, %s90
    %p102 = scmp.eq.s32.totalorder %s17, 1
    %p103 = por %p101, %p102
    %p105 = scmp.ne.s32.totalorder %s90, %s104
    %p106 = scmp.eq.s32.totalorder %s17, 0
    %p107 = por %p105, %p106
    %s109 = sadd.s32 %s108, 1
    %p112 = scmp.eq.s32.totalorder %s11, 1
    %p113 = scmp.ne.s32.totalorder %s108, %s110
    %p114 = scmp.eq.s32.totalorder %s11, 0
    %p115 = por %p113, %p114
    %p116 = scmp.ne.s32.totalorder %s108, %s110
    %p117 = scmp.eq.s32.totalorder %s16, 1
    %p118 = por %p116, %p117
    %p119 = scmp.ne.s32.totalorder %s110, %s111
    %p120 = scmp.eq.s32.totalorder %s16, 0
    %p121 = por %p119, %p120
    %p122 = scmp.ne.s32.totalorder %s110, %s111
    %p123 = scmp.eq.s32.totalorder %s17, 1
    %p124 = por %p122, %p123
    %p126 = scmp.ne.s32.totalorder %s111, %s125
    %p127 = scmp.eq.s32.totalorder %s17, 0
    %p128 = por %p126, %p127
    %s129 = ssub.s32 %s11, %s18
    %p130 = scmp.eq.s32.totalorder %s129, 0
    %s132 = sadd.s32 %s131, 1
    %s133 = scalar_select %p130, %s131, %s132
    %p136 = pneg %p130
    %p137 = scmp.eq.s32.totalorder %s11, 1
    %p138 = por %p136, %p137
    %p139 = scmp.ne.s32.totalorder %s131, %s134
    %p140 = scmp.eq.s32.totalorder %s11, 0
    %p141 = por %p139, %p140
    %p142 = scmp.ne.s32.totalorder %s131, %s134
    %p143 = scmp.eq.s32.totalorder %s16, 1
    %p144 = por %p142, %p143
    %p145 = scmp.ne.s32.totalorder %s134, %s135
    %p146 = scmp.eq.s32.totalorder %s16, 0
    %p147 = por %p145, %p146
    %p148 = scmp.ne.s32.totalorder %s134, %s135
    %p149 = scmp.eq.s32.totalorder %s17, 1
    %p150 = por %p148, %p149
    %p152 = scmp.ne.s32.totalorder %s135, %s151
    %p153 = scmp.eq.s32.totalorder %s17, 0
    %p154 = por %p152, %p153
    %p155 = scmp.le.s32.totalorder 1, %s11
    %p156 = scmp.lt.s32.totalorder %s11, 3
    %p157 = pnand %p155, %p156
    %p158 = pneg %p157
    // Predicated region
    $region9: #{tpu_custom_call.1} parent=5 // pred_check
      _
    $region10: #{tpu_custom_call.1} parent=5 // pred_check_branch
      %160 = sbr.rel (%p157) target = $region12
    $region11: #{tpu_custom_call.1} parent=5 // pred_region
      %s161 = ssub.s32 %s11, 1
      // Predicated region
      $region13: #{tpu_custom_call.1} parent=11 // pred_check
        %p162 = pneg %p58
      $region14: #{tpu_custom_call.1} parent=11 // pred_check_branch
        %164 = sbr.rel (%p162) target = $region16
      $region15: #{tpu_custom_call.1} parent=11 // pred_region
        _
      $region16: #{tpu_custom_call.1} parent=11 // pred_fallthru
        _
      // Predicated region
      $region17: #{tpu_custom_call.1} parent=11 // pred_check
        %p165 = pneg %p79
      $region18: #{tpu_custom_call.1} parent=11 // pred_check_branch
        %167 = sbr.rel (%p165) target = $region20
      $region19: #{tpu_custom_call.1} parent=11 // pred_region
        _
      $region20: #{tpu_custom_call.1} parent=11 // pred_fallthru
        _
      // Predicated region
      $region21: #{tpu_custom_call.1} parent=11 // pred_check
        %p168 = pneg %p100
      $region22: #{tpu_custom_call.1} parent=11 // pred_check_branch
        %170 = sbr.rel (%p168) target = $region24
      $region23: #{tpu_custom_call.1} parent=11 // pred_region
        _
      $region24: #{tpu_custom_call.1} parent=11 // pred_fallthru
        _
      // Predicated region
      $region25: #{tpu_custom_call.1} parent=11 // pred_check
        %p171 = pneg %p121
      $region26: #{tpu_custom_call.1} parent=11 // pred_check_branch
        %173 = sbr.rel (%p171) target = $region28
      $region27: #{tpu_custom_call.1} parent=11 // pred_region
        _
      $region28: #{tpu_custom_call.1} parent=11 // pred_fallthru
        _
    $region12: #{tpu_custom_call.1} parent=5 // pred_fallthru
      _
    %p174 = scmp.lt.s32.totalorder %s11, 2
    // Predicated region
    $region29: #{tpu_custom_call.1} parent=5 // pred_check
      %p175 = pneg %p174
    $region30: #{tpu_custom_call.1} parent=5 // pred_check_branch
      %177 = sbr.rel (%p175) target = $region32
    $region31: #{tpu_custom_call.1} parent=5 // pred_region
      // Predicated region
      $region33: #{tpu_custom_call.1} parent=31 // pred_check
        %p178 = pneg %p31
      $region34: #{tpu_custom_call.1} parent=31 // pred_check_branch
        %180 = sbr.rel (%p178) target = $region36
      $region35: #{tpu_custom_call.1} parent=31 // pred_region
        %p181 = scmp.lt.s32.totalorder %s11, 1
        %s182 = scalar_select %p181, %s11, 1
        %s183 = smul.addr %s182, 32
        %s184 = smul.addr %s183, 8
        %s185 = scalar_lea.vmem %s0, %s184
      $region36: #{tpu_custom_call.1} parent=31 // pred_fallthru
        _
    $region32: #{tpu_custom_call.1} parent=5 // pred_fallthru
      _
    %p186 = scmp.le.s32.totalorder 1, %s11
    %p187 = scmp.lt.s32.totalorder %s11, 3
    %p188 = pnand %p186, %p187
    %p189 = pneg %p188
    // Predicated region
    $region37: #{tpu_custom_call.1} parent=5 // pred_check
      _
    $region38: #{tpu_custom_call.1} parent=5 // pred_check_branch
      %191 = sbr.rel (%p188) target = $region40
    $region39: #{tpu_custom_call.1} parent=5 // pred_region
      %s192 = ssub.s32 %s11, 1
      %p193 = scmp.lt.s32.totalorder %s16, 1
      %s194 = scalar_select %p193, %s16, 1
      %s195 = smul.addr %s194, 32
      %s196 = smul.addr %s195, 8
      %s197 = scalar_lea.vmem %s0, %s196
      %p198 = pneg %p37
      %p199 = pneg %p34
      %p200 = pneg %p58
      %p201 = pneg %p55
      %p202 = pneg %p79
      %p203 = pneg %p76
      %p204 = pneg %p100
      %p205 = pneg %p97
      %p206 = pneg %p121
      %p207 = pneg %p118
      %p208 = pneg %p147
      %p209 = pneg %p144
      %p210 = scmp.lt.s32.totalorder %s16, 1
      %s211 = scalar_select %p210, %s16, 1
      %s212 = smul.addr %s211, 32
      %s213 = smul.addr %s212, 8
      %s214 = scalar_lea.vmem %s5, %s213
      %p215 = scmp.lt.s32.totalorder %s16, 1
      %s216 = scalar_select %p215, %s16, 1
      %s217 = smul.addr %s216, 32
      %s218 = smul.addr %s217, 8
      %s219 = scalar_lea.vmem %s0, %s218
      %p220 = scmp.lt.s32.totalorder %s16, 1
      %s221 = scalar_select %p220, %s16, 1
      %s222 = smul.addr %s221, 32
      %s223 = smul.addr %s222, 8
      %s224 = scalar_lea.vmem %s5, %s223
      %vm225 = vcmask 31744
      %226 = vst.msk [vmem:[#allocation2] sm:$0xff] %vm225, 0.0
      %227 = vst.msk [vmem:[#allocation2 + $0x8] sm:$0xff] %vm225, 0.0
      %vm228 = vcmask 25600
      %229 = vst.msk [vmem:[#allocation2 + $0x10] sm:$0x3] %vm228, 0.0
      %s230 = scalar_lea.vmem [#allocation2], 408
      %231 = vst.msk [vmem:[%s230] sm:$0xff] %vm225, 0.0
      %232 = vst.msk [vmem:[%s230 + $0x8] sm:$0xff] %vm225, 0.0
      %233 = vst.msk [vmem:[%s230 + $0x10] sm:$0x3] %vm228, 0.0
      %s234 = scalar_lea.vmem [#allocation2], 24
      %vm235 = vcmask 24576
      %236 = vst.msk [vmem:[%s234] sm:$0x1] %vm235, 0.0
      %237 = vst.msk [vmem:[%s234 + $0x18] sm:$0x1] %vm235, 0.0
      %238 = vst.msk [vmem:[%s234 + $0x30] sm:$0x1] %vm235, 0.0
      %239 = vst.msk [vmem:[%s234 + $0x48] sm:$0x1] %vm235, 0.0
      %240 = vst.msk [vmem:[%s234 + $0x60] sm:$0x1] %vm235, 0.0
      %241 = vst.msk [vmem:[%s234 + $0x78] sm:$0x1] %vm235, 0.0
      %242 = vst.msk [vmem:[%s234 + $0x90] sm:$0x1] %vm235, 0.0
      %243 = vst.msk [vmem:[%s234 + $0xa8] sm:$0x1] %vm235, 0.0
      %244 = vst.msk [vmem:[%s234 + $0xc0] sm:$0x1] %vm235, 0.0
      %245 = vst.msk [vmem:[%s234 + $0xd8] sm:$0x1] %vm235, 0.0
      %246 = vst.msk [vmem:[%s234 + $0xf0] sm:$0x1] %vm235, 0.0
      %247 = vst.msk [vmem:[%s234 + $0x108] sm:$0x1] %vm235, 0.0
      %248 = vst.msk [vmem:[%s234 + $0x120] sm:$0x1] %vm235, 0.0
      %249 = vst.msk [vmem:[%s234 + $0x138] sm:$0x1] %vm235, 0.0
      %250 = vst.msk [vmem:[%s234 + $0x150] sm:$0x1] %vm235, 0.0
      %251 = vst.msk [vmem:[%s234 + $0x168] sm:$0x1] %vm235, 0.0
      %252 = vst.msk [vmem:[%s234 + $0x11] sm:$0x1] %vm235, 0.0
      %253 = vst.msk [vmem:[%s234 + $0x29] sm:$0x1] %vm235, 0.0
      %254 = vst.msk [vmem:[%s234 + $0x41] sm:$0x1] %vm235, 0.0
      %255 = vst.msk [vmem:[%s234 + $0x59] sm:$0x1] %vm235, 0.0
      %256 = vst.msk [vmem:[%s234 + $0x71] sm:$0x1] %vm235, 0.0
      %257 = vst.msk [vmem:[%s234 + $0x89] sm:$0x1] %vm235, 0.0
      %258 = vst.msk [vmem:[%s234 + $0xa1] sm:$0x1] %vm235, 0.0
      %259 = vst.msk [vmem:[%s234 + $0xb9] sm:$0x1] %vm235, 0.0
      %260 = vst.msk [vmem:[%s234 + $0xd1] sm:$0x1] %vm235, 0.0
      %261 = vst.msk [vmem:[%s234 + $0xe9] sm:$0x1] %vm235, 0.0
      %262 = vst.msk [vmem:[%s234 + $0x101] sm:$0x1] %vm235, 0.0
      %263 = vst.msk [vmem:[%s234 + $0x119] sm:$0x1] %vm235, 0.0
      %264 = vst.msk [vmem:[%s234 + $0x131] sm:$0x1] %vm235, 0.0
      %265 = vst.msk [vmem:[%s234 + $0x149] sm:$0x1] %vm235, 0.0
      %266 = vst.msk [vmem:[%s234 + $0x161] sm:$0x1] %vm235, 0.0
      %267 = vst.msk [vmem:[%s234 + $0x179] sm:$0x1] %vm235, 0.0
      %v268 = vld [vmem:[%s219] sm:$0xff]
      %v269 = vld [vmem:[%s219 + $0x8] sm:$0xff]
      %v270 = vld [vmem:[%s219 + $0x10] sm:$0xff]
      %v271 = vld [vmem:[%s219 + $0x18] sm:$0xff]
      %v272 = vld [vmem:[%s219 + $0x20] sm:$0xff]
      %v273 = vld [vmem:[%s219 + $0x28] sm:$0xff]
      %v274 = vld [vmem:[%s219 + $0x30] sm:$0xff]
      %v275 = vld [vmem:[%s219 + $0x38] sm:$0xff]
      %v276 = vld [vmem:[%s219 + $0x40] sm:$0xff]
      %v277 = vld [vmem:[%s219 + $0x48] sm:$0xff]
      %v278 = vld [vmem:[%s219 + $0x50] sm:$0xff]
      %v279 = vld [vmem:[%s219 + $0x58] sm:$0xff]
      %v280 = vld [vmem:[%s219 + $0x60] sm:$0xff]
      %v281 = vld [vmem:[%s219 + $0x68] sm:$0xff]
      %v282 = vld [vmem:[%s219 + $0x70] sm:$0xff]
      %v283 = vld [vmem:[%s219 + $0x78] sm:$0xff]
      %v284 = vld [vmem:[%s219 + $0x80] sm:$0xff]
      %v285 = vld [vmem:[%s219 + $0x88] sm:$0xff]
      %v286 = vld [vmem:[%s219 + $0x90] sm:$0xff]
      %v287 = vld [vmem:[%s219 + $0x98] sm:$0xff]
      %v288 = vld [vmem:[%s219 + $0xa0] sm:$0xff]
      %v289 = vld [vmem:[%s219 + $0xa8] sm:$0xff]
      %v290 = vld [vmem:[%s219 + $0xb0] sm:$0xff]
      %v291 = vld [vmem:[%s219 + $0xb8] sm:$0xff]
      %v292 = vld [vmem:[%s219 + $0xc0] sm:$0xff]
      %v293 = vld [vmem:[%s219 + $0xc8] sm:$0xff]
      %v294 = vld [vmem:[%s219 + $0xd0] sm:$0xff]
      %v295 = vld [vmem:[%s219 + $0xd8] sm:$0xff]
      %v296 = vld [vmem:[%s219 + $0xe0] sm:$0xff]
      %v297 = vld [vmem:[%s219 + $0xe8] sm:$0xff]
      %v298 = vld [vmem:[%s219 + $0xf0] sm:$0xff]
      %v299 = vld [vmem:[%s219 + $0xf8] sm:$0xff]
      %300 = vst.msk [vmem:[%s234 + $0x1] sm:$0xff] %vm225, %v268
      %301 = vst.msk [vmem:[%s234 + $0x9] sm:$0xff] %vm225, %v269
      %302 = vst.msk [vmem:[%s234 + $0x19] sm:$0xff] %vm225, %v270
      %303 = vst.msk [vmem:[%s234 + $0x21] sm:$0xff] %vm225, %v271
      %304 = vst.msk [vmem:[%s234 + $0x31] sm:$0xff] %vm225, %v272
      %305 = vst.msk [vmem:[%s234 + $0x39] sm:$0xff] %vm225, %v273
      %306 = vst.msk [vmem:[%s234 + $0x49] sm:$0xff] %vm225, %v274
      %307 = vst.msk [vmem:[%s234 + $0x51] sm:$0xff] %vm225, %v275
      %308 = vst.msk [vmem:[%s234 + $0x61] sm:$0xff] %vm225, %v276
      %309 = vst.msk [vmem:[%s234 + $0x69] sm:$0xff] %vm225, %v277
      %310 = vst.msk [vmem:[%s234 + $0x79] sm:$0xff] %vm225, %v278
      %311 = vst.msk [vmem:[%s234 + $0x81] sm:$0xff] %vm225, %v279
      %312 = vst.msk [vmem:[%s234 + $0x91] sm:$0xff] %vm225, %v280
      %313 = vst.msk [vmem:[%s234 + $0x99] sm:$0xff] %vm225, %v281
      %314 = vst.msk [vmem:[%s234 + $0xa9] sm:$0xff] %vm225, %v282
      %315 = vst.msk [vmem:[%s234 + $0xb1] sm:$0xff] %vm225, %v283
      %316 = vst.msk [vmem:[%s234 + $0xc1] sm:$0xff] %vm225, %v284
      %317 = vst.msk [vmem:[%s234 + $0xc9] sm:$0xff] %vm225, %v285
      %318 = vst.msk [vmem:[%s234 + $0xd9] sm:$0xff] %vm225, %v286
      %319 = vst.msk [vmem:[%s234 + $0xe1] sm:$0xff] %vm225, %v287
      %320 = vst.msk [vmem:[%s234 + $0xf1] sm:$0xff] %vm225, %v288
      %321 = vst.msk [vmem:[%s234 + $0xf9] sm:$0xff] %vm225, %v289
      %322 = vst.msk [vmem:[%s234 + $0x109] sm:$0xff] %vm225, %v290
      %323 = vst.msk [vmem:[%s234 + $0x111] sm:$0xff] %vm225, %v291
      %324 = vst.msk [vmem:[%s234 + $0x121] sm:$0xff] %vm225, %v292
      %325 = vst.msk [vmem:[%s234 + $0x129] sm:$0xff] %vm225, %v293
      %326 = vst.msk [vmem:[%s234 + $0x139] sm:$0xff] %vm225, %v294
      %327 = vst.msk [vmem:[%s234 + $0x141] sm:$0xff] %vm225, %v295
      %328 = vst.msk [vmem:[%s234 + $0x151] sm:$0xff] %vm225, %v296
      %329 = vst.msk [vmem:[%s234 + $0x159] sm:$0xff] %vm225, %v297
      %330 = vst.msk [vmem:[%s234 + $0x169] sm:$0xff] %vm225, %v298
      %331 = vst.msk [vmem:[%s234 + $0x171] sm:$0xff] %vm225, %v299
      %v332 = vld [vmem:[#allocation2] sm:$0xff]
      %v333 = vld [vmem:[#allocation2 + $0x8] sm:$0xff]
      %v334 = vld [vmem:[#allocation2 + $0x18] sm:$0xff]
      %v335 = vld [vmem:[#allocation2 + $0x20] sm:$0xff]
      %v336 = vld [vmem:[#allocation2 + $0x30] sm:$0xff]
      %v337 = vld [vmem:[#allocation2 + $0x38] sm:$0xff]
      %v338 = vld [vmem:[#allocation2 + $0x48] sm:$0xff]
      %v339 = vld [vmem:[#allocation2 + $0x50] sm:$0xff]
      %v340 = vld [vmem:[#allocation2 + $0x60] sm:$0xff]
      %v341 = vld [vmem:[#allocation2 + $0x68] sm:$0xff]
      %v342 = vld [vmem:[#allocation2 + $0x78] sm:$0xff]
      %v343 = vld [vmem:[#allocation2 + $0x80] sm:$0xff]
      %v344 = vld [vmem:[#allocation2 + $0x90] sm:$0xff]
      %v345 = vld [vmem:[#allocation2 + $0x98] sm:$0xff]
      %v346 = vld [vmem:[#allocation2 + $0xa8] sm:$0xff]
      %v347 = vld [vmem:[#allocation2 + $0xb0] sm:$0xff]
      %v348 = vld [vmem:[#allocation2 + $0xc0] sm:$0xff]
      %v349 = vld [vmem:[#allocation2 + $0xc8] sm:$0xff]
      %v350 = vld [vmem:[#allocation2 + $0xd8] sm:$0xff]
      %v351 = vld [vmem:[#allocation2 + $0xe0] sm:$0xff]
      %v352 = vld [vmem:[#allocation2 + $0xf0] sm:$0xff]
      %v353 = vld [vmem:[#allocation2 + $0xf8] sm:$0xff]
      %v354 = vld [vmem:[#allocation2 + $0x108] sm:$0xff]
      %v355 = vld [vmem:[#allocation2 + $0x110] sm:$0xff]
      %v356 = vld [vmem:[#allocation2 + $0x120] sm:$0xff]
      %v357 = vld [vmem:[#allocation2 + $0x128] sm:$0xff]
      %v358 = vld [vmem:[#allocation2 + $0x138] sm:$0xff]
      %v359 = vld [vmem:[#allocation2 + $0x140] sm:$0xff]
      %v360 = vld [vmem:[#allocation2 + $0x150] sm:$0xff]
      %v361 = vld [vmem:[#allocation2 + $0x158] sm:$0xff]
      %v362 = vld [vmem:[#allocation2 + $0x168] sm:$0xff]
      %v363 = vld [vmem:[#allocation2 + $0x170] sm:$0xff]
      %364 = vst.msk [vmem:[#allocation3] sm:$0xff] %vm225, %v332
      %365 = vst.msk [vmem:[#allocation3 + $0x8] sm:$0xff] %vm225, %v333
      %366 = vst.msk [vmem:[#allocation3 + $0x10] sm:$0xff] %vm225, %v334
      %367 = vst.msk [vmem:[#allocation3 + $0x18] sm:$0xff] %vm225, %v335
      %368 = vst.msk [vmem:[#allocation3 + $0x20] sm:$0xff] %vm225, %v336
      %369 = vst.msk [vmem:[#allocation3 + $0x28] sm:$0xff] %vm225, %v337
      %370 = vst.msk [vmem:[#allocation3 + $0x30] sm:$0xff] %vm225, %v338
      %371 = vst.msk [vmem:[#allocation3 + $0x38] sm:$0xff] %vm225, %v339
      %372 = vst.msk [vmem:[#allocation3 + $0x40] sm:$0xff] %vm225, %v340
      %373 = vst.msk [vmem:[#allocation3 + $0x48] sm:$0xff] %vm225, %v341
      %374 = vst.msk [vmem:[#allocation3 + $0x50] sm:$0xff] %vm225, %v342
      %375 = vst.msk [vmem:[#allocation3 + $0x58] sm:$0xff] %vm225, %v343
      %376 = vst.msk [vmem:[#allocation3 + $0x60] sm:$0xff] %vm225, %v344
      %377 = vst.msk [vmem:[#allocation3 + $0x68] sm:$0xff] %vm225, %v345
      %378 = vst.msk [vmem:[#allocation3 + $0x70] sm:$0xff] %vm225, %v346
      %379 = vst.msk [vmem:[#allocation3 + $0x78] sm:$0xff] %vm225, %v347
      %380 = vst.msk [vmem:[#allocation3 + $0x80] sm:$0xff] %vm225, %v348
      %381 = vst.msk [vmem:[#allocation3 + $0x88] sm:$0xff] %vm225, %v349
      %382 = vst.msk [vmem:[#allocation3 + $0x90] sm:$0xff] %vm225, %v350
      %383 = vst.msk [vmem:[#allocation3 + $0x98] sm:$0xff] %vm225, %v351
      %384 = vst.msk [vmem:[#allocation3 + $0xa0] sm:$0xff] %vm225, %v352
      %385 = vst.msk [vmem:[#allocation3 + $0xa8] sm:$0xff] %vm225, %v353
      %386 = vst.msk [vmem:[#allocation3 + $0xb0] sm:$0xff] %vm225, %v354
      %387 = vst.msk [vmem:[#allocation3 + $0xb8] sm:$0xff] %vm225, %v355
      %388 = vst.msk [vmem:[#allocation3 + $0xc0] sm:$0xff] %vm225, %v356
      %389 = vst.msk [vmem:[#allocation3 + $0xc8] sm:$0xff] %vm225, %v357
      %390 = vst.msk [vmem:[#allocation3 + $0xd0] sm:$0xff] %vm225, %v358
      %391 = vst.msk [vmem:[#allocation3 + $0xd8] sm:$0xff] %vm225, %v359
      %392 = vst.msk [vmem:[#allocation3 + $0xe0] sm:$0xff] %vm225, %v360
      %393 = vst.msk [vmem:[#allocation3 + $0xe8] sm:$0xff] %vm225, %v361
      %394 = vst.msk [vmem:[#allocation3 + $0xf0] sm:$0xff] %vm225, %v362
      %395 = vst.msk [vmem:[#allocation3 + $0xf8] sm:$0xff] %vm225, %v363
      %v396 = vld [vmem:[#allocation2 + $0x1] sm:$0xff]
      %v397 = vld [vmem:[#allocation2 + $0x9] sm:$0xff]
      %v398 = vld [vmem:[#allocation2 + $0x19] sm:$0xff]
      %v399 = vld [vmem:[#allocation2 + $0x21] sm:$0xff]
      %v400 = vld [vmem:[#allocation2 + $0x31] sm:$0xff]
      %v401 = vld [vmem:[#allocation2 + $0x39] sm:$0xff]
      %v402 = vld [vmem:[#allocation2 + $0x49] sm:$0xff]
      %v403 = vld [vmem:[#allocation2 + $0x51] sm:$0xff]
      %v404 = vld [vmem:[#allocation2 + $0x61] sm:$0xff]
      %v405 = vld [vmem:[#allocation2 + $0x69] sm:$0xff]
      %v406 = vld [vmem:[#allocation2 + $0x79] sm:$0xff]
      %v407 = vld [vmem:[#allocation2 + $0x81] sm:$0xff]
      %v408 = vld [vmem:[#allocation2 + $0x91] sm:$0xff]
      %v409 = vld [vmem:[#allocation2 + $0x99] sm:$0xff]
      %v410 = vld [vmem:[#allocation2 + $0xa9] sm:$0xff]
      %v411 = vld [vmem:[#allocation2 + $0xb1] sm:$0xff]
      %v412 = vld [vmem:[#allocation2 + $0xc1] sm:$0xff]
      %v413 = vld [vmem:[#allocation2 + $0xc9] sm:$0xff]
      %v414 = vld [vmem:[#allocation2 + $0xd9] sm:$0xff]
      %v415 = vld [vmem:[#allocation2 + $0xe1] sm:$0xff]
      %v416 = vld [vmem:[#allocation2 + $0xf1] sm:$0xff]
      %v417 = vld [vmem:[#allocation2 + $0xf9] sm:$0xff]
      %v418 = vld [vmem:[#allocation2 + $0x109] sm:$0xff]
      %v419 = vld [vmem:[#allocation2 + $0x111] sm:$0xff]
      %v420 = vld [vmem:[#allocation2 + $0x121] sm:$0xff]
      %v421 = vld [vmem:[#allocation2 + $0x129] sm:$0xff]
      %v422 = vld [vmem:[#allocation2 + $0x139] sm:$0xff]
      %v423 = vld [vmem:[#allocation2 + $0x141] sm:$0xff]
      %v424 = vld [vmem:[#allocation2 + $0x151] sm:$0xff]
      %v425 = vld [vmem:[#allocation2 + $0x159] sm:$0xff]
      %v426 = vld [vmem:[#allocation2 + $0x169] sm:$0xff]
      %v427 = vld [vmem:[#allocation2 + $0x171] sm:$0xff]
      %460 = vrot.lane.b32.xlu0 %v396, 4
      %v461 = vpop.permute.xlu0 %460
      %462 = vrot.lane.b32.xlu0 %v397, 4
      %v463 = vpop.permute.xlu0 %462
      %464 = vrot.lane.b32.xlu0 %v398, 4
      %v465 = vpop.permute.xlu0 %464
      %466 = vrot.lane.b32.xlu0 %v399, 4
      %v467 = vpop.permute.xlu0 %466
      %468 = vrot.lane.b32.xlu0 %v400, 4
      %v469 = vpop.permute.xlu0 %468
      %470 = vrot.lane.b32.xlu0 %v401, 4
      %v471 = vpop.permute.xlu0 %470
      %472 = vrot.lane.b32.xlu0 %v402, 4
      %v473 = vpop.permute.xlu0 %472
      %474 = vrot.lane.b32.xlu0 %v403, 4
      %v475 = vpop.permute.xlu0 %474
      %476 = vrot.lane.b32.xlu0 %v404, 4
      %v477 = vpop.permute.xlu0 %476
      %478 = vrot.lane.b32.xlu0 %v405, 4
      %v479 = vpop.permute.xlu0 %478
      %480 = vrot.lane.b32.xlu0 %v406, 4
      %v481 = vpop.permute.xlu0 %480
      %482 = vrot.lane.b32.xlu0 %v407, 4
      %v483 = vpop.permute.xlu0 %482
      %484 = vrot.lane.b32.xlu0 %v408, 4
      %v485 = vpop.permute.xlu0 %484
      %486 = vrot.lane.b32.xlu0 %v409, 4
      %v487 = vpop.permute.xlu0 %486
      %488 = vrot.lane.b32.xlu0 %v410, 4
      %v489 = vpop.permute.xlu0 %488
      %490 = vrot.lane.b32.xlu0 %v411, 4
      %v491 = vpop.permute.xlu0 %490
      %492 = vrot.lane.b32.xlu0 %v412, 4
      %v493 = vpop.permute.xlu0 %492
      %494 = vrot.lane.b32.xlu0 %v413, 4
      %v495 = vpop.permute.xlu0 %494
      %496 = vrot.lane.b32.xlu0 %v414, 4
      %v497 = vpop.permute.xlu0 %496
      %498 = vrot.lane.b32.xlu0 %v415, 4
      %v499 = vpop.permute.xlu0 %498
      %500 = vrot.lane.b32.xlu0 %v416, 4
      %v501 = vpop.permute.xlu0 %500
      %502 = vrot.lane.b32.xlu0 %v417, 4
      %v503 = vpop.permute.xlu0 %502
      %504 = vrot.lane.b32.xlu0 %v418, 4
      %v505 = vpop.permute.xlu0 %504
      %506 = vrot.lane.b32.xlu0 %v419, 4
      %v507 = vpop.permute.xlu0 %506
      %508 = vrot.lane.b32.xlu0 %v420, 4
      %v509 = vpop.permute.xlu0 %508
      %510 = vrot.lane.b32.xlu0 %v421, 4
      %v511 = vpop.permute.xlu0 %510
      %512 = vrot.lane.b32.xlu0 %v422, 4
      %v513 = vpop.permute.xlu0 %512
      %514 = vrot.lane.b32.xlu0 %v423, 4
      %v515 = vpop.permute.xlu0 %514
      %516 = vrot.lane.b32.xlu0 %v424, 4
      %v517 = vpop.permute.xlu0 %516
      %518 = vrot.lane.b32.xlu0 %v425, 4
      %v519 = vpop.permute.xlu0 %518
      %520 = vrot.lane.b32.xlu0 %v426, 4
      %v521 = vpop.permute.xlu0 %520
      %522 = vrot.lane.b32.xlu0 %v427, 4
      %v523 = vpop.permute.xlu0 %522
      %vm556 = vcmask 64544
      %557 = vst.msk [vmem:[#allocation3] sm:$0xff] %vm556, %v461
      %558 = vst.msk [vmem:[#allocation3 + $0x8] sm:$0xff] %vm556, %v463
      %559 = vst.msk [vmem:[#allocation3 + $0x10] sm:$0xff] %vm556, %v465
      %560 = vst.msk [vmem:[#allocation3 + $0x18] sm:$0xff] %vm556, %v467
      %561 = vst.msk [vmem:[#allocation3 + $0x20] sm:$0xff] %vm556, %v469
      %562 = vst.msk [vmem:[#allocation3 + $0x28] sm:$0xff] %vm556, %v471
      %563 = vst.msk [vmem:[#allocation3 + $0x30] sm:$0xff] %vm556, %v473
      %564 = vst.msk [vmem:[#allocation3 + $0x38] sm:$0xff] %vm556, %v475
      %565 = vst.msk [vmem:[#allocation3 + $0x40] sm:$0xff] %vm556, %v477
      %566 = vst.msk [vmem:[#allocation3 + $0x48] sm:$0xff] %vm556, %v479
      %567 = vst.msk [vmem:[#allocation3 + $0x50] sm:$0xff] %vm556, %v481
      %568 = vst.msk [vmem:[#allocation3 + $0x58] sm:$0xff] %vm556, %v483
      %569 = vst.msk [vmem:[#allocation3 + $0x60] sm:$0xff] %vm556, %v485
      %570 = vst.msk [vmem:[#allocation3 + $0x68] sm:$0xff] %vm556, %v487
      %571 = vst.msk [vmem:[#allocation3 + $0x70] sm:$0xff] %vm556, %v489
      %572 = vst.msk [vmem:[#allocation3 + $0x78] sm:$0xff] %vm556, %v491
      %573 = vst.msk [vmem:[#allocation3 + $0x80] sm:$0xff] %vm556, %v493
      %574 = vst.msk [vmem:[#allocation3 + $0x88] sm:$0xff] %vm556, %v495
      %575 = vst.msk [vmem:[#allocation3 + $0x90] sm:$0xff] %vm556, %v497
      %576 = vst.msk [vmem:[#allocation3 + $0x98] sm:$0xff] %vm556, %v499
      %577 = vst.msk [vmem:[#allocation3 + $0xa0] sm:$0xff] %vm556, %v501
      %578 = vst.msk [vmem:[#allocation3 + $0xa8] sm:$0xff] %vm556, %v503
      %579 = vst.msk [vmem:[#allocation3 + $0xb0] sm:$0xff] %vm556, %v505
      %580 = vst.msk [vmem:[#allocation3 + $0xb8] sm:$0xff] %vm556, %v507
      %581 = vst.msk [vmem:[#allocation3 + $0xc0] sm:$0xff] %vm556, %v509
      %582 = vst.msk [vmem:[#allocation3 + $0xc8] sm:$0xff] %vm556, %v511
      %583 = vst.msk [vmem:[#allocation3 + $0xd0] sm:$0xff] %vm556, %v513
      %584 = vst.msk [vmem:[#allocation3 + $0xd8] sm:$0xff] %vm556, %v515
      %585 = vst.msk [vmem:[#allocation3 + $0xe0] sm:$0xff] %vm556, %v517
      %586 = vst.msk [vmem:[#allocation3 + $0xe8] sm:$0xff] %vm556, %v519
      %587 = vst.msk [vmem:[#allocation3 + $0xf0] sm:$0xff] %vm556, %v521
      %588 = vst.msk [vmem:[#allocation3 + $0xf8] sm:$0xff] %vm556, %v523
      %v589 = vld [vmem:[#allocation2 + $0x2] sm:$0xff]
      %v590 = vld [vmem:[#allocation2 + $0xa] sm:$0xff]
      %v591 = vld [vmem:[#allocation2 + $0x1a] sm:$0xff]
      %v592 = vld [vmem:[#allocation2 + $0x22] sm:$0xff]
      %v593 = vld [vmem:[#allocation2 + $0x32] sm:$0xff]
      %v594 = vld [vmem:[#allocation2 + $0x3a] sm:$0xff]
      %v595 = vld [vmem:[#allocation2 + $0x4a] sm:$0xff]
      %v596 = vld [vmem:[#allocation2 + $0x52] sm:$0xff]
      %v597 = vld [vmem:[#allocation2 + $0x62] sm:$0xff]
      %v598 = vld [vmem:[#allocation2 + $0x6a] sm:$0xff]
      %v599 = vld [vmem:[#allocation2 + $0x7a] sm:$0xff]
      %v600 = vld [vmem:[#allocation2 + $0x82] sm:$0xff]
      %v601 = vld [vmem:[#allocation2 + $0x92] sm:$0xff]
      %v602 = vld [vmem:[#allocation2 + $0x9a] sm:$0xff]
      %v603 = vld [vmem:[#allocation2 + $0xaa] sm:$0xff]
      %v604 = vld [vmem:[#allocation2 + $0xb2] sm:$0xff]
      %v605 = vld [vmem:[#allocation2 + $0xc2] sm:$0xff]
      %v606 = vld [vmem:[#allocation2 + $0xca] sm:$0xff]
      %v607 = vld [vmem:[#allocation2 + $0xda] sm:$0xff]
      %v608 = vld [vmem:[#allocation2 + $0xe2] sm:$0xff]
      %v609 = vld [vmem:[#allocation2 + $0xf2] sm:$0xff]
      %v610 = vld [vmem:[#allocation2 + $0xfa] sm:$0xff]
      %v611 = vld [vmem:[#allocation2 + $0x10a] sm:$0xff]
      %v612 = vld [vmem:[#allocation2 + $0x112] sm:$0xff]
      %v613 = vld [vmem:[#allocation2 + $0x122] sm:$0xff]
      %v614 = vld [vmem:[#allocation2 + $0x12a] sm:$0xff]
      %v615 = vld [vmem:[#allocation2 + $0x13a] sm:$0xff]
      %v616 = vld [vmem:[#allocation2 + $0x142] sm:$0xff]
      %v617 = vld [vmem:[#allocation2 + $0x152] sm:$0xff]
      %v618 = vld [vmem:[#allocation2 + $0x15a] sm:$0xff]
      %v619 = vld [vmem:[#allocation2 + $0x16a] sm:$0xff]
      %v620 = vld [vmem:[#allocation2 + $0x172] sm:$0xff]
      %653 = vrot.lane.b32.xlu0 %v589, 8
      %v654 = vpop.permute.xlu0 %653
      %655 = vrot.lane.b32.xlu0 %v590, 8
      %v656 = vpop.permute.xlu0 %655
      %657 = vrot.lane.b32.xlu0 %v591, 8
      %v658 = vpop.permute.xlu0 %657
      %659 = vrot.lane.b32.xlu0 %v592, 8
      %v660 = vpop.permute.xlu0 %659
      %661 = vrot.lane.b32.xlu0 %v593, 8
      %v662 = vpop.permute.xlu0 %661
      %663 = vrot.lane.b32.xlu0 %v594, 8
      %v664 = vpop.permute.xlu0 %663
      %665 = vrot.lane.b32.xlu0 %v595, 8
      %v666 = vpop.permute.xlu0 %665
      %667 = vrot.lane.b32.xlu0 %v596, 8
      %v668 = vpop.permute.xlu0 %667
      %669 = vrot.lane.b32.xlu0 %v597, 8
      %v670 = vpop.permute.xlu0 %669
      %671 = vrot.lane.b32.xlu0 %v598, 8
      %v672 = vpop.permute.xlu0 %671
      %673 = vrot.lane.b32.xlu0 %v599, 8
      %v674 = vpop.permute.xlu0 %673
      %675 = vrot.lane.b32.xlu0 %v600, 8
      %v676 = vpop.permute.xlu0 %675
      %677 = vrot.lane.b32.xlu0 %v601, 8
      %v678 = vpop.permute.xlu0 %677
      %679 = vrot.lane.b32.xlu0 %v602, 8
      %v680 = vpop.permute.xlu0 %679
      %681 = vrot.lane.b32.xlu0 %v603, 8
      %v682 = vpop.permute.xlu0 %681
      %683 = vrot.lane.b32.xlu0 %v604, 8
      %v684 = vpop.permute.xlu0 %683
      %685 = vrot.lane.b32.xlu0 %v605, 8
      %v686 = vpop.permute.xlu0 %685
      %687 = vrot.lane.b32.xlu0 %v606, 8
      %v688 = vpop.permute.xlu0 %687
      %689 = vrot.lane.b32.xlu0 %v607, 8
      %v690 = vpop.permute.xlu0 %689
      %691 = vrot.lane.b32.xlu0 %v608, 8
      %v692 = vpop.permute.xlu0 %691
      %693 = vrot.lane.b32.xlu0 %v609, 8
      %v694 = vpop.permute.xlu0 %693
      %695 = vrot.lane.b32.xlu0 %v610, 8
      %v696 = vpop.permute.xlu0 %695
      %697 = vrot.lane.b32.xlu0 %v611, 8
      %v698 = vpop.permute.xlu0 %697
      %699 = vrot.lane.b32.xlu0 %v612, 8
      %v700 = vpop.permute.xlu0 %699
      %701 = vrot.lane.b32.xlu0 %v613, 8
      %v702 = vpop.permute.xlu0 %701
      %703 = vrot.lane.b32.xlu0 %v614, 8
      %v704 = vpop.permute.xlu0 %703
      %705 = vrot.lane.b32.xlu0 %v615, 8
      %v706 = vpop.permute.xlu0 %705
      %707 = vrot.lane.b32.xlu0 %v616, 8
      %v708 = vpop.permute.xlu0 %707
      %709 = vrot.lane.b32.xlu0 %v617, 8
      %v710 = vpop.permute.xlu0 %709
      %711 = vrot.lane.b32.xlu0 %v618, 8
      %v712 = vpop.permute.xlu0 %711
      %713 = vrot.lane.b32.xlu0 %v619, 8
      %v714 = vpop.permute.xlu0 %713
      %715 = vrot.lane.b32.xlu0 %v620, 8
      %v716 = vpop.permute.xlu0 %715
      %vm749 = vcmask 97344
      %750 = vst.msk [vmem:[#allocation3] sm:$0xff] %vm749, %v654
      %751 = vst.msk [vmem:[#allocation3 + $0x8] sm:$0xff] %vm749, %v656
      %752 = vst.msk [vmem:[#allocation3 + $0x10] sm:$0xff] %vm749, %v658
      %753 = vst.msk [vmem:[#allocation3 + $0x18] sm:$0xff] %vm749, %v660
      %754 = vst.msk [vmem:[#allocation3 + $0x20] sm:$0xff] %vm749, %v662
      %755 = vst.msk [vmem:[#allocation3 + $0x28] sm:$0xff] %vm749, %v664
      %756 = vst.msk [vmem:[#allocation3 + $0x30] sm:$0xff] %vm749, %v666
      %757 = vst.msk [vmem:[#allocation3 + $0x38] sm:$0xff] %vm749, %v668
      %758 = vst.msk [vmem:[#allocation3 + $0x40] sm:$0xff] %vm749, %v670
      %759 = vst.msk [vmem:[#allocation3 + $0x48] sm:$0xff] %vm749, %v672
      %760 = vst.msk [vmem:[#allocation3 + $0x50] sm:$0xff] %vm749, %v674
      %761 = vst.msk [vmem:[#allocation3 + $0x58] sm:$0xff] %vm749, %v676
      %762 = vst.msk [vmem:[#allocation3 + $0x60] sm:$0xff] %vm749, %v678
      %763 = vst.msk [vmem:[#allocation3 + $0x68] sm:$0xff] %vm749, %v680
      %764 = vst.msk [vmem:[#allocation3 + $0x70] sm:$0xff] %vm749, %v682
      %765 = vst.msk [vmem:[#allocation3 + $0x78] sm:$0xff] %vm749, %v684
      %766 = vst.msk [vmem:[#allocation3 + $0x80] sm:$0xff] %vm749, %v686
      %767 = vst.msk [vmem:[#allocation3 + $0x88] sm:$0xff] %vm749, %v688
      %768 = vst.msk [vmem:[#allocation3 + $0x90] sm:$0xff] %vm749, %v690
      %769 = vst.msk [vmem:[#allocation3 + $0x98] sm:$0xff] %vm749, %v692
      %770 = vst.msk [vmem:[#allocation3 + $0xa0] sm:$0xff] %vm749, %v694
      %771 = vst.msk [vmem:[#allocation3 + $0xa8] sm:$0xff] %vm749, %v696
      %772 = vst.msk [vmem:[#allocation3 + $0xb0] sm:$0xff] %vm749, %v698
      %773 = vst.msk [vmem:[#allocation3 + $0xb8] sm:$0xff] %vm749, %v700
      %774 = vst.msk [vmem:[#allocation3 + $0xc0] sm:$0xff] %vm749, %v702
      %775 = vst.msk [vmem:[#allocation3 + $0xc8] sm:$0xff] %vm749, %v704
      %776 = vst.msk [vmem:[#allocation3 + $0xd0] sm:$0xff] %vm749, %v706
      %777 = vst.msk [vmem:[#allocation3 + $0xd8] sm:$0xff] %vm749, %v708
      %778 = vst.msk [vmem:[#allocation3 + $0xe0] sm:$0xff] %vm749, %v710
      %779 = vst.msk [vmem:[#allocation3 + $0xe8] sm:$0xff] %vm749, %v712
      %780 = vst.msk [vmem:[#allocation3 + $0xf0] sm:$0xff] %vm749, %v714
      %781 = vst.msk [vmem:[#allocation3 + $0xf8] sm:$0xff] %vm749, %v716
      %v782 = vld [vmem:[%s234] sm:$0xff]
      %v783 = vld [vmem:[%s234 + $0x8] sm:$0xff]
      %v784 = vld [vmem:[%s234 + $0x18] sm:$0xff]
      %v785 = vld [vmem:[%s234 + $0x20] sm:$0xff]
      %v786 = vld [vmem:[%s234 + $0x30] sm:$0xff]
      %v787 = vld [vmem:[%s234 + $0x38] sm:$0xff]
      %v788 = vld [vmem:[%s234 + $0x48] sm:$0xff]
      %v789 = vld [vmem:[%s234 + $0x50] sm:$0xff]
      %v790 = vld [vmem:[%s234 + $0x60] sm:$0xff]
      %v791 = vld [vmem:[%s234 + $0x68] sm:$0xff]
      %v792 = vld [vmem:[%s234 + $0x78] sm:$0xff]
      %v793 = vld [vmem:[%s234 + $0x80] sm:$0xff]
      %v794 = vld [vmem:[%s234 + $0x90] sm:$0xff]
      %v795 = vld [vmem:[%s234 + $0x98] sm:$0xff]
      %v796 = vld [vmem:[%s234 + $0xa8] sm:$0xff]
      %v797 = vld [vmem:[%s234 + $0xb0] sm:$0xff]
      %v798 = vld [vmem:[%s234 + $0xc0] sm:$0xff]
      %v799 = vld [vmem:[%s234 + $0xc8] sm:$0xff]
      %v800 = vld [vmem:[%s234 + $0xd8] sm:$0xff]
      %v801 = vld [vmem:[%s234 + $0xe0] sm:$0xff]
      %v802 = vld [vmem:[%s234 + $0xf0] sm:$0xff]
      %v803 = vld [vmem:[%s234 + $0xf8] sm:$0xff]
      %v804 = vld [vmem:[%s234 + $0x108] sm:$0xff]
      %v805 = vld [vmem:[%s234 + $0x110] sm:$0xff]
      %v806 = vld [vmem:[%s234 + $0x120] sm:$0xff]
      %v807 = vld [vmem:[%s234 + $0x128] sm:$0xff]
      %v808 = vld [vmem:[%s234 + $0x138] sm:$0xff]
      %v809 = vld [vmem:[%s234 + $0x140] sm:$0xff]
      %v810 = vld [vmem:[%s234 + $0x150] sm:$0xff]
      %v811 = vld [vmem:[%s234 + $0x158] sm:$0xff]
      %v812 = vld [vmem:[%s234 + $0x168] sm:$0xff]
      %v813 = vld [vmem:[%s234 + $0x170] sm:$0xff]
      %846 = vrot.lane.b32.xlu0 %v782, 12
      %v847 = vpop.permute.xlu0 %846
      %848 = vrot.lane.b32.xlu0 %v783, 12
      %v849 = vpop.permute.xlu0 %848
      %850 = vrot.lane.b32.xlu0 %v784, 12
      %v851 = vpop.permute.xlu0 %850
      %852 = vrot.lane.b32.xlu0 %v785, 12
      %v853 = vpop.permute.xlu0 %852
      %854 = vrot.lane.b32.xlu0 %v786, 12
      %v855 = vpop.permute.xlu0 %854
      %856 = vrot.lane.b32.xlu0 %v787, 12
      %v857 = vpop.permute.xlu0 %856
      %858 = vrot.lane.b32.xlu0 %v788, 12
      %v859 = vpop.permute.xlu0 %858
      %860 = vrot.lane.b32.xlu0 %v789, 12
      %v861 = vpop.permute.xlu0 %860
      %862 = vrot.lane.b32.xlu0 %v790, 12
      %v863 = vpop.permute.xlu0 %862
      %864 = vrot.lane.b32.xlu0 %v791, 12
      %v865 = vpop.permute.xlu0 %864
      %866 = vrot.lane.b32.xlu0 %v792, 12
      %v867 = vpop.permute.xlu0 %866
      %868 = vrot.lane.b32.xlu0 %v793, 12
      %v869 = vpop.permute.xlu0 %868
      %870 = vrot.lane.b32.xlu0 %v794, 12
      %v871 = vpop.permute.xlu0 %870
      %872 = vrot.lane.b32.xlu0 %v795, 12
      %v873 = vpop.permute.xlu0 %872
      %874 = vrot.lane.b32.xlu0 %v796, 12
      %v875 = vpop.permute.xlu0 %874
      %876 = vrot.lane.b32.xlu0 %v797, 12
      %v877 = vpop.permute.xlu0 %876
      %878 = vrot.lane.b32.xlu0 %v798, 12
      %v879 = vpop.permute.xlu0 %878
      %880 = vrot.lane.b32.xlu0 %v799, 12
      %v881 = vpop.permute.xlu0 %880
      %882 = vrot.lane.b32.xlu0 %v800, 12
      %v883 = vpop.permute.xlu0 %882
      %884 = vrot.lane.b32.xlu0 %v801, 12
      %v885 = vpop.permute.xlu0 %884
      %886 = vrot.lane.b32.xlu0 %v802, 12
      %v887 = vpop.permute.xlu0 %886
      %888 = vrot.lane.b32.xlu0 %v803, 12
      %v889 = vpop.permute.xlu0 %888
      %890 = vrot.lane.b32.xlu0 %v804, 12
      %v891 = vpop.permute.xlu0 %890
      %892 = vrot.lane.b32.xlu0 %v805, 12
      %v893 = vpop.permute.xlu0 %892
      %894 = vrot.lane.b32.xlu0 %v806, 12
      %v895 = vpop.permute.xlu0 %894
      %896 = vrot.lane.b32.xlu0 %v807, 12
      %v897 = vpop.permute.xlu0 %896
      %898 = vrot.lane.b32.xlu0 %v808, 12
      %v899 = vpop.permute.xlu0 %898
      %900 = vrot.lane.b32.xlu0 %v809, 12
      %v901 = vpop.permute.xlu0 %900
      %902 = vrot.lane.b32.xlu0 %v810, 12
      %v903 = vpop.permute.xlu0 %902
      %904 = vrot.lane.b32.xlu0 %v811, 12
      %v905 = vpop.permute.xlu0 %904
      %906 = vrot.lane.b32.xlu0 %v812, 12
      %v907 = vpop.permute.xlu0 %906
      %908 = vrot.lane.b32.xlu0 %v813, 12
      %v909 = vpop.permute.xlu0 %908
      %vm942 = vcmask 130144
      %943 = vst.msk [vmem:[#allocation3] sm:$0xff] %vm942, %v847
      %944 = vst.msk [vmem:[#allocation3 + $0x8] sm:$0xff] %vm942, %v849
      %945 = vst.msk [vmem:[#allocation3 + $0x10] sm:$0xff] %vm942, %v851
      %946 = vst.msk [vmem:[#allocation3 + $0x18] sm:$0xff] %vm942, %v853
      %947 = vst.msk [vmem:[#allocation3 + $0x20] sm:$0xff] %vm942, %v855
      %948 = vst.msk [vmem:[#allocation3 + $0x28] sm:$0xff] %vm942, %v857
      %949 = vst.msk [vmem:[#allocation3 + $0x30] sm:$0xff] %vm942, %v859
      %950 = vst.msk [vmem:[#allocation3 + $0x38] sm:$0xff] %vm942, %v861
      %951 = vst.msk [vmem:[#allocation3 + $0x40] sm:$0xff] %vm942, %v863
      %952 = vst.msk [vmem:[#allocation3 + $0x48] sm:$0xff] %vm942, %v865
      %953 = vst.msk [vmem:[#allocation3 + $0x50] sm:$0xff] %vm942, %v867
      %954 = vst.msk [vmem:[#allocation3 + $0x58] sm:$0xff] %vm942, %v869
      %955 = vst.msk [vmem:[#allocation3 + $0x60] sm:$0xff] %vm942, %v871
      %956 = vst.msk [vmem:[#allocation3 + $0x68] sm:$0xff] %vm942, %v873
      %957 = vst.msk [vmem:[#allocation3 + $0x70] sm:$0xff] %vm942, %v875
      %958 = vst.msk [vmem:[#allocation3 + $0x78] sm:$0xff] %vm942, %v877
      %959 = vst.msk [vmem:[#allocation3 + $0x80] sm:$0xff] %vm942, %v879
      %960 = vst.msk [vmem:[#allocation3 + $0x88] sm:$0xff] %vm942, %v881
      %961 = vst.msk [vmem:[#allocation3 + $0x90] sm:$0xff] %vm942, %v883
      %962 = vst.msk [vmem:[#allocation3 + $0x98] sm:$0xff] %vm942, %v885
      %963 = vst.msk [vmem:[#allocation3 + $0xa0] sm:$0xff] %vm942, %v887
      %964 = vst.msk [vmem:[#allocation3 + $0xa8] sm:$0xff] %vm942, %v889
      %965 = vst.msk [vmem:[#allocation3 + $0xb0] sm:$0xff] %vm942, %v891
      %966 = vst.msk [vmem:[#allocation3 + $0xb8] sm:$0xff] %vm942, %v893
      %967 = vst.msk [vmem:[#allocation3 + $0xc0] sm:$0xff] %vm942, %v895
      %968 = vst.msk [vmem:[#allocation3 + $0xc8] sm:$0xff] %vm942, %v897
      %969 = vst.msk [vmem:[#allocation3 + $0xd0] sm:$0xff] %vm942, %v899
      %970 = vst.msk [vmem:[#allocation3 + $0xd8] sm:$0xff] %vm942, %v901
      %971 = vst.msk [vmem:[#allocation3 + $0xe0] sm:$0xff] %vm942, %v903
      %972 = vst.msk [vmem:[#allocation3 + $0xe8] sm:$0xff] %vm942, %v905
      %973 = vst.msk [vmem:[#allocation3 + $0xf0] sm:$0xff] %vm942, %v907
      %974 = vst.msk [vmem:[#allocation3 + $0xf8] sm:$0xff] %vm942, %v909
      %v975 = vld [vmem:[%s234 + $0x1] sm:$0xff]
      %v976 = vld [vmem:[%s234 + $0x9] sm:$0xff]
      %v977 = vld [vmem:[%s234 + $0x19] sm:$0xff]
      %v978 = vld [vmem:[%s234 + $0x21] sm:$0xff]
      %v979 = vld [vmem:[%s234 + $0x31] sm:$0xff]
      %v980 = vld [vmem:[%s234 + $0x39] sm:$0xff]
      %v981 = vld [vmem:[%s234 + $0x49] sm:$0xff]
      %v982 = vld [vmem:[%s234 + $0x51] sm:$0xff]
      %v983 = vld [vmem:[%s234 + $0x61] sm:$0xff]
      %v984 = vld [vmem:[%s234 + $0x69] sm:$0xff]
      %v985 = vld [vmem:[%s234 + $0x79] sm:$0xff]
      %v986 = vld [vmem:[%s234 + $0x81] sm:$0xff]
      %v987 = vld [vmem:[%s234 + $0x91] sm:$0xff]
      %v988 = vld [vmem:[%s234 + $0x99] sm:$0xff]
      %v989 = vld [vmem:[%s234 + $0xa9] sm:$0xff]
      %v990 = vld [vmem:[%s234 + $0xb1] sm:$0xff]
      %v991 = vld [vmem:[%s234 + $0xc1] sm:$0xff]
      %v992 = vld [vmem:[%s234 + $0xc9] sm:$0xff]
      %v993 = vld [vmem:[%s234 + $0xd9] sm:$0xff]
      %v994 = vld [vmem:[%s234 + $0xe1] sm:$0xff]
      %v995 = vld [vmem:[%s234 + $0xf1] sm:$0xff]
      %v996 = vld [vmem:[%s234 + $0xf9] sm:$0xff]
      %v997 = vld [vmem:[%s234 + $0x109] sm:$0xff]
      %v998 = vld [vmem:[%s234 + $0x111] sm:$0xff]
      %v999 = vld [vmem:[%s234 + $0x121] sm:$0xff]
      %v1000 = vld [vmem:[%s234 + $0x129] sm:$0xff]
      %v1001 = vld [vmem:[%s234 + $0x139] sm:$0xff]
      %v1002 = vld [vmem:[%s234 + $0x141] sm:$0xff]
      %v1003 = vld [vmem:[%s234 + $0x151] sm:$0xff]
      %v1004 = vld [vmem:[%s234 + $0x159] sm:$0xff]
      %v1005 = vld [vmem:[%s234 + $0x169] sm:$0xff]
      %v1006 = vld [vmem:[%s234 + $0x171] sm:$0xff]
      %1039 = vrot.lane.b32.xlu0 %v975, 16
      %v1040 = vpop.permute.xlu0 %1039
      %1041 = vrot.lane.b32.xlu0 %v976, 16
      %v1042 = vpop.permute.xlu0 %1041
      %1043 = vrot.lane.b32.xlu0 %v977, 16
      %v1044 = vpop.permute.xlu0 %1043
      %1045 = vrot.lane.b32.xlu0 %v978, 16
      %v1046 = vpop.permute.xlu0 %1045
      %1047 = vrot.lane.b32.xlu0 %v979, 16
      %v1048 = vpop.permute.xlu0 %1047
      %1049 = vrot.lane.b32.xlu0 %v980, 16
      %v1050 = vpop.permute.xlu0 %1049
      %1051 = vrot.lane.b32.xlu0 %v981, 16
      %v1052 = vpop.permute.xlu0 %1051
      %1053 = vrot.lane.b32.xlu0 %v982, 16
      %v1054 = vpop.permute.xlu0 %1053
      %1055 = vrot.lane.b32.xlu0 %v983, 16
      %v1056 = vpop.permute.xlu0 %1055
      %1057 = vrot.lane.b32.xlu0 %v984, 16
      %v1058 = vpop.permute.xlu0 %1057
      %1059 = vrot.lane.b32.xlu0 %v985, 16
      %v1060 = vpop.permute.xlu0 %1059
      %1061 = vrot.lane.b32.xlu0 %v986, 16
      %v1062 = vpop.permute.xlu0 %1061
      %1063 = vrot.lane.b32.xlu0 %v987, 16
      %v1064 = vpop.permute.xlu0 %1063
      %1065 = vrot.lane.b32.xlu0 %v988, 16
      %v1066 = vpop.permute.xlu0 %1065
      %1067 = vrot.lane.b32.xlu0 %v989, 16
      %v1068 = vpop.permute.xlu0 %1067
      %1069 = vrot.lane.b32.xlu0 %v990, 16
      %v1070 = vpop.permute.xlu0 %1069
      %1071 = vrot.lane.b32.xlu0 %v991, 16
      %v1072 = vpop.permute.xlu0 %1071
      %1073 = vrot.lane.b32.xlu0 %v992, 16
      %v1074 = vpop.permute.xlu0 %1073
      %1075 = vrot.lane.b32.xlu0 %v993, 16
      %v1076 = vpop.permute.xlu0 %1075
      %1077 = vrot.lane.b32.xlu0 %v994, 16
      %v1078 = vpop.permute.xlu0 %1077
      %1079 = vrot.lane.b32.xlu0 %v995, 16
      %v1080 = vpop.permute.xlu0 %1079
      %1081 = vrot.lane.b32.xlu0 %v996, 16
      %v1082 = vpop.permute.xlu0 %1081
      %1083 = vrot.lane.b32.xlu0 %v997, 16
      %v1084 = vpop.permute.xlu0 %1083
      %1085 = vrot.lane.b32.xlu0 %v998, 16
      %v1086 = vpop.permute.xlu0 %1085
      %1087 = vrot.lane.b32.xlu0 %v999, 16
      %v1088 = vpop.permute.xlu0 %1087
      %1089 = vrot.lane.b32.xlu0 %v1000, 16
      %v1090 = vpop.permute.xlu0 %1089
      %1091 = vrot.lane.b32.xlu0 %v1001, 16
      %v1092 = vpop.permute.xlu0 %1091
      %1093 = vrot.lane.b32.xlu0 %v1002, 16
      %v1094 = vpop.permute.xlu0 %1093
      %1095 = vrot.lane.b32.xlu0 %v1003, 16
      %v1096 = vpop.permute.xlu0 %1095
      %1097 = vrot.lane.b32.xlu0 %v1004, 16
      %v1098 = vpop.permute.xlu0 %1097
      %1099 = vrot.lane.b32.xlu0 %v1005, 16
      %v1100 = vpop.permute.xlu0 %1099
      %1101 = vrot.lane.b32.xlu0 %v1006, 16
      %v1102 = vpop.permute.xlu0 %1101
      %vm1135 = vcmask 162944
      %1136 = vst.msk [vmem:[#allocation3] sm:$0xff] %vm1135, %v1040
      %1137 = vst.msk [vmem:[#allocation3 + $0x8] sm:$0xff] %vm1135, %v1042
      %1138 = vst.msk [vmem:[#allocation3 + $0x10] sm:$0xff] %vm1135, %v1044
      %1139 = vst.msk [vmem:[#allocation3 + $0x18] sm:$0xff] %vm1135, %v1046
      %1140 = vst.msk [vmem:[#allocation3 + $0x20] sm:$0xff] %vm1135, %v1048
      %1141 = vst.msk [vmem:[#allocation3 + $0x28] sm:$0xff] %vm1135, %v1050
      %1142 = vst.msk [vmem:[#allocation3 + $0x30] sm:$0xff] %vm1135, %v1052
      %1143 = vst.msk [vmem:[#allocation3 + $0x38] sm:$0xff] %vm1135, %v1054
      %1144 = vst.msk [vmem:[#allocation3 + $0x40] sm:$0xff] %vm1135, %v1056
      %1145 = vst.msk [vmem:[#allocation3 + $0x48] sm:$0xff] %vm1135, %v1058
      %1146 = vst.msk [vmem:[#allocation3 + $0x50] sm:$0xff] %vm1135, %v1060
      %1147 = vst.msk [vmem:[#allocation3 + $0x58] sm:$0xff] %vm1135, %v1062
      %1148 = vst.msk [vmem:[#allocation3 + $0x60] sm:$0xff] %vm1135, %v1064
      %1149 = vst.msk [vmem:[#allocation3 + $0x68] sm:$0xff] %vm1135, %v1066
      %1150 = vst.msk [vmem:[#allocation3 + $0x70] sm:$0xff] %vm1135, %v1068
      %1151 = vst.msk [vmem:[#allocation3 + $0x78] sm:$0xff] %vm1135, %v1070
      %1152 = vst.msk [vmem:[#allocation3 + $0x80] sm:$0xff] %vm1135, %v1072
      %1153 = vst.msk [vmem:[#allocation3 + $0x88] sm:$0xff] %vm1135, %v1074
      %1154 = vst.msk [vmem:[#allocation3 + $0x90] sm:$0xff] %vm1135, %v1076
      %1155 = vst.msk [vmem:[#allocation3 + $0x98] sm:$0xff] %vm1135, %v1078
      %1156 = vst.msk [vmem:[#allocation3 + $0xa0] sm:$0xff] %vm1135, %v1080
      %1157 = vst.msk [vmem:[#allocation3 + $0xa8] sm:$0xff] %vm1135, %v1082
      %1158 = vst.msk [vmem:[#allocation3 + $0xb0] sm:$0xff] %vm1135, %v1084
      %1159 = vst.msk [vmem:[#allocation3 + $0xb8] sm:$0xff] %vm1135, %v1086
      %1160 = vst.msk [vmem:[#allocation3 + $0xc0] sm:$0xff] %vm1135, %v1088
      %1161 = vst.msk [vmem:[#allocation3 + $0xc8] sm:$0xff] %vm1135, %v1090
      %1162 = vst.msk [vmem:[#allocation3 + $0xd0] sm:$0xff] %vm1135, %v1092
      %1163 = vst.msk [vmem:[#allocation3 + $0xd8] sm:$0xff] %vm1135, %v1094
      %1164 = vst.msk [vmem:[#allocation3 + $0xe0] sm:$0xff] %vm1135, %v1096
      %1165 = vst.msk [vmem:[#allocation3 + $0xe8] sm:$0xff] %vm1135, %v1098
      %1166 = vst.msk [vmem:[#allocation3 + $0xf0] sm:$0xff] %vm1135, %v1100
      %1167 = vst.msk [vmem:[#allocation3 + $0xf8] sm:$0xff] %vm1135, %v1102
      %v1168 = vld [vmem:[%s234 + $0x2] sm:$0xff]
      %v1169 = vld [vmem:[%s234 + $0xa] sm:$0xff]
      %v1170 = vld [vmem:[%s234 + $0x1a] sm:$0xff]
      %v1171 = vld [vmem:[%s234 + $0x22] sm:$0xff]
      %v1172 = vld [vmem:[%s234 + $0x32] sm:$0xff]
      %v1173 = vld [vmem:[%s234 + $0x3a] sm:$0xff]
      %v1174 = vld [vmem:[%s234 + $0x4a] sm:$0xff]
      %v1175 = vld [vmem:[%s234 + $0x52] sm:$0xff]
      %v1176 = vld [vmem:[%s234 + $0x62] sm:$0xff]
      %v1177 = vld [vmem:[%s234 + $0x6a] sm:$0xff]
      %v1178 = vld [vmem:[%s234 + $0x7a] sm:$0xff]
      %v1179 = vld [vmem:[%s234 + $0x82] sm:$0xff]
      %v1180 = vld [vmem:[%s234 + $0x92] sm:$0xff]
      %v1181 = vld [vmem:[%s234 + $0x9a] sm:$0xff]
      %v1182 = vld [vmem:[%s234 + $0xaa] sm:$0xff]
      %v1183 = vld [vmem:[%s234 + $0xb2] sm:$0xff]
      %v1184 = vld [vmem:[%s234 + $0xc2] sm:$0xff]
      %v1185 = vld [vmem:[%s234 + $0xca] sm:$0xff]
      %v1186 = vld [vmem:[%s234 + $0xda] sm:$0xff]
      %v1187 = vld [vmem:[%s234 + $0xe2] sm:$0xff]
      %v1188 = vld [vmem:[%s234 + $0xf2] sm:$0xff]
      %v1189 = vld [vmem:[%s234 + $0xfa] sm:$0xff]
      %v1190 = vld [vmem:[%s234 + $0x10a] sm:$0xff]
      %v1191 = vld [vmem:[%s234 + $0x112] sm:$0xff]
      %v1192 = vld [vmem:[%s234 + $0x122] sm:$0xff]
      %v1193 = vld [vmem:[%s234 + $0x12a] sm:$0xff]
      %v1194 = vld [vmem:[%s234 + $0x13a] sm:$0xff]
      %v1195 = vld [vmem:[%s234 + $0x142] sm:$0xff]
      %v1196 = vld [vmem:[%s234 + $0x152] sm:$0xff]
      %v1197 = vld [vmem:[%s234 + $0x15a] sm:$0xff]
      %v1198 = vld [vmem:[%s234 + $0x16a] sm:$0xff]
      %v1199 = vld [vmem:[%s234 + $0x172] sm:$0xff]
      %1232 = vrot.lane.b32.xlu0 %v1168, 20
      %v1233 = vpop.permute.xlu0 %1232
      %1234 = vrot.lane.b32.xlu0 %v1169, 20
      %v1235 = vpop.permute.xlu0 %1234
      %1236 = vrot.lane.b32.xlu0 %v1170, 20
      %v1237 = vpop.permute.xlu0 %1236
      %1238 = vrot.lane.b32.xlu0 %v1171, 20
      %v1239 = vpop.permute.xlu0 %1238
      %1240 = vrot.lane.b32.xlu0 %v1172, 20
      %v1241 = vpop.permute.xlu0 %1240
      %1242 = vrot.lane.b32.xlu0 %v1173, 20
      %v1243 = vpop.permute.xlu0 %1242
      %1244 = vrot.lane.b32.xlu0 %v1174, 20
      %v1245 = vpop.permute.xlu0 %1244
      %1246 = vrot.lane.b32.xlu0 %v1175, 20
      %v1247 = vpop.permute.xlu0 %1246
      %1248 = vrot.lane.b32.xlu0 %v1176, 20
      %v1249 = vpop.permute.xlu0 %1248
      %1250 = vrot.lane.b32.xlu0 %v1177, 20
      %v1251 = vpop.permute.xlu0 %1250
      %1252 = vrot.lane.b32.xlu0 %v1178, 20
      %v1253 = vpop.permute.xlu0 %1252
      %1254 = vrot.lane.b32.xlu0 %v1179, 20
      %v1255 = vpop.permute.xlu0 %1254
      %1256 = vrot.lane.b32.xlu0 %v1180, 20
      %v1257 = vpop.permute.xlu0 %1256
      %1258 = vrot.lane.b32.xlu0 %v1181, 20
      %v1259 = vpop.permute.xlu0 %1258
      %1260 = vrot.lane.b32.xlu0 %v1182, 20
      %v1261 = vpop.permute.xlu0 %1260
      %1262 = vrot.lane.b32.xlu0 %v1183, 20
      %v1263 = vpop.permute.xlu0 %1262
      %1264 = vrot.lane.b32.xlu0 %v1184, 20
      %v1265 = vpop.permute.xlu0 %1264
      %1266 = vrot.lane.b32.xlu0 %v1185, 20
      %v1267 = vpop.permute.xlu0 %1266
      %1268 = vrot.lane.b32.xlu0 %v1186, 20
      %v1269 = vpop.permute.xlu0 %1268
      %1270 = vrot.lane.b32.xlu0 %v1187, 20
      %v1271 = vpop.permute.xlu0 %1270
      %1272 = vrot.lane.b32.xlu0 %v1188, 20
      %v1273 = vpop.permute.xlu0 %1272
      %1274 = vrot.lane.b32.xlu0 %v1189, 20
      %v1275 = vpop.permute.xlu0 %1274
      %1276 = vrot.lane.b32.xlu0 %v1190, 20
      %v1277 = vpop.permute.xlu0 %1276
      %1278 = vrot.lane.b32.xlu0 %v1191, 20
      %v1279 = vpop.permute.xlu0 %1278
      %1280 = vrot.lane.b32.xlu0 %v1192, 20
      %v1281 = vpop.permute.xlu0 %1280
      %1282 = vrot.lane.b32.xlu0 %v1193, 20
      %v1283 = vpop.permute.xlu0 %1282
      %1284 = vrot.lane.b32.xlu0 %v1194, 20
      %v1285 = vpop.permute.xlu0 %1284
      %1286 = vrot.lane.b32.xlu0 %v1195, 20
      %v1287 = vpop.permute.xlu0 %1286
      %1288 = vrot.lane.b32.xlu0 %v1196, 20
      %v1289 = vpop.permute.xlu0 %1288
      %1290 = vrot.lane.b32.xlu0 %v1197, 20
      %v1291 = vpop.permute.xlu0 %1290
      %1292 = vrot.lane.b32.xlu0 %v1198, 20
      %v1293 = vpop.permute.xlu0 %1292
      %1294 = vrot.lane.b32.xlu0 %v1199, 20
      %v1295 = vpop.permute.xlu0 %1294
      %vm1328 = vcmask 195744
      %1329 = vst.msk [vmem:[#allocation3] sm:$0xff] %vm1328, %v1233
      %1330 = vst.msk [vmem:[#allocation3 + $0x8] sm:$0xff] %vm1328, %v1235
      %1331 = vst.msk [vmem:[#allocation3 + $0x10] sm:$0xff] %vm1328, %v1237
      %1332 = vst.msk [vmem:[#allocation3 + $0x18] sm:$0xff] %vm1328, %v1239
      %1333 = vst.msk [vmem:[#allocation3 + $0x20] sm:$0xff] %vm1328, %v1241
      %1334 = vst.msk [vmem:[#allocation3 + $0x28] sm:$0xff] %vm1328, %v1243
      %1335 = vst.msk [vmem:[#allocation3 + $0x30] sm:$0xff] %vm1328, %v1245
      %1336 = vst.msk [vmem:[#allocation3 + $0x38] sm:$0xff] %vm1328, %v1247
      %1337 = vst.msk [vmem:[#allocation3 + $0x40] sm:$0xff] %vm1328, %v1249
      %1338 = vst.msk [vmem:[#allocation3 + $0x48] sm:$0xff] %vm1328, %v1251
      %1339 = vst.msk [vmem:[#allocation3 + $0x50] sm:$0xff] %vm1328, %v1253
      %1340 = vst.msk [vmem:[#allocation3 + $0x58] sm:$0xff] %vm1328, %v1255
      %1341 = vst.msk [vmem:[#allocation3 + $0x60] sm:$0xff] %vm1328, %v1257
      %1342 = vst.msk [vmem:[#allocation3 + $0x68] sm:$0xff] %vm1328, %v1259
      %1343 = vst.msk [vmem:[#allocation3 + $0x70] sm:$0xff] %vm1328, %v1261
      %1344 = vst.msk [vmem:[#allocation3 + $0x78] sm:$0xff] %vm1328, %v1263
      %1345 = vst.msk [vmem:[#allocation3 + $0x80] sm:$0xff] %vm1328, %v1265
      %1346 = vst.msk [vmem:[#allocation3 + $0x88] sm:$0xff] %vm1328, %v1267
      %1347 = vst.msk [vmem:[#allocation3 + $0x90] sm:$0xff] %vm1328, %v1269
      %1348 = vst.msk [vmem:[#allocation3 + $0x98] sm:$0xff] %vm1328, %v1271
      %1349 = vst.msk [vmem:[#allocation3 + $0xa0] sm:$0xff] %vm1328, %v1273
      %1350 = vst.msk [vmem:[#allocation3 + $0xa8] sm:$0xff] %vm1328, %v1275
      %1351 = vst.msk [vmem:[#allocation3 + $0xb0] sm:$0xff] %vm1328, %v1277
      %1352 = vst.msk [vmem:[#allocation3 + $0xb8] sm:$0xff] %vm1328, %v1279
      %1353 = vst.msk [vmem:[#allocation3 + $0xc0] sm:$0xff] %vm1328, %v1281
      %1354 = vst.msk [vmem:[#allocation3 + $0xc8] sm:$0xff] %vm1328, %v1283
      %1355 = vst.msk [vmem:[#allocation3 + $0xd0] sm:$0xff] %vm1328, %v1285
      %1356 = vst.msk [vmem:[#allocation3 + $0xd8] sm:$0xff] %vm1328, %v1287
      %1357 = vst.msk [vmem:[#allocation3 + $0xe0] sm:$0xff] %vm1328, %v1289
      %1358 = vst.msk [vmem:[#allocation3 + $0xe8] sm:$0xff] %vm1328, %v1291
      %1359 = vst.msk [vmem:[#allocation3 + $0xf0] sm:$0xff] %vm1328, %v1293
      %1360 = vst.msk [vmem:[#allocation3 + $0xf8] sm:$0xff] %vm1328, %v1295
      %s1361 = scalar_lea.vmem [#allocation2], 48
      %v1362 = vld [vmem:[%s1361] sm:$0xff]
      %v1363 = vld [vmem:[%s1361 + $0x8] sm:$0xff]
      %v1364 = vld [vmem:[%s1361 + $0x18] sm:$0xff]
      %v1365 = vld [vmem:[%s1361 + $0x20] sm:$0xff]
      %v1366 = vld [vmem:[%s1361 + $0x30] sm:$0xff]
      %v1367 = vld [vmem:[%s1361 + $0x38] sm:$0xff]
      %v1368 = vld [vmem:[%s1361 + $0x48] sm:$0xff]
      %v1369 = vld [vmem:[%s1361 + $0x50] sm:$0xff]
      %v1370 = vld [vmem:[%s1361 + $0x60] sm:$0xff]
      %v1371 = vld [vmem:[%s1361 + $0x68] sm:$0xff]
      %v1372 = vld [vmem:[%s1361 + $0x78] sm:$0xff]
      %v1373 = vld [vmem:[%s1361 + $0x80] sm:$0xff]
      %v1374 = vld [vmem:[%s1361 + $0x90] sm:$0xff]
      %v1375 = vld [vmem:[%s1361 + $0x98] sm:$0xff]
      %v1376 = vld [vmem:[%s1361 + $0xa8] sm:$0xff]
      %v1377 = vld [vmem:[%s1361 + $0xb0] sm:$0xff]
      %v1378 = vld [vmem:[%s1361 + $0xc0] sm:$0xff]
      %v1379 = vld [vmem:[%s1361 + $0xc8] sm:$0xff]
      %v1380 = vld [vmem:[%s1361 + $0xd8] sm:$0xff]
      %v1381 = vld [vmem:[%s1361 + $0xe0] sm:$0xff]
      %v1382 = vld [vmem:[%s1361 + $0xf0] sm:$0xff]
      %v1383 = vld [vmem:[%s1361 + $0xf8] sm:$0xff]
      %v1384 = vld [vmem:[%s1361 + $0x108] sm:$0xff]
      %v1385 = vld [vmem:[%s1361 + $0x110] sm:$0xff]
      %v1386 = vld [vmem:[%s1361 + $0x120] sm:$0xff]
      %v1387 = vld [vmem:[%s1361 + $0x128] sm:$0xff]
      %v1388 = vld [vmem:[%s1361 + $0x138] sm:$0xff]
      %v1389 = vld [vmem:[%s1361 + $0x140] sm:$0xff]
      %v1390 = vld [vmem:[%s1361 + $0x150] sm:$0xff]
      %v1391 = vld [vmem:[%s1361 + $0x158] sm:$0xff]
      %v1392 = vld [vmem:[%s1361 + $0x168] sm:$0xff]
      %v1393 = vld [vmem:[%s1361 + $0x170] sm:$0xff]
      %1426 = vrot.lane.b32.xlu0 %v1362, 24
      %v1427 = vpop.permute.xlu0 %1426
      %1428 = vrot.lane.b32.xlu0 %v1363, 24
      %v1429 = vpop.permute.xlu0 %1428
      %1430 = vrot.lane.b32.xlu0 %v1364, 24
      %v1431 = vpop.permute.xlu0 %1430
      %1432 = vrot.lane.b32.xlu0 %v1365, 24
      %v1433 = vpop.permute.xlu0 %1432
      %1434 = vrot.lane.b32.xlu0 %v1366, 24
      %v1435 = vpop.permute.xlu0 %1434
      %1436 = vrot.lane.b32.xlu0 %v1367, 24
      %v1437 = vpop.permute.xlu0 %1436
      %1438 = vrot.lane.b32.xlu0 %v1368, 24
      %v1439 = vpop.permute.xlu0 %1438
      %1440 = vrot.lane.b32.xlu0 %v1369, 24
      %v1441 = vpop.permute.xlu0 %1440
      %1442 = vrot.lane.b32.xlu0 %v1370, 24
      %v1443 = vpop.permute.xlu0 %1442
      %1444 = vrot.lane.b32.xlu0 %v1371, 24
      %v1445 = vpop.permute.xlu0 %1444
      %1446 = vrot.lane.b32.xlu0 %v1372, 24
      %v1447 = vpop.permute.xlu0 %1446
      %1448 = vrot.lane.b32.xlu0 %v1373, 24
      %v1449 = vpop.permute.xlu0 %1448
      %1450 = vrot.lane.b32.xlu0 %v1374, 24
      %v1451 = vpop.permute.xlu0 %1450
      %1452 = vrot.lane.b32.xlu0 %v1375, 24
      %v1453 = vpop.permute.xlu0 %1452
      %1454 = vrot.lane.b32.xlu0 %v1376, 24
      %v1455 = vpop.permute.xlu0 %1454
      %1456 = vrot.lane.b32.xlu0 %v1377, 24
      %v1457 = vpop.permute.xlu0 %1456
      %1458 = vrot.lane.b32.xlu0 %v1378, 24
      %v1459 = vpop.permute.xlu0 %1458
      %1460 = vrot.lane.b32.xlu0 %v1379, 24
      %v1461 = vpop.permute.xlu0 %1460
      %1462 = vrot.lane.b32.xlu0 %v1380, 24
      %v1463 = vpop.permute.xlu0 %1462
      %1464 = vrot.lane.b32.xlu0 %v1381, 24
      %v1465 = vpop.permute.xlu0 %1464
      %1466 = vrot.lane.b32.xlu0 %v1382, 24
      %v1467 = vpop.permute.xlu0 %1466
      %1468 = vrot.lane.b32.xlu0 %v1383, 24
      %v1469 = vpop.permute.xlu0 %1468
      %1470 = vrot.lane.b32.xlu0 %v1384, 24
      %v1471 = vpop.permute.xlu0 %1470
      %1472 = vrot.lane.b32.xlu0 %v1385, 24
      %v1473 = vpop.permute.xlu0 %1472
      %1474 = vrot.lane.b32.xlu0 %v1386, 24
      %v1475 = vpop.permute.xlu0 %1474
      %1476 = vrot.lane.b32.xlu0 %v1387, 24
      %v1477 = vpop.permute.xlu0 %1476
      %1478 = vrot.lane.b32.xlu0 %v1388, 24
      %v1479 = vpop.permute.xlu0 %1478
      %1480 = vrot.lane.b32.xlu0 %v1389, 24
      %v1481 = vpop.permute.xlu0 %1480
      %1482 = vrot.lane.b32.xlu0 %v1390, 24
      %v1483 = vpop.permute.xlu0 %1482
      %1484 = vrot.lane.b32.xlu0 %v1391, 24
      %v1485 = vpop.permute.xlu0 %1484
      %1486 = vrot.lane.b32.xlu0 %v1392, 24
      %v1487 = vpop.permute.xlu0 %1486
      %1488 = vrot.lane.b32.xlu0 %v1393, 24
      %v1489 = vpop.permute.xlu0 %1488
      %vm1522 = vcmask 228544
      %1523 = vst.msk [vmem:[#allocation3] sm:$0xff] %vm1522, %v1427
      %1524 = vst.msk [vmem:[#allocation3 + $0x8] sm:$0xff] %vm1522, %v1429
      %1525 = vst.msk [vmem:[#allocation3 + $0x10] sm:$0xff] %vm1522, %v1431
      %1526 = vst.msk [vmem:[#allocation3 + $0x18] sm:$0xff] %vm1522, %v1433
      %1527 = vst.msk [vmem:[#allocation3 + $0x20] sm:$0xff] %vm1522, %v1435
      %1528 = vst.msk [vmem:[#allocation3 + $0x28] sm:$0xff] %vm1522, %v1437
      %1529 = vst.msk [vmem:[#allocation3 + $0x30] sm:$0xff] %vm1522, %v1439
      %1530 = vst.msk [vmem:[#allocation3 + $0x38] sm:$0xff] %vm1522, %v1441
      %1531 = vst.msk [vmem:[#allocation3 + $0x40] sm:$0xff] %vm1522, %v1443
      %1532 = vst.msk [vmem:[#allocation3 + $0x48] sm:$0xff] %vm1522, %v1445
      %1533 = vst.msk [vmem:[#allocation3 + $0x50] sm:$0xff] %vm1522, %v1447
      %1534 = vst.msk [vmem:[#allocation3 + $0x58] sm:$0xff] %vm1522, %v1449
      %1535 = vst.msk [vmem:[#allocation3 + $0x60] sm:$0xff] %vm1522, %v1451
      %1536 = vst.msk [vmem:[#allocation3 + $0x68] sm:$0xff] %vm1522, %v1453
      %1537 = vst.msk [vmem:[#allocation3 + $0x70] sm:$0xff] %vm1522, %v1455
      %1538 = vst.msk [vmem:[#allocation3 + $0x78] sm:$0xff] %vm1522, %v1457
      %1539 = vst.msk [vmem:[#allocation3 + $0x80] sm:$0xff] %vm1522, %v1459
      %1540 = vst.msk [vmem:[#allocation3 + $0x88] sm:$0xff] %vm1522, %v1461
      %1541 = vst.msk [vmem:[#allocation3 + $0x90] sm:$0xff] %vm1522, %v1463
      %1542 = vst.msk [vmem:[#allocation3 + $0x98] sm:$0xff] %vm1522, %v1465
      %1543 = vst.msk [vmem:[#allocation3 + $0xa0] sm:$0xff] %vm1522, %v1467
      %1544 = vst.msk [vmem:[#allocation3 + $0xa8] sm:$0xff] %vm1522, %v1469
      %1545 = vst.msk [vmem:[#allocation3 + $0xb0] sm:$0xff] %vm1522, %v1471
      %1546 = vst.msk [vmem:[#allocation3 + $0xb8] sm:$0xff] %vm1522, %v1473
      %1547 = vst.msk [vmem:[#allocation3 + $0xc0] sm:$0xff] %vm1522, %v1475
      %1548 = vst.msk [vmem:[#allocation3 + $0xc8] sm:$0xff] %vm1522, %v1477
      %1549 = vst.msk [vmem:[#allocation3 + $0xd0] sm:$0xff] %vm1522, %v1479
      %1550 = vst.msk [vmem:[#allocation3 + $0xd8] sm:$0xff] %vm1522, %v1481
      %1551 = vst.msk [vmem:[#allocation3 + $0xe0] sm:$0xff] %vm1522, %v1483
      %1552 = vst.msk [vmem:[#allocation3 + $0xe8] sm:$0xff] %vm1522, %v1485
      %1553 = vst.msk [vmem:[#allocation3 + $0xf0] sm:$0xff] %vm1522, %v1487
      %1554 = vst.msk [vmem:[#allocation3 + $0xf8] sm:$0xff] %vm1522, %v1489
      %v1555 = vld [vmem:[%s1361 + $0x1] sm:$0xff]
      %v1556 = vld [vmem:[%s1361 + $0x9] sm:$0xff]
      %v1557 = vld [vmem:[%s1361 + $0x19] sm:$0xff]
      %v1558 = vld [vmem:[%s1361 + $0x21] sm:$0xff]
      %v1559 = vld [vmem:[%s1361 + $0x31] sm:$0xff]
      %v1560 = vld [vmem:[%s1361 + $0x39] sm:$0xff]
      %v1561 = vld [vmem:[%s1361 + $0x49] sm:$0xff]
      %v1562 = vld [vmem:[%s1361 + $0x51] sm:$0xff]
      %v1563 = vld [vmem:[%s1361 + $0x61] sm:$0xff]
      %v1564 = vld [vmem:[%s1361 + $0x69] sm:$0xff]
      %v1565 = vld [vmem:[%s1361 + $0x79] sm:$0xff]
      %v1566 = vld [vmem:[%s1361 + $0x81] sm:$0xff]
      %v1567 = vld [vmem:[%s1361 + $0x91] sm:$0xff]
      %v1568 = vld [vmem:[%s1361 + $0x99] sm:$0xff]
      %v1569 = vld [vmem:[%s1361 + $0xa9] sm:$0xff]
      %v1570 = vld [vmem:[%s1361 + $0xb1] sm:$0xff]
      %v1571 = vld [vmem:[%s1361 + $0xc1] sm:$0xff]
      %v1572 = vld [vmem:[%s1361 + $0xc9] sm:$0xff]
      %v1573 = vld [vmem:[%s1361 + $0xd9] sm:$0xff]
      %v1574 = vld [vmem:[%s1361 + $0xe1] sm:$0xff]
      %v1575 = vld [vmem:[%s1361 + $0xf1] sm:$0xff]
      %v1576 = vld [vmem:[%s1361 + $0xf9] sm:$0xff]
      %v1577 = vld [vmem:[%s1361 + $0x109] sm:$0xff]
      %v1578 = vld [vmem:[%s1361 + $0x111] sm:$0xff]
      %v1579 = vld [vmem:[%s1361 + $0x121] sm:$0xff]
      %v1580 = vld [vmem:[%s1361 + $0x129] sm:$0xff]
      %v1581 = vld [vmem:[%s1361 + $0x139] sm:$0xff]
      %v1582 = vld [vmem:[%s1361 + $0x141] sm:$0xff]
      %v1583 = vld [vmem:[%s1361 + $0x151] sm:$0xff]
      %v1584 = vld [vmem:[%s1361 + $0x159] sm:$0xff]
      %v1585 = vld [vmem:[%s1361 + $0x169] sm:$0xff]
      %v1586 = vld [vmem:[%s1361 + $0x171] sm:$0xff]
      %1619 = vrot.lane.b32.xlu0 %v1555, 28
      %v1620 = vpop.permute.xlu0 %1619
      %1621 = vrot.lane.b32.xlu0 %v1556, 28
      %v1622 = vpop.permute.xlu0 %1621
      %1623 = vrot.lane.b32.xlu0 %v1557, 28
      %v1624 = vpop.permute.xlu0 %1623
      %1625 = vrot.lane.b32.xlu0 %v1558, 28
      %v1626 = vpop.permute.xlu0 %1625
      %1627 = vrot.lane.b32.xlu0 %v1559, 28
      %v1628 = vpop.permute.xlu0 %1627
      %1629 = vrot.lane.b32.xlu0 %v1560, 28
      %v1630 = vpop.permute.xlu0 %1629
      %1631 = vrot.lane.b32.xlu0 %v1561, 28
      %v1632 = vpop.permute.xlu0 %1631
      %1633 = vrot.lane.b32.xlu0 %v1562, 28
      %v1634 = vpop.permute.xlu0 %1633
      %1635 = vrot.lane.b32.xlu0 %v1563, 28
      %v1636 = vpop.permute.xlu0 %1635
      %1637 = vrot.lane.b32.xlu0 %v1564, 28
      %v1638 = vpop.permute.xlu0 %1637
      %1639 = vrot.lane.b32.xlu0 %v1565, 28
      %v1640 = vpop.permute.xlu0 %1639
      %1641 = vrot.lane.b32.xlu0 %v1566, 28
      %v1642 = vpop.permute.xlu0 %1641
      %1643 = vrot.lane.b32.xlu0 %v1567, 28
      %v1644 = vpop.permute.xlu0 %1643
      %1645 = vrot.lane.b32.xlu0 %v1568, 28
      %v1646 = vpop.permute.xlu0 %1645
      %1647 = vrot.lane.b32.xlu0 %v1569, 28
      %v1648 = vpop.permute.xlu0 %1647
      %1649 = vrot.lane.b32.xlu0 %v1570, 28
      %v1650 = vpop.permute.xlu0 %1649
      %1651 = vrot.lane.b32.xlu0 %v1571, 28
      %v1652 = vpop.permute.xlu0 %1651
      %1653 = vrot.lane.b32.xlu0 %v1572, 28
      %v1654 = vpop.permute.xlu0 %1653
      %1655 = vrot.lane.b32.xlu0 %v1573, 28
      %v1656 = vpop.permute.xlu0 %1655
      %1657 = vrot.lane.b32.xlu0 %v1574, 28
      %v1658 = vpop.permute.xlu0 %1657
      %1659 = vrot.lane.b32.xlu0 %v1575, 28
      %v1660 = vpop.permute.xlu0 %1659
      %1661 = vrot.lane.b32.xlu0 %v1576, 28
      %v1662 = vpop.permute.xlu0 %1661
      %1663 = vrot.lane.b32.xlu0 %v1577, 28
      %v1664 = vpop.permute.xlu0 %1663
      %1665 = vrot.lane.b32.xlu0 %v1578, 28
      %v1666 = vpop.permute.xlu0 %1665
      %1667 = vrot.lane.b32.xlu0 %v1579, 28
      %v1668 = vpop.permute.xlu0 %1667
      %1669 = vrot.lane.b32.xlu0 %v1580, 28
      %v1670 = vpop.permute.xlu0 %1669
      %1671 = vrot.lane.b32.xlu0 %v1581, 28
      %v1672 = vpop.permute.xlu0 %1671
      %1673 = vrot.lane.b32.xlu0 %v1582, 28
      %v1674 = vpop.permute.xlu0 %1673
      %1675 = vrot.lane.b32.xlu0 %v1583, 28
      %v1676 = vpop.permute.xlu0 %1675
      %1677 = vrot.lane.b32.xlu0 %v1584, 28
      %v1678 = vpop.permute.xlu0 %1677
      %1679 = vrot.lane.b32.xlu0 %v1585, 28
      %v1680 = vpop.permute.xlu0 %1679
      %1681 = vrot.lane.b32.xlu0 %v1586, 28
      %v1682 = vpop.permute.xlu0 %1681
      %vm1715 = vcmask 261344
      %1716 = vst.msk [vmem:[#allocation3] sm:$0xff] %vm1715, %v1620
      %1717 = vst.msk [vmem:[#allocation3 + $0x8] sm:$0xff] %vm1715, %v1622
      %1718 = vst.msk [vmem:[#allocation3 + $0x10] sm:$0xff] %vm1715, %v1624
      %1719 = vst.msk [vmem:[#allocation3 + $0x18] sm:$0xff] %vm1715, %v1626
      %1720 = vst.msk [vmem:[#allocation3 + $0x20] sm:$0xff] %vm1715, %v1628
      %1721 = vst.msk [vmem:[#allocation3 + $0x28] sm:$0xff] %vm1715, %v1630
      %1722 = vst.msk [vmem:[#allocation3 + $0x30] sm:$0xff] %vm1715, %v1632
      %1723 = vst.msk [vmem:[#allocation3 + $0x38] sm:$0xff] %vm1715, %v1634
      %1724 = vst.msk [vmem:[#allocation3 + $0x40] sm:$0xff] %vm1715, %v1636
      %1725 = vst.msk [vmem:[#allocation3 + $0x48] sm:$0xff] %vm1715, %v1638
      %1726 = vst.msk [vmem:[#allocation3 + $0x50] sm:$0xff] %vm1715, %v1640
      %1727 = vst.msk [vmem:[#allocation3 + $0x58] sm:$0xff] %vm1715, %v1642
      %1728 = vst.msk [vmem:[#allocation3 + $0x60] sm:$0xff] %vm1715, %v1644
      %1729 = vst.msk [vmem:[#allocation3 + $0x68] sm:$0xff] %vm1715, %v1646
      %1730 = vst.msk [vmem:[#allocation3 + $0x70] sm:$0xff] %vm1715, %v1648
      %1731 = vst.msk [vmem:[#allocation3 + $0x78] sm:$0xff] %vm1715, %v1650
      %1732 = vst.msk [vmem:[#allocation3 + $0x80] sm:$0xff] %vm1715, %v1652
      %1733 = vst.msk [vmem:[#allocation3 + $0x88] sm:$0xff] %vm1715, %v1654
      %1734 = vst.msk [vmem:[#allocation3 + $0x90] sm:$0xff] %vm1715, %v1656
      %1735 = vst.msk [vmem:[#allocation3 + $0x98] sm:$0xff] %vm1715, %v1658
      %1736 = vst.msk [vmem:[#allocation3 + $0xa0] sm:$0xff] %vm1715, %v1660
      %1737 = vst.msk [vmem:[#allocation3 + $0xa8] sm:$0xff] %vm1715, %v1662
      %1738 = vst.msk [vmem:[#allocation3 + $0xb0] sm:$0xff] %vm1715, %v1664
      %1739 = vst.msk [vmem:[#allocation3 + $0xb8] sm:$0xff] %vm1715, %v1666
      %1740 = vst.msk [vmem:[#allocation3 + $0xc0] sm:$0xff] %vm1715, %v1668
      %1741 = vst.msk [vmem:[#allocation3 + $0xc8] sm:$0xff] %vm1715, %v1670
      %1742 = vst.msk [vmem:[#allocation3 + $0xd0] sm:$0xff] %vm1715, %v1672
      %1743 = vst.msk [vmem:[#allocation3 + $0xd8] sm:$0xff] %vm1715, %v1674
      %1744 = vst.msk [vmem:[#allocation3 + $0xe0] sm:$0xff] %vm1715, %v1676
      %1745 = vst.msk [vmem:[#allocation3 + $0xe8] sm:$0xff] %vm1715, %v1678
      %1746 = vst.msk [vmem:[#allocation3 + $0xf0] sm:$0xff] %vm1715, %v1680
      %1747 = vst.msk [vmem:[#allocation3 + $0xf8] sm:$0xff] %vm1715, %v1682
      %v1748 = vld [vmem:[%s1361 + $0x2] sm:$0xff]
      %v1749 = vld [vmem:[%s1361 + $0xa] sm:$0xff]
      %v1750 = vld [vmem:[%s1361 + $0x1a] sm:$0xff]
      %v1751 = vld [vmem:[%s1361 + $0x22] sm:$0xff]
      %v1752 = vld [vmem:[%s1361 + $0x32] sm:$0xff]
      %v1753 = vld [vmem:[%s1361 + $0x3a] sm:$0xff]
      %v1754 = vld [vmem:[%s1361 + $0x4a] sm:$0xff]
      %v1755 = vld [vmem:[%s1361 + $0x52] sm:$0xff]
      %v1756 = vld [vmem:[%s1361 + $0x62] sm:$0xff]
      %v1757 = vld [vmem:[%s1361 + $0x6a] sm:$0xff]
      %v1758 = vld [vmem:[%s1361 + $0x7a] sm:$0xff]
      %v1759 = vld [vmem:[%s1361 + $0x82] sm:$0xff]
      %v1760 = vld [vmem:[%s1361 + $0x92] sm:$0xff]
      %v1761 = vld [vmem:[%s1361 + $0x9a] sm:$0xff]
      %v1762 = vld [vmem:[%s1361 + $0xaa] sm:$0xff]
      %v1763 = vld [vmem:[%s1361 + $0xb2] sm:$0xff]
      %v1764 = vld [vmem:[%s1361 + $0xc2] sm:$0xff]
      %v1765 = vld [vmem:[%s1361 + $0xca] sm:$0xff]
      %v1766 = vld [vmem:[%s1361 + $0xda] sm:$0xff]
      %v1767 = vld [vmem:[%s1361 + $0xe2] sm:$0xff]
      %v1768 = vld [vmem:[%s1361 + $0xf2] sm:$0xff]
      %v1769 = vld [vmem:[%s1361 + $0xfa] sm:$0xff]
      %v1770 = vld [vmem:[%s1361 + $0x10a] sm:$0xff]
      %v1771 = vld [vmem:[%s1361 + $0x112] sm:$0xff]
      %v1772 = vld [vmem:[%s1361 + $0x122] sm:$0xff]
      %v1773 = vld [vmem:[%s1361 + $0x12a] sm:$0xff]
      %v1774 = vld [vmem:[%s1361 + $0x13a] sm:$0xff]
      %v1775 = vld [vmem:[%s1361 + $0x142] sm:$0xff]
      %v1776 = vld [vmem:[%s1361 + $0x152] sm:$0xff]
      %v1777 = vld [vmem:[%s1361 + $0x15a] sm:$0xff]
      %v1778 = vld [vmem:[%s1361 + $0x16a] sm:$0xff]
      %v1779 = vld [vmem:[%s1361 + $0x172] sm:$0xff]
      %1812 = vrot.lane.b32.xlu0 %v1748, 32
      %v1813 = vpop.permute.xlu0 %1812
      %1814 = vrot.lane.b32.xlu0 %v1749, 32
      %v1815 = vpop.permute.xlu0 %1814
      %1816 = vrot.lane.b32.xlu0 %v1750, 32
      %v1817 = vpop.permute.xlu0 %1816
      %1818 = vrot.lane.b32.xlu0 %v1751, 32
      %v1819 = vpop.permute.xlu0 %1818
      %1820 = vrot.lane.b32.xlu0 %v1752, 32
      %v1821 = vpop.permute.xlu0 %1820
      %1822 = vrot.lane.b32.xlu0 %v1753, 32
      %v1823 = vpop.permute.xlu0 %1822
      %1824 = vrot.lane.b32.xlu0 %v1754, 32
      %v1825 = vpop.permute.xlu0 %1824
      %1826 = vrot.lane.b32.xlu0 %v1755, 32
      %v1827 = vpop.permute.xlu0 %1826
      %1828 = vrot.lane.b32.xlu0 %v1756, 32
      %v1829 = vpop.permute.xlu0 %1828
      %1830 = vrot.lane.b32.xlu0 %v1757, 32
      %v1831 = vpop.permute.xlu0 %1830
      %1832 = vrot.lane.b32.xlu0 %v1758, 32
      %v1833 = vpop.permute.xlu0 %1832
      %1834 = vrot.lane.b32.xlu0 %v1759, 32
      %v1835 = vpop.permute.xlu0 %1834
      %1836 = vrot.lane.b32.xlu0 %v1760, 32
      %v1837 = vpop.permute.xlu0 %1836
      %1838 = vrot.lane.b32.xlu0 %v1761, 32
      %v1839 = vpop.permute.xlu0 %1838
      %1840 = vrot.lane.b32.xlu0 %v1762, 32
      %v1841 = vpop.permute.xlu0 %1840
      %1842 = vrot.lane.b32.xlu0 %v1763, 32
      %v1843 = vpop.permute.xlu0 %1842
      %1844 = vrot.lane.b32.xlu0 %v1764, 32
      %v1845 = vpop.permute.xlu0 %1844
      %1846 = vrot.lane.b32.xlu0 %v1765, 32
      %v1847 = vpop.permute.xlu0 %1846
      %1848 = vrot.lane.b32.xlu0 %v1766, 32
      %v1849 = vpop.permute.xlu0 %1848
      %1850 = vrot.lane.b32.xlu0 %v1767, 32
      %v1851 = vpop.permute.xlu0 %1850
      %1852 = vrot.lane.b32.xlu0 %v1768, 32
      %v1853 = vpop.permute.xlu0 %1852
      %1854 = vrot.lane.b32.xlu0 %v1769, 32
      %v1855 = vpop.permute.xlu0 %1854
      %1856 = vrot.lane.b32.xlu0 %v1770, 32
      %v1857 = vpop.permute.xlu0 %1856
      %1858 = vrot.lane.b32.xlu0 %v1771, 32
      %v1859 = vpop.permute.xlu0 %1858
      %1860 = vrot.lane.b32.xlu0 %v1772, 32
      %v1861 = vpop.permute.xlu0 %1860
      %1862 = vrot.lane.b32.xlu0 %v1773, 32
      %v1863 = vpop.permute.xlu0 %1862
      %1864 = vrot.lane.b32.xlu0 %v1774, 32
      %v1865 = vpop.permute.xlu0 %1864
      %1866 = vrot.lane.b32.xlu0 %v1775, 32
      %v1867 = vpop.permute.xlu0 %1866
      %1868 = vrot.lane.b32.xlu0 %v1776, 32
      %v1869 = vpop.permute.xlu0 %1868
      %1870 = vrot.lane.b32.xlu0 %v1777, 32
      %v1871 = vpop.permute.xlu0 %1870
      %1872 = vrot.lane.b32.xlu0 %v1778, 32
      %v1873 = vpop.permute.xlu0 %1872
      %1874 = vrot.lane.b32.xlu0 %v1779, 32
      %v1875 = vpop.permute.xlu0 %1874
      %vm1908 = vcmask 294144
      %1909 = vst.msk [vmem:[#allocation3] sm:$0xff] %vm1908, %v1813
      %1910 = vst.msk [vmem:[#allocation3 + $0x8] sm:$0xff] %vm1908, %v1815
      %1911 = vst.msk [vmem:[#allocation3 + $0x10] sm:$0xff] %vm1908, %v1817
      %1912 = vst.msk [vmem:[#allocation3 + $0x18] sm:$0xff] %vm1908, %v1819
      %1913 = vst.msk [vmem:[#allocation3 + $0x20] sm:$0xff] %vm1908, %v1821
      %1914 = vst.msk [vmem:[#allocation3 + $0x28] sm:$0xff] %vm1908, %v1823
      %1915 = vst.msk [vmem:[#allocation3 + $0x30] sm:$0xff] %vm1908, %v1825
      %1916 = vst.msk [vmem:[#allocation3 + $0x38] sm:$0xff] %vm1908, %v1827
      %1917 = vst.msk [vmem:[#allocation3 + $0x40] sm:$0xff] %vm1908, %v1829
      %1918 = vst.msk [vmem:[#allocation3 + $0x48] sm:$0xff] %vm1908, %v1831
      %1919 = vst.msk [vmem:[#allocation3 + $0x50] sm:$0xff] %vm1908, %v1833
      %1920 = vst.msk [vmem:[#allocation3 + $0x58] sm:$0xff] %vm1908, %v1835
      %1921 = vst.msk [vmem:[#allocation3 + $0x60] sm:$0xff] %vm1908, %v1837
      %1922 = vst.msk [vmem:[#allocation3 + $0x68] sm:$0xff] %vm1908, %v1839
      %1923 = vst.msk [vmem:[#allocation3 + $0x70] sm:$0xff] %vm1908, %v1841
      %1924 = vst.msk [vmem:[#allocation3 + $0x78] sm:$0xff] %vm1908, %v1843
      %1925 = vst.msk [vmem:[#allocation3 + $0x80] sm:$0xff] %vm1908, %v1845
      %1926 = vst.msk [vmem:[#allocation3 + $0x88] sm:$0xff] %vm1908, %v1847
      %1927 = vst.msk [vmem:[#allocation3 + $0x90] sm:$0xff] %vm1908, %v1849
      %1928 = vst.msk [vmem:[#allocation3 + $0x98] sm:$0xff] %vm1908, %v1851
      %1929 = vst.msk [vmem:[#allocation3 + $0xa0] sm:$0xff] %vm1908, %v1853
      %1930 = vst.msk [vmem:[#allocation3 + $0xa8] sm:$0xff] %vm1908, %v1855
      %1931 = vst.msk [vmem:[#allocation3 + $0xb0] sm:$0xff] %vm1908, %v1857
      %1932 = vst.msk [vmem:[#allocation3 + $0xb8] sm:$0xff] %vm1908, %v1859
      %1933 = vst.msk [vmem:[#allocation3 + $0xc0] sm:$0xff] %vm1908, %v1861
      %1934 = vst.msk [vmem:[#allocation3 + $0xc8] sm:$0xff] %vm1908, %v1863
      %1935 = vst.msk [vmem:[#allocation3 + $0xd0] sm:$0xff] %vm1908, %v1865
      %1936 = vst.msk [vmem:[#allocation3 + $0xd8] sm:$0xff] %vm1908, %v1867
      %1937 = vst.msk [vmem:[#allocation3 + $0xe0] sm:$0xff] %vm1908, %v1869
      %1938 = vst.msk [vmem:[#allocation3 + $0xe8] sm:$0xff] %vm1908, %v1871
      %1939 = vst.msk [vmem:[#allocation3 + $0xf0] sm:$0xff] %vm1908, %v1873
      %1940 = vst.msk [vmem:[#allocation3 + $0xf8] sm:$0xff] %vm1908, %v1875
      %v1941 = vld [vmem:[#allocation3] sm:$0xff]
      %v1942 = vld [vmem:[#allocation3 + $0x8] sm:$0xff]
      %v1943 = vld [vmem:[#allocation3 + $0x10] sm:$0xff]
      %v1944 = vld [vmem:[#allocation3 + $0x18] sm:$0xff]
      %v1945 = vld [vmem:[#allocation3 + $0x20] sm:$0xff]
      %v1946 = vld [vmem:[#allocation3 + $0x28] sm:$0xff]
      %v1947 = vld [vmem:[#allocation3 + $0x30] sm:$0xff]
      %v1948 = vld [vmem:[#allocation3 + $0x38] sm:$0xff]
      %v1949 = vld [vmem:[#allocation3 + $0x40] sm:$0xff]
      %v1950 = vld [vmem:[#allocation3 + $0x48] sm:$0xff]
      %v1951 = vld [vmem:[#allocation3 + $0x50] sm:$0xff]
      %v1952 = vld [vmem:[#allocation3 + $0x58] sm:$0xff]
      %v1953 = vld [vmem:[#allocation3 + $0x60] sm:$0xff]
      %v1954 = vld [vmem:[#allocation3 + $0x68] sm:$0xff]
      %v1955 = vld [vmem:[#allocation3 + $0x70] sm:$0xff]
      %v1956 = vld [vmem:[#allocation3 + $0x78] sm:$0xff]
      %v1957 = vld [vmem:[#allocation3 + $0x80] sm:$0xff]
      %v1958 = vld [vmem:[#allocation3 + $0x88] sm:$0xff]
      %v1959 = vld [vmem:[#allocation3 + $0x90] sm:$0xff]
      %v1960 = vld [vmem:[#allocation3 + $0x98] sm:$0xff]
      %v1961 = vld [vmem:[#allocation3 + $0xa0] sm:$0xff]
      %v1962 = vld [vmem:[#allocation3 + $0xa8] sm:$0xff]
      %v1963 = vld [vmem:[#allocation3 + $0xb0] sm:$0xff]
      %v1964 = vld [vmem:[#allocation3 + $0xb8] sm:$0xff]
      %v1965 = vld [vmem:[#allocation3 + $0xc0] sm:$0xff]
      %v1966 = vld [vmem:[#allocation3 + $0xc8] sm:$0xff]
      %v1967 = vld [vmem:[#allocation3 + $0xd0] sm:$0xff]
      %v1968 = vld [vmem:[#allocation3 + $0xd8] sm:$0xff]
      %v1969 = vld [vmem:[#allocation3 + $0xe0] sm:$0xff]
      %v1970 = vld [vmem:[#allocation3 + $0xe8] sm:$0xff]
      %v1971 = vld [vmem:[#allocation3 + $0xf0] sm:$0xff]
      %v1972 = vld [vmem:[#allocation3 + $0xf8] sm:$0xff]
      %v1973 = vld [vmem:[%s1] sm:$0xff]
      %v1974 = vld [vmem:[%s1 + $0x8] sm:$0xff]
      %v1975 = vld [vmem:[%s1 + $0x10] sm:$0xff]
      %v1976 = vld [vmem:[%s1 + $0x18] sm:$0xff]
      %v1977 = vld [vmem:[%s1 + $0x20] sm:$0xf]
      %v1978 = vld [vmem:[%s2] sm:$0x1]
      %v1980 = vlaneseq
      %v1981 = vshrl.u32 %v1980, 7
      %v1982 = vsub.s32 0, %v1981
      %v1983 = vrot.slane %v1978, %v1982
      %vm1985 = vcmask 293888
      %v1987 = vsel %vm1985, %v1941, 0
      %v1990 = vsel %vm1985, %v1942, 0
      %v1993 = vsel %vm1985, %v1943, 0
      %v1996 = vsel %vm1985, %v1944, 0
      %v1999 = vsel %vm1985, %v1945, 0
      %v2002 = vsel %vm1985, %v1946, 0
      %v2005 = vsel %vm1985, %v1947, 0
      %v2008 = vsel %vm1985, %v1948, 0
      %v2011 = vsel %vm1985, %v1949, 0
      %v2014 = vsel %vm1985, %v1950, 0
      %v2017 = vsel %vm1985, %v1951, 0
      %v2020 = vsel %vm1985, %v1952, 0
      %v2023 = vsel %vm1985, %v1953, 0
      %v2026 = vsel %vm1985, %v1954, 0
      %v2029 = vsel %vm1985, %v1955, 0
      %v2032 = vsel %vm1985, %v1956, 0
      %v2035 = vsel %vm1985, %v1957, 0
      %v2038 = vsel %vm1985, %v1958, 0
      %v2041 = vsel %vm1985, %v1959, 0
      %v2044 = vsel %vm1985, %v1960, 0
      %v2047 = vsel %vm1985, %v1961, 0
      %v2050 = vsel %vm1985, %v1962, 0
      %v2053 = vsel %vm1985, %v1963, 0
      %v2056 = vsel %vm1985, %v1964, 0
      %v2059 = vsel %vm1985, %v1965, 0
      %v2062 = vsel %vm1985, %v1966, 0
      %v2065 = vsel %vm1985, %v1967, 0
      %v2068 = vsel %vm1985, %v1968, 0
      %v2071 = vsel %vm1985, %v1969, 0
      %v2074 = vsel %vm1985, %v1970, 0
      %v2077 = vsel %vm1985, %v1971, 0
      %v2080 = vsel %vm1985, %v1972, 0
      %vm2082 = vcmask 1043456
      %v2084 = vsel %vm2082, %v1977, 0
      %2086 = vmatprep.subr.mxu0 0.0
      %2087 = vmatpush1.msra.mxu0 %v1973
      %2088 = vmatprep.subr.mxu0 0.0
      %2089 = vmatpush1.msra.mxu0 %v1974
      %2090 = vmatprep.subr.mxu0 0.0
      %2091 = vmatpush1.msra.mxu0 %v1975
      %2092 = vmatprep.subr.mxu0 0.0
      %2093 = vmatpush1.msra.mxu0 %v1976
      %2094 = vmatprep.subr.mxu0 0.0
      %2095 = vmatpush1.msra.mxu0 %v2084
      %2096 = vmatprep.subr.mxu0 0.0
      %2097 = vmatpush1.msra.mxu0 0.0
      %2098 = vmatprep.subr.mxu0 0.0
      %2099 = vmatpush1.msra.mxu0 0.0
      %2100 = vmatprep.subr.mxu0 0.0
      %2101 = vmatpush1.msra.mxu0 0.0
      %2102 = vmatprep.subr.mxu0 0.0
      %2103 = vmatpush1.msra.mxu0 0.0
      %2104 = vmatprep.subr.mxu0 0.0
      %2105 = vmatpush1.msra.mxu0 0.0
      %2106 = vmatprep.subr.mxu0 0.0
      %2107 = vmatpush1.msra.mxu0 0.0
      %2108 = vmatprep.subr.mxu0 0.0
      %2109 = vmatpush1.msra.mxu0 0.0
      %2110 = vmatprep.subr.mxu0 0.0
      %2111 = vmatpush1.msra.mxu0 0.0
      %2112 = vmatprep.subr.mxu0 0.0
      %2113 = vmatpush1.msra.mxu0 0.0
      %2114 = vmatprep.subr.mxu0 0.0
      %2115 = vmatpush1.msra.mxu0 0.0
      %2116 = vmatprep.subr.mxu0 0.0
      %2117 = vmatpush1.msra.mxu0 0.0
      %2118 = vmatprep.subr.mxu0 0.0
      %2119 = vmatpush1.msra.mxu0 0.0
      %2120 = vmatprep.subr.mxu0 0.0
      %2121 = vmatpush1.msra.mxu0 0.0
      %2122 = vmatprep.subr.mxu0 0.0
      %2123 = vmatpush1.msra.mxu0 0.0
      %2124 = vmatprep.subr.mxu0 0.0
      %2125 = vmatpush1.msra.mxu0 0.0
      %2126 = vmatprep.subr.mxu0 0.0
      %2127 = vmatpush1.msra.mxu0 0.0
      %2128 = vmatprep.subr.mxu0 0.0
      %2129 = vmatpush1.msra.mxu0 0.0
      %2130 = vmatprep.subr.mxu0 0.0
      %2131 = vmatpush1.msra.mxu0 0.0
      %2132 = vmatprep.subr.mxu0 0.0
      %2133 = vmatpush1.msra.mxu0 0.0
      %2134 = vmatprep.subr.mxu0 0.0
      %2135 = vmatpush1.msra.mxu0 0.0
      %2136 = vmatprep.subr.mxu0 0.0
      %2137 = vmatpush1.msra.mxu0 0.0
      %2138 = vmatprep.subr.mxu0 0.0
      %2139 = vmatpush1.msra.mxu0 0.0
      %2140 = vmatprep.subr.mxu0 0.0
      %2141 = vmatpush1.msra.mxu0 0.0
      %2142 = vmatprep.subr.mxu0 0.0
      %2143 = vmatpush1.msra.mxu0 0.0
      %2144 = vmatprep.subr.mxu0 0.0
      %2145 = vmatpush1.msra.mxu0 0.0
      %2146 = vmatprep.subr.mxu0 0.0
      %2147 = vmatpush1.msra.mxu0 0.0
      %2148 = vmatprep.subr.mxu0 0.0
      %2149 = vmatpush1.msra.mxu0 0.0
      %2150 = vmatprep.mubr.f32.mxu0 0.0
      %2151 = vmatmul.mubr.f32.gmra.mrb[0].mxu0 %v1987
      %v2152 = vpop.f32.mrb[0].mxu0
      %v2153 = vadd.f32 %v1983, %v2152
      %v2154 = vpop.f32.mrb[0].mxu0
      %2155 = vmatprep.mubr.f32.mxu0 0.0
      %2156 = vmatmul.mubr.f32.gmra.mrb[0].mxu0 %v1990
      %v2157 = vpop.f32.mrb[0].mxu0
      %v2158 = vadd.f32 %v1983, %v2157
      %v2159 = vpop.f32.mrb[0].mxu0
      %2160 = vmatprep.mubr.f32.mxu0 0.0
      %2161 = vmatmul.mubr.f32.gmra.mrb[0].mxu0 %v1993
      %v2162 = vpop.f32.mrb[0].mxu0
      %v2163 = vadd.f32 %v1983, %v2162
      %v2164 = vpop.f32.mrb[0].mxu0
      %2165 = vmatprep.mubr.f32.mxu0 0.0
      %2166 = vmatmul.mubr.f32.gmra.mrb[0].mxu0 %v1996
      %v2167 = vpop.f32.mrb[0].mxu0
      %v2168 = vadd.f32 %v1983, %v2167
      %v2169 = vpop.f32.mrb[0].mxu0
      %2170 = vmatprep.mubr.f32.mxu0 0.0
      %2171 = vmatmul.mubr.f32.gmra.mrb[0].mxu0 %v1999
      %v2172 = vpop.f32.mrb[0].mxu0
      %v2173 = vadd.f32 %v1983, %v2172
      %v2174 = vpop.f32.mrb[0].mxu0
      %2175 = vmatprep.mubr.f32.mxu0 0.0
      %2176 = vmatmul.mubr.f32.gmra.mrb[0].mxu0 %v2002
      %v2177 = vpop.f32.mrb[0].mxu0
      %v2178 = vadd.f32 %v1983, %v2177
      %v2179 = vpop.f32.mrb[0].mxu0
      %2180 = vmatprep.mubr.f32.mxu0 0.0
      %2181 = vmatmul.mubr.f32.gmra.mrb[0].mxu0 %v2005
      %v2182 = vpop.f32.mrb[0].mxu0
      %v2183 = vadd.f32 %v1983, %v2182
      %v2184 = vpop.f32.mrb[0].mxu0
      %2185 = vmatprep.mubr.f32.mxu0 0.0
      %2186 = vmatmul.mubr.f32.gmra.mrb[0].mxu0 %v2008
      %v2187 = vpop.f32.mrb[0].mxu0
      %v2188 = vadd.f32 %v1983, %v2187
      %v2189 = vpop.f32.mrb[0].mxu0
      %2190 = vmatprep.mubr.f32.mxu0 0.0
      %2191 = vmatmul.mubr.f32.gmra.mrb[0].mxu0 %v2011
      %v2192 = vpop.f32.mrb[0].mxu0
      %v2193 = vadd.f32 %v1983, %v2192
      %v2194 = vpop.f32.mrb[0].mxu0
      %2195 = vmatprep.mubr.f32.mxu0 0.0
      %2196 = vmatmul.mubr.f32.gmra.mrb[0].mxu0 %v2014
      %v2197 = vpop.f32.mrb[0].mxu0
      %v2198 = vadd.f32 %v1983, %v2197
      %v2199 = vpop.f32.mrb[0].mxu0
      %2200 = vmatprep.mubr.f32.mxu0 0.0
      %2201 = vmatmul.mubr.f32.gmra.mrb[0].mxu0 %v2017
      %v2202 = vpop.f32.mrb[0].mxu0
      %v2203 = vadd.f32 %v1983, %v2202
      %v2204 = vpop.f32.mrb[0].mxu0
      %2205 = vmatprep.mubr.f32.mxu0 0.0
      %2206 = vmatmul.mubr.f32.gmra.mrb[0].mxu0 %v2020
      %v2207 = vpop.f32.mrb[0].mxu0
      %v2208 = vadd.f32 %v1983, %v2207
      %v2209 = vpop.f32.mrb[0].mxu0
      %2210 = vmatprep.mubr.f32.mxu0 0.0
      %2211 = vmatmul.mubr.f32.gmra.mrb[0].mxu0 %v2023
      %v2212 = vpop.f32.mrb[0].mxu0
      %v2213 = vadd.f32 %v1983, %v2212
      %v2214 = vpop.f32.mrb[0].mxu0
      %2215 = vmatprep.mubr.f32.mxu0 0.0
      %2216 = vmatmul.mubr.f32.gmra.mrb[0].mxu0 %v2026
      %v2217 = vpop.f32.mrb[0].mxu0
      %v2218 = vadd.f32 %v1983, %v2217
      %v2219 = vpop.f32.mrb[0].mxu0
      %2220 = vmatprep.mubr.f32.mxu0 0.0
      %2221 = vmatmul.mubr.f32.gmra.mrb[0].mxu0 %v2029
      %v2222 = vpop.f32.mrb[0].mxu0
      %v2223 = vadd.f32 %v1983, %v2222
      %v2224 = vpop.f32.mrb[0].mxu0
      %2225 = vmatprep.mubr.f32.mxu0 0.0
      %2226 = vmatmul.mubr.f32.gmra.mrb[0].mxu0 %v2032
      %v2227 = vpop.f32.mrb[0].mxu0
      %v2228 = vadd.f32 %v1983, %v2227
      %v2229 = vpop.f32.mrb[0].mxu0
      %2230 = vmatprep.mubr.f32.mxu0 0.0
      %2231 = vmatmul.mubr.f32.gmra.mrb[0].mxu0 %v2035
      %v2232 = vpop.f32.mrb[0].mxu0
      %v2233 = vadd.f32 %v1983, %v2232
      %v2234 = vpop.f32.mrb[0].mxu0
      %2235 = vmatprep.mubr.f32.mxu0 0.0
      %2236 = vmatmul.mubr.f32.gmra.mrb[0].mxu0 %v2038
      %v2237 = vpop.f32.mrb[0].mxu0
      %v2238 = vadd.f32 %v1983, %v2237
      %v2239 = vpop.f32.mrb[0].mxu0
      %2240 = vmatprep.mubr.f32.mxu0 0.0
      %2241 = vmatmul.mubr.f32.gmra.mrb[0].mxu0 %v2041
      %v2242 = vpop.f32.mrb[0].mxu0
      %v2243 = vadd.f32 %v1983, %v2242
      %v2244 = vpop.f32.mrb[0].mxu0
      %2245 = vmatprep.mubr.f32.mxu0 0.0
      %2246 = vmatmul.mubr.f32.gmra.mrb[0].mxu0 %v2044
      %v2247 = vpop.f32.mrb[0].mxu0
      %v2248 = vadd.f32 %v1983, %v2247
      %v2249 = vpop.f32.mrb[0].mxu0
      %2250 = vmatprep.mubr.f32.mxu0 0.0
      %2251 = vmatmul.mubr.f32.gmra.mrb[0].mxu0 %v2047
      %v2252 = vpop.f32.mrb[0].mxu0
      %v2253 = vadd.f32 %v1983, %v2252
      %v2254 = vpop.f32.mrb[0].mxu0
      %2255 = vmatprep.mubr.f32.mxu0 0.0
      %2256 = vmatmul.mubr.f32.gmra.mrb[0].mxu0 %v2050
      %v2257 = vpop.f32.mrb[0].mxu0
      %v2258 = vadd.f32 %v1983, %v2257
      %v2259 = vpop.f32.mrb[0].mxu0
      %2260 = vmatprep.mubr.f32.mxu0 0.0
      %2261 = vmatmul.mubr.f32.gmra.mrb[0].mxu0 %v2053
      %v2262 = vpop.f32.mrb[0].mxu0
      %v2263 = vadd.f32 %v1983, %v2262
      %v2264 = vpop.f32.mrb[0].mxu0
      %2265 = vmatprep.mubr.f32.mxu0 0.0
      %2266 = vmatmul.mubr.f32.gmra.mrb[0].mxu0 %v2056
      %v2267 = vpop.f32.mrb[0].mxu0
      %v2268 = vadd.f32 %v1983, %v2267
      %v2269 = vpop.f32.mrb[0].mxu0
      %2270 = vmatprep.mubr.f32.mxu0 0.0
      %2271 = vmatmul.mubr.f32.gmra.mrb[0].mxu0 %v2059
      %v2272 = vpop.f32.mrb[0].mxu0
      %v2273 = vadd.f32 %v1983, %v2272
      %v2274 = vpop.f32.mrb[0].mxu0
      %2275 = vmatprep.mubr.f32.mxu0 0.0
      %2276 = vmatmul.mubr.f32.gmra.mrb[0].mxu0 %v2062
      %v2277 = vpop.f32.mrb[0].mxu0
      %v2278 = vadd.f32 %v1983, %v2277
      %v2279 = vpop.f32.mrb[0].mxu0
      %2280 = vmatprep.mubr.f32.mxu0 0.0
      %2281 = vmatmul.mubr.f32.gmra.mrb[0].mxu0 %v2065
      %v2282 = vpop.f32.mrb[0].mxu0
      %v2283 = vadd.f32 %v1983, %v2282
      %v2284 = vpop.f32.mrb[0].mxu0
      %2285 = vmatprep.mubr.f32.mxu0 0.0
      %2286 = vmatmul.mubr.f32.gmra.mrb[0].mxu0 %v2068
      %v2287 = vpop.f32.mrb[0].mxu0
      %v2288 = vadd.f32 %v1983, %v2287
      %v2289 = vpop.f32.mrb[0].mxu0
      %2290 = vmatprep.mubr.f32.mxu0 0.0
      %2291 = vmatmul.mubr.f32.gmra.mrb[0].mxu0 %v2071
      %v2292 = vpop.f32.mrb[0].mxu0
      %v2293 = vadd.f32 %v1983, %v2292
      %v2294 = vpop.f32.mrb[0].mxu0
      %2295 = vmatprep.mubr.f32.mxu0 0.0
      %2296 = vmatmul.mubr.f32.gmra.mrb[0].mxu0 %v2074
      %v2297 = vpop.f32.mrb[0].mxu0
      %v2298 = vadd.f32 %v1983, %v2297
      %v2299 = vpop.f32.mrb[0].mxu0
      %2300 = vmatprep.mubr.f32.mxu0 0.0
      %2301 = vmatmul.mubr.f32.gmra.mrb[0].mxu0 %v2077
      %v2302 = vpop.f32.mrb[0].mxu0
      %v2303 = vadd.f32 %v1983, %v2302
      %v2304 = vpop.f32.mrb[0].mxu0
      %2305 = vmatprep.mubr.f32.mxu0 0.0
      %2306 = vmatmul.mubr.f32.gmra.mrb[0].mxu0 %v2080
      %v2307 = vpop.f32.mrb[0].mxu0
      %v2308 = vadd.f32 %v1983, %v2307
      %v2309 = vpop.f32.mrb[0].mxu0
      %2310 = vdwg.mxu0
      %v2311 = vmax.f32 %v2153, 0.0
      %v2312 = vmax.f32 %v2158, 0.0
      %v2313 = vmax.f32 %v2163, 0.0
      %v2314 = vmax.f32 %v2168, 0.0
      %v2315 = vmax.f32 %v2173, 0.0
      %v2316 = vmax.f32 %v2178, 0.0
      %v2317 = vmax.f32 %v2183, 0.0
      %v2318 = vmax.f32 %v2188, 0.0
      %v2319 = vmax.f32 %v2193, 0.0
      %v2320 = vmax.f32 %v2198, 0.0
      %v2321 = vmax.f32 %v2203, 0.0
      %v2322 = vmax.f32 %v2208, 0.0
      %v2323 = vmax.f32 %v2213, 0.0
      %v2324 = vmax.f32 %v2218, 0.0
      %v2325 = vmax.f32 %v2223, 0.0
      %v2326 = vmax.f32 %v2228, 0.0
      %v2327 = vmax.f32 %v2233, 0.0
      %v2328 = vmax.f32 %v2238, 0.0
      %v2329 = vmax.f32 %v2243, 0.0
      %v2330 = vmax.f32 %v2248, 0.0
      %v2331 = vmax.f32 %v2253, 0.0
      %v2332 = vmax.f32 %v2258, 0.0
      %v2333 = vmax.f32 %v2263, 0.0
      %v2334 = vmax.f32 %v2268, 0.0
      %v2335 = vmax.f32 %v2273, 0.0
      %v2336 = vmax.f32 %v2278, 0.0
      %v2337 = vmax.f32 %v2283, 0.0
      %v2338 = vmax.f32 %v2288, 0.0
      %v2339 = vmax.f32 %v2293, 0.0
      %v2340 = vmax.f32 %v2298, 0.0
      %v2341 = vmax.f32 %v2303, 0.0
      %v2342 = vmax.f32 %v2308, 0.0
      %2343 = vst.msk [vmem:[%s234 + $0x1] sm:$0xff] %vm225, %v2311
      %2344 = vst.msk [vmem:[%s234 + $0x9] sm:$0xff] %vm225, %v2312
      %2345 = vst.msk [vmem:[%s234 + $0x19] sm:$0xff] %vm225, %v2313
      %2346 = vst.msk [vmem:[%s234 + $0x21] sm:$0xff] %vm225, %v2314
      %2347 = vst.msk [vmem:[%s234 + $0x31] sm:$0xff] %vm225, %v2315
      %2348 = vst.msk [vmem:[%s234 + $0x39] sm:$0xff] %vm225, %v2316
      %2349 = vst.msk [vmem:[%s234 + $0x49] sm:$0xff] %vm225, %v2317
      %2350 = vst.msk [vmem:[%s234 + $0x51] sm:$0xff] %vm225, %v2318
      %2351 = vst.msk [vmem:[%s234 + $0x61] sm:$0xff] %vm225, %v2319
      %2352 = vst.msk [vmem:[%s234 + $0x69] sm:$0xff] %vm225, %v2320
      %2353 = vst.msk [vmem:[%s234 + $0x79] sm:$0xff] %vm225, %v2321
      %2354 = vst.msk [vmem:[%s234 + $0x81] sm:$0xff] %vm225, %v2322
      %2355 = vst.msk [vmem:[%s234 + $0x91] sm:$0xff] %vm225, %v2323
      %2356 = vst.msk [vmem:[%s234 + $0x99] sm:$0xff] %vm225, %v2324
      %2357 = vst.msk [vmem:[%s234 + $0xa9] sm:$0xff] %vm225, %v2325
      %2358 = vst.msk [vmem:[%s234 + $0xb1] sm:$0xff] %vm225, %v2326
      %2359 = vst.msk [vmem:[%s234 + $0xc1] sm:$0xff] %vm225, %v2327
      %2360 = vst.msk [vmem:[%s234 + $0xc9] sm:$0xff] %vm225, %v2328
      %2361 = vst.msk [vmem:[%s234 + $0xd9] sm:$0xff] %vm225, %v2329
      %2362 = vst.msk [vmem:[%s234 + $0xe1] sm:$0xff] %vm225, %v2330
      %2363 = vst.msk [vmem:[%s234 + $0xf1] sm:$0xff] %vm225, %v2331
      %2364 = vst.msk [vmem:[%s234 + $0xf9] sm:$0xff] %vm225, %v2332
      %2365 = vst.msk [vmem:[%s234 + $0x109] sm:$0xff] %vm225, %v2333
      %2366 = vst.msk [vmem:[%s234 + $0x111] sm:$0xff] %vm225, %v2334
      %2367 = vst.msk [vmem:[%s234 + $0x121] sm:$0xff] %vm225, %v2335
      %2368 = vst.msk [vmem:[%s234 + $0x129] sm:$0xff] %vm225, %v2336
      %2369 = vst.msk [vmem:[%s234 + $0x139] sm:$0xff] %vm225, %v2337
      %2370 = vst.msk [vmem:[%s234 + $0x141] sm:$0xff] %vm225, %v2338
      %2371 = vst.msk [vmem:[%s234 + $0x151] sm:$0xff] %vm225, %v2339
      %2372 = vst.msk [vmem:[%s234 + $0x159] sm:$0xff] %vm225, %v2340
      %2373 = vst.msk [vmem:[%s234 + $0x169] sm:$0xff] %vm225, %v2341
      %2374 = vst.msk [vmem:[%s234 + $0x171] sm:$0xff] %vm225, %v2342
      %v2375 = vld [vmem:[#allocation2] sm:$0xff]
      %v2376 = vld [vmem:[#allocation2 + $0x8] sm:$0xff]
      %v2377 = vld [vmem:[#allocation2 + $0x18] sm:$0xff]
      %v2378 = vld [vmem:[#allocation2 + $0x20] sm:$0xff]
      %v2379 = vld [vmem:[#allocation2 + $0x30] sm:$0xff]
      %v2380 = vld [vmem:[#allocation2 + $0x38] sm:$0xff]
      %v2381 = vld [vmem:[#allocation2 + $0x48] sm:$0xff]
      %v2382 = vld [vmem:[#allocation2 + $0x50] sm:$0xff]
      %v2383 = vld [vmem:[#allocation2 + $0x60] sm:$0xff]
      %v2384 = vld [vmem:[#allocation2 + $0x68] sm:$0xff]
      %v2385 = vld [vmem:[#allocation2 + $0x78] sm:$0xff]
      %v2386 = vld [vmem:[#allocation2 + $0x80] sm:$0xff]
      %v2387 = vld [vmem:[#allocation2 + $0x90] sm:$0xff]
      %v2388 = vld [vmem:[#allocation2 + $0x98] sm:$0xff]
      %v2389 = vld [vmem:[#allocation2 + $0xa8] sm:$0xff]
      %v2390 = vld [vmem:[#allocation2 + $0xb0] sm:$0xff]
      %v2391 = vld [vmem:[#allocation2 + $0xc0] sm:$0xff]
      %v2392 = vld [vmem:[#allocation2 + $0xc8] sm:$0xff]
      %v2393 = vld [vmem:[#allocation2 + $0xd8] sm:$0xff]
      %v2394 = vld [vmem:[#allocation2 + $0xe0] sm:$0xff]
      %v2395 = vld [vmem:[#allocation2 + $0xf0] sm:$0xff]
      %v2396 = vld [vmem:[#allocation2 + $0xf8] sm:$0xff]
      %v2397 = vld [vmem:[#allocation2 + $0x108] sm:$0xff]
      %v2398 = vld [vmem:[#allocation2 + $0x110] sm:$0xff]
      %v2399 = vld [vmem:[#allocation2 + $0x120] sm:$0xff]
      %v2400 = vld [vmem:[#allocation2 + $0x128] sm:$0xff]
      %v2401 = vld [vmem:[#allocation2 + $0x138] sm:$0xff]
      %v2402 = vld [vmem:[#allocation2 + $0x140] sm:$0xff]
      %v2403 = vld [vmem:[#allocation2 + $0x150] sm:$0xff]
      %v2404 = vld [vmem:[#allocation2 + $0x158] sm:$0xff]
      %v2405 = vld [vmem:[#allocation2 + $0x168] sm:$0xff]
      %v2406 = vld [vmem:[#allocation2 + $0x170] sm:$0xff]
      %2407 = vst.msk [vmem:[#allocation3] sm:$0xff] %vm225, %v2375
      %2408 = vst.msk [vmem:[#allocation3 + $0x8] sm:$0xff] %vm225, %v2376
      %2409 = vst.msk [vmem:[#allocation3 + $0x10] sm:$0xff] %vm225, %v2377
      %2410 = vst.msk [vmem:[#allocation3 + $0x18] sm:$0xff] %vm225, %v2378
      %2411 = vst.msk [vmem:[#allocation3 + $0x20] sm:$0xff] %vm225, %v2379
      %2412 = vst.msk [vmem:[#allocation3 + $0x28] sm:$0xff] %vm225, %v2380
      %2413 = vst.msk [vmem:[#allocation3 + $0x30] sm:$0xff] %vm225, %v2381
      %2414 = vst.msk [vmem:[#allocation3 + $0x38] sm:$0xff] %vm225, %v2382
      %2415 = vst.msk [vmem:[#allocation3 + $0x40] sm:$0xff] %vm225, %v2383
      %2416 = vst.msk [vmem:[#allocation3 + $0x48] sm:$0xff] %vm225, %v2384
      %2417 = vst.msk [vmem:[#allocation3 + $0x50] sm:$0xff] %vm225, %v2385
      %2418 = vst.msk [vmem:[#allocation3 + $0x58] sm:$0xff] %vm225, %v2386
      %2419 = vst.msk [vmem:[#allocation3 + $0x60] sm:$0xff] %vm225, %v2387
      %2420 = vst.msk [vmem:[#allocation3 + $0x68] sm:$0xff] %vm225, %v2388
      %2421 = vst.msk [vmem:[#allocation3 + $0x70] sm:$0xff] %vm225, %v2389
      %2422 = vst.msk [vmem:[#allocation3 + $0x78] sm:$0xff] %vm225, %v2390
      %2423 = vst.msk [vmem:[#allocation3 + $0x80] sm:$0xff] %vm225, %v2391
      %2424 = vst.msk [vmem:[#allocation3 + $0x88] sm:$0xff] %vm225, %v2392
      %2425 = vst.msk [vmem:[#allocation3 + $0x90] sm:$0xff] %vm225, %v2393
      %2426 = vst.msk [vmem:[#allocation3 + $0x98] sm:$0xff] %vm225, %v2394
      %2427 = vst.msk [vmem:[#allocation3 + $0xa0] sm:$0xff] %vm225, %v2395
      %2428 = vst.msk [vmem:[#allocation3 + $0xa8] sm:$0xff] %vm225, %v2396
      %2429 = vst.msk [vmem:[#allocation3 + $0xb0] sm:$0xff] %vm225, %v2397
      %2430 = vst.msk [vmem:[#allocation3 + $0xb8] sm:$0xff] %vm225, %v2398
      %2431 = vst.msk [vmem:[#allocation3 + $0xc0] sm:$0xff] %vm225, %v2399
      %2432 = vst.msk [vmem:[#allocation3 + $0xc8] sm:$0xff] %vm225, %v2400
      %2433 = vst.msk [vmem:[#allocation3 + $0xd0] sm:$0xff] %vm225, %v2401
      %2434 = vst.msk [vmem:[#allocation3 + $0xd8] sm:$0xff] %vm225, %v2402
      %2435 = vst.msk [vmem:[#allocation3 + $0xe0] sm:$0xff] %vm225, %v2403
      %2436 = vst.msk [vmem:[#allocation3 + $0xe8] sm:$0xff] %vm225, %v2404
      %2437 = vst.msk [vmem:[#allocation3 + $0xf0] sm:$0xff] %vm225, %v2405
      %2438 = vst.msk [vmem:[#allocation3 + $0xf8] sm:$0xff] %vm225, %v2406
      %v2439 = vld [vmem:[#allocation2 + $0x1] sm:$0xff]
      %v2440 = vld [vmem:[#allocation2 + $0x9] sm:$0xff]
      %v2441 = vld [vmem:[#allocation2 + $0x19] sm:$0xff]
      %v2442 = vld [vmem:[#allocation2 + $0x21] sm:$0xff]
      %v2443 = vld [vmem:[#allocation2 + $0x31] sm:$0xff]
      %v2444 = vld [vmem:[#allocation2 + $0x39] sm:$0xff]
      %v2445 = vld [vmem:[#allocation2 + $0x49] sm:$0xff]
      %v2446 = vld [vmem:[#allocation2 + $0x51] sm:$0xff]
      %v2447 = vld [vmem:[#allocation2 + $0x61] sm:$0xff]
      %v2448 = vld [vmem:[#allocation2 + $0x69] sm:$0xff]
      %v2449 = vld [vmem:[#allocation2 + $0x79] sm:$0xff]
      %v2450 = vld [vmem:[#allocation2 + $0x81] sm:$0xff]
      %v2451 = vld [vmem:[#allocation2 + $0x91] sm:$0xff]
      %v2452 = vld [vmem:[#allocation2 + $0x99] sm:$0xff]
      %v2453 = vld [vmem:[#allocation2 + $0xa9] sm:$0xff]
      %v2454 = vld [vmem:[#allocation2 + $0xb1] sm:$0xff]
      %v2455 = vld [vmem:[#allocation2 + $0xc1] sm:$0xff]
      %v2456 = vld [vmem:[#allocation2 + $0xc9] sm:$0xff]
      %v2457 = vld [vmem:[#allocation2 + $0xd9] sm:$0xff]
      %v2458 = vld [vmem:[#allocation2 + $0xe1] sm:$0xff]
      %v2459 = vld [vmem:[#allocation2 + $0xf1] sm:$0xff]
      %v2460 = vld [vmem:[#allocation2 + $0xf9] sm:$0xff]
      %v2461 = vld [vmem:[#allocation2 + $0x109] sm:$0xff]
      %v2462 = vld [vmem:[#allocation2 + $0x111] sm:$0xff]
      %v2463 = vld [vmem:[#allocation2 + $0x121] sm:$0xff]
      %v2464 = vld [vmem:[#allocation2 + $0x129] sm:$0xff]
      %v2465 = vld [vmem:[#allocation2 + $0x139] sm:$0xff]
      %v2466 = vld [vmem:[#allocation2 + $0x141] sm:$0xff]
      %v2467 = vld [vmem:[#allocation2 + $0x151] sm:$0xff]
      %v2468 = vld [vmem:[#allocation2 + $0x159] sm:$0xff]
      %v2469 = vld [vmem:[#allocation2 + $0x169] sm:$0xff]
      %v2470 = vld [vmem:[#allocation2 + $0x171] sm:$0xff]
      %2503 = vrot.lane.b32.xlu0 %v2439, 4
      %v2504 = vpop.permute.xlu0 %2503
      %2505 = vrot.lane.b32.xlu0 %v2440, 4
      %v2506 = vpop.permute.xlu0 %2505
      %2507 = vrot.lane.b32.xlu0 %v2441, 4
      %v2508 = vpop.permute.xlu0 %2507
      %2509 = vrot.lane.b32.xlu0 %v2442, 4
      %v2510 = vpop.permute.xlu0 %2509
      %2511 = vrot.lane.b32.xlu0 %v2443, 4
      %v2512 = vpop.permute.xlu0 %2511
      %2513 = vrot.lane.b32.xlu0 %v2444, 4
      %v2514 = vpop.permute.xlu0 %2513
      %2515 = vrot.lane.b32.xlu0 %v2445, 4
      %v2516 = vpop.permute.xlu0 %2515
      %2517 = vrot.lane.b32.xlu0 %v2446, 4
      %v2518 = vpop.permute.xlu0 %2517
      %2519 = vrot.lane.b32.xlu0 %v2447, 4
      %v2520 = vpop.permute.xlu0 %2519
      %2521 = vrot.lane.b32.xlu0 %v2448, 4
      %v2522 = vpop.permute.xlu0 %2521
      %2523 = vrot.lane.b32.xlu0 %v2449, 4
      %v2524 = vpop.permute.xlu0 %2523
      %2525 = vrot.lane.b32.xlu0 %v2450, 4
      %v2526 = vpop.permute.xlu0 %2525
      %2527 = vrot.lane.b32.xlu0 %v2451, 4
      %v2528 = vpop.permute.xlu0 %2527
      %2529 = vrot.lane.b32.xlu0 %v2452, 4
      %v2530 = vpop.permute.xlu0 %2529
      %2531 = vrot.lane.b32.xlu0 %v2453, 4
      %v2532 = vpop.permute.xlu0 %2531
      %2533 = vrot.lane.b32.xlu0 %v2454, 4
      %v2534 = vpop.permute.xlu0 %2533
      %2535 = vrot.lane.b32.xlu0 %v2455, 4
      %v2536 = vpop.permute.xlu0 %2535
      %2537 = vrot.lane.b32.xlu0 %v2456, 4
      %v2538 = vpop.permute.xlu0 %2537
      %2539 = vrot.lane.b32.xlu0 %v2457, 4
      %v2540 = vpop.permute.xlu0 %2539
      %2541 = vrot.lane.b32.xlu0 %v2458, 4
      %v2542 = vpop.permute.xlu0 %2541
      %2543 = vrot.lane.b32.xlu0 %v2459, 4
      %v2544 = vpop.permute.xlu0 %2543
      %2545 = vrot.lane.b32.xlu0 %v2460, 4
      %v2546 = vpop.permute.xlu0 %2545
      %2547 = vrot.lane.b32.xlu0 %v2461, 4
      %v2548 = vpop.permute.xlu0 %2547
      %2549 = vrot.lane.b32.xlu0 %v2462, 4
      %v2550 = vpop.permute.xlu0 %2549
      %2551 = vrot.lane.b32.xlu0 %v2463, 4
      %v2552 = vpop.permute.xlu0 %2551
      %2553 = vrot.lane.b32.xlu0 %v2464, 4
      %v2554 = vpop.permute.xlu0 %2553
      %2555 = vrot.lane.b32.xlu0 %v2465, 4
      %v2556 = vpop.permute.xlu0 %2555
      %2557 = vrot.lane.b32.xlu0 %v2466, 4
      %v2558 = vpop.permute.xlu0 %2557
      %2559 = vrot.lane.b32.xlu0 %v2467, 4
      %v2560 = vpop.permute.xlu0 %2559
      %2561 = vrot.lane.b32.xlu0 %v2468, 4
      %v2562 = vpop.permute.xlu0 %2561
      %2563 = vrot.lane.b32.xlu0 %v2469, 4
      %v2564 = vpop.permute.xlu0 %2563
      %2565 = vrot.lane.b32.xlu0 %v2470, 4
      %v2566 = vpop.permute.xlu0 %2565
      %2599 = vst.msk [vmem:[#allocation3] sm:$0xff] %vm556, %v2504
      %2600 = vst.msk [vmem:[#allocation3 + $0x8] sm:$0xff] %vm556, %v2506
      %2601 = vst.msk [vmem:[#allocation3 + $0x10] sm:$0xff] %vm556, %v2508
      %2602 = vst.msk [vmem:[#allocation3 + $0x18] sm:$0xff] %vm556, %v2510
      %2603 = vst.msk [vmem:[#allocation3 + $0x20] sm:$0xff] %vm556, %v2512
      %2604 = vst.msk [vmem:[#allocation3 + $0x28] sm:$0xff] %vm556, %v2514
      %2605 = vst.msk [vmem:[#allocation3 + $0x30] sm:$0xff] %vm556, %v2516
      %2606 = vst.msk [vmem:[#allocation3 + $0x38] sm:$0xff] %vm556, %v2518
      %2607 = vst.msk [vmem:[#allocation3 + $0x40] sm:$0xff] %vm556, %v2520
      %2608 = vst.msk [vmem:[#allocation3 + $0x48] sm:$0xff] %vm556, %v2522
      %2609 = vst.msk [vmem:[#allocation3 + $0x50] sm:$0xff] %vm556, %v2524
      %2610 = vst.msk [vmem:[#allocation3 + $0x58] sm:$0xff] %vm556, %v2526
      %2611 = vst.msk [vmem:[#allocation3 + $0x60] sm:$0xff] %vm556, %v2528
      %2612 = vst.msk [vmem:[#allocation3 + $0x68] sm:$0xff] %vm556, %v2530
      %2613 = vst.msk [vmem:[#allocation3 + $0x70] sm:$0xff] %vm556, %v2532
      %2614 = vst.msk [vmem:[#allocation3 + $0x78] sm:$0xff] %vm556, %v2534
      %2615 = vst.msk [vmem:[#allocation3 + $0x80] sm:$0xff] %vm556, %v2536
      %2616 = vst.msk [vmem:[#allocation3 + $0x88] sm:$0xff] %vm556, %v2538
      %2617 = vst.msk [vmem:[#allocation3 + $0x90] sm:$0xff] %vm556, %v2540
      %2618 = vst.msk [vmem:[#allocation3 + $0x98] sm:$0xff] %vm556, %v2542
      %2619 = vst.msk [vmem:[#allocation3 + $0xa0] sm:$0xff] %vm556, %v2544
      %2620 = vst.msk [vmem:[#allocation3 + $0xa8] sm:$0xff] %vm556, %v2546
      %2621 = vst.msk [vmem:[#allocation3 + $0xb0] sm:$0xff] %vm556, %v2548
      %2622 = vst.msk [vmem:[#allocation3 + $0xb8] sm:$0xff] %vm556, %v2550
      %2623 = vst.msk [vmem:[#allocation3 + $0xc0] sm:$0xff] %vm556, %v2552
      %2624 = vst.msk [vmem:[#allocation3 + $0xc8] sm:$0xff] %vm556, %v2554
      %2625 = vst.msk [vmem:[#allocation3 + $0xd0] sm:$0xff] %vm556, %v2556
      %2626 = vst.msk [vmem:[#allocation3 + $0xd8] sm:$0xff] %vm556, %v2558
      %2627 = vst.msk [vmem:[#allocation3 + $0xe0] sm:$0xff] %vm556, %v2560
      %2628 = vst.msk [vmem:[#allocation3 + $0xe8] sm:$0xff] %vm556, %v2562
      %2629 = vst.msk [vmem:[#allocation3 + $0xf0] sm:$0xff] %vm556, %v2564
      %2630 = vst.msk [vmem:[#allocation3 + $0xf8] sm:$0xff] %vm556, %v2566
      %v2631 = vld [vmem:[#allocation2 + $0x2] sm:$0xff]
      %v2632 = vld [vmem:[#allocation2 + $0xa] sm:$0xff]
      %v2633 = vld [vmem:[#allocation2 + $0x1a] sm:$0xff]
      %v2634 = vld [vmem:[#allocation2 + $0x22] sm:$0xff]
      %v2635 = vld [vmem:[#allocation2 + $0x32] sm:$0xff]
      %v2636 = vld [vmem:[#allocation2 + $0x3a] sm:$0xff]
      %v2637 = vld [vmem:[#allocation2 + $0x4a] sm:$0xff]
      %v2638 = vld [vmem:[#allocation2 + $0x52] sm:$0xff]
      %v2639 = vld [vmem:[#allocation2 + $0x62] sm:$0xff]
      %v2640 = vld [vmem:[#allocation2 + $0x6a] sm:$0xff]
      %v2641 = vld [vmem:[#allocation2 + $0x7a] sm:$0xff]
      %v2642 = vld [vmem:[#allocation2 + $0x82] sm:$0xff]
      %v2643 = vld [vmem:[#allocation2 + $0x92] sm:$0xff]
      %v2644 = vld [vmem:[#allocation2 + $0x9a] sm:$0xff]
      %v2645 = vld [vmem:[#allocation2 + $0xaa] sm:$0xff]
      %v2646 = vld [vmem:[#allocation2 + $0xb2] sm:$0xff]
      %v2647 = vld [vmem:[#allocation2 + $0xc2] sm:$0xff]
      %v2648 = vld [vmem:[#allocation2 + $0xca] sm:$0xff]
      %v2649 = vld [vmem:[#allocation2 + $0xda] sm:$0xff]
      %v2650 = vld [vmem:[#allocation2 + $0xe2] sm:$0xff]
      %v2651 = vld [vmem:[#allocation2 + $0xf2] sm:$0xff]
      %v2652 = vld [vmem:[#allocation2 + $0xfa] sm:$0xff]
      %v2653 = vld [vmem:[#allocation2 + $0x10a] sm:$0xff]
      %v2654 = vld [vmem:[#allocation2 + $0x112] sm:$0xff]
      %v2655 = vld [vmem:[#allocation2 + $0x122] sm:$0xff]
      %v2656 = vld [vmem:[#allocation2 + $0x12a] sm:$0xff]
      %v2657 = vld [vmem:[#allocation2 + $0x13a] sm:$0xff]
      %v2658 = vld [vmem:[#allocation2 + $0x142] sm:$0xff]
      %v2659 = vld [vmem:[#allocation2 + $0x152] sm:$0xff]
      %v2660 = vld [vmem:[#allocation2 + $0x15a] sm:$0xff]
      %v2661 = vld [vmem:[#allocation2 + $0x16a] sm:$0xff]
      %v2662 = vld [vmem:[#allocation2 + $0x172] sm:$0xff]
      %2695 = vrot.lane.b32.xlu0 %v2631, 8
      %v2696 = vpop.permute.xlu0 %2695
      %2697 = vrot.lane.b32.xlu0 %v2632, 8
      %v2698 = vpop.permute.xlu0 %2697
      %2699 = vrot.lane.b32.xlu0 %v2633, 8
      %v2700 = vpop.permute.xlu0 %2699
      %2701 = vrot.lane.b32.xlu0 %v2634, 8
      %v2702 = vpop.permute.xlu0 %2701
      %2703 = vrot.lane.b32.xlu0 %v2635, 8
      %v2704 = vpop.permute.xlu0 %2703
      %2705 = vrot.lane.b32.xlu0 %v2636, 8
      %v2706 = vpop.permute.xlu0 %2705
      %2707 = vrot.lane.b32.xlu0 %v2637, 8
      %v2708 = vpop.permute.xlu0 %2707
      %2709 = vrot.lane.b32.xlu0 %v2638, 8
      %v2710 = vpop.permute.xlu0 %2709
      %2711 = vrot.lane.b32.xlu0 %v2639, 8
      %v2712 = vpop.permute.xlu0 %2711
      %2713 = vrot.lane.b32.xlu0 %v2640, 8
      %v2714 = vpop.permute.xlu0 %2713
      %2715 = vrot.lane.b32.xlu0 %v2641, 8
      %v2716 = vpop.permute.xlu0 %2715
      %2717 = vrot.lane.b32.xlu0 %v2642, 8
      %v2718 = vpop.permute.xlu0 %2717
      %2719 = vrot.lane.b32.xlu0 %v2643, 8
      %v2720 = vpop.permute.xlu0 %2719
      %2721 = vrot.lane.b32.xlu0 %v2644, 8
      %v2722 = vpop.permute.xlu0 %2721
      %2723 = vrot.lane.b32.xlu0 %v2645, 8
      %v2724 = vpop.permute.xlu0 %2723
      %2725 = vrot.lane.b32.xlu0 %v2646, 8
      %v2726 = vpop.permute.xlu0 %2725
      %2727 = vrot.lane.b32.xlu0 %v2647, 8
      %v2728 = vpop.permute.xlu0 %2727
      %2729 = vrot.lane.b32.xlu0 %v2648, 8
      %v2730 = vpop.permute.xlu0 %2729
      %2731 = vrot.lane.b32.xlu0 %v2649, 8
      %v2732 = vpop.permute.xlu0 %2731
      %2733 = vrot.lane.b32.xlu0 %v2650, 8
      %v2734 = vpop.permute.xlu0 %2733
      %2735 = vrot.lane.b32.xlu0 %v2651, 8
      %v2736 = vpop.permute.xlu0 %2735
      %2737 = vrot.lane.b32.xlu0 %v2652, 8
      %v2738 = vpop.permute.xlu0 %2737
      %2739 = vrot.lane.b32.xlu0 %v2653, 8
      %v2740 = vpop.permute.xlu0 %2739
      %2741 = vrot.lane.b32.xlu0 %v2654, 8
      %v2742 = vpop.permute.xlu0 %2741
      %2743 = vrot.lane.b32.xlu0 %v2655, 8
      %v2744 = vpop.permute.xlu0 %2743
      %2745 = vrot.lane.b32.xlu0 %v2656, 8
      %v2746 = vpop.permute.xlu0 %2745
      %2747 = vrot.lane.b32.xlu0 %v2657, 8
      %v2748 = vpop.permute.xlu0 %2747
      %2749 = vrot.lane.b32.xlu0 %v2658, 8
      %v2750 = vpop.permute.xlu0 %2749
      %2751 = vrot.lane.b32.xlu0 %v2659, 8
      %v2752 = vpop.permute.xlu0 %2751
      %2753 = vrot.lane.b32.xlu0 %v2660, 8
      %v2754 = vpop.permute.xlu0 %2753
      %2755 = vrot.lane.b32.xlu0 %v2661, 8
      %v2756 = vpop.permute.xlu0 %2755
      %2757 = vrot.lane.b32.xlu0 %v2662, 8
      %v2758 = vpop.permute.xlu0 %2757
      %2791 = vst.msk [vmem:[#allocation3] sm:$0xff] %vm749, %v2696
      %2792 = vst.msk [vmem:[#allocation3 + $0x8] sm:$0xff] %vm749, %v2698
      %2793 = vst.msk [vmem:[#allocation3 + $0x10] sm:$0xff] %vm749, %v2700
      %2794 = vst.msk [vmem:[#allocation3 + $0x18] sm:$0xff] %vm749, %v2702
      %2795 = vst.msk [vmem:[#allocation3 + $0x20] sm:$0xff] %vm749, %v2704
      %2796 = vst.msk [vmem:[#allocation3 + $0x28] sm:$0xff] %vm749, %v2706
      %2797 = vst.msk [vmem:[#allocation3 + $0x30] sm:$0xff] %vm749, %v2708
      %2798 = vst.msk [vmem:[#allocation3 + $0x38] sm:$0xff] %vm749, %v2710
      %2799 = vst.msk [vmem:[#allocation3 + $0x40] sm:$0xff] %vm749, %v2712
      %2800 = vst.msk [vmem:[#allocation3 + $0x48] sm:$0xff] %vm749, %v2714
      %2801 = vst.msk [vmem:[#allocation3 + $0x50] sm:$0xff] %vm749, %v2716
      %2802 = vst.msk [vmem:[#allocation3 + $0x58] sm:$0xff] %vm749, %v2718
      %2803 = vst.msk [vmem:[#allocation3 + $0x60] sm:$0xff] %vm749, %v2720
      %2804 = vst.msk [vmem:[#allocation3 + $0x68] sm:$0xff] %vm749, %v2722
      %2805 = vst.msk [vmem:[#allocation3 + $0x70] sm:$0xff] %vm749, %v2724
      %2806 = vst.msk [vmem:[#allocation3 + $0x78] sm:$0xff] %vm749, %v2726
      %2807 = vst.msk [vmem:[#allocation3 + $0x80] sm:$0xff] %vm749, %v2728
      %2808 = vst.msk [vmem:[#allocation3 + $0x88] sm:$0xff] %vm749, %v2730
      %2809 = vst.msk [vmem:[#allocation3 + $0x90] sm:$0xff] %vm749, %v2732
      %2810 = vst.msk [vmem:[#allocation3 + $0x98] sm:$0xff] %vm749, %v2734
      %2811 = vst.msk [vmem:[#allocation3 + $0xa0] sm:$0xff] %vm749, %v2736
      %2812 = vst.msk [vmem:[#allocation3 + $0xa8] sm:$0xff] %vm749, %v2738
      %2813 = vst.msk [vmem:[#allocation3 + $0xb0] sm:$0xff] %vm749, %v2740
      %2814 = vst.msk [vmem:[#allocation3 + $0xb8] sm:$0xff] %vm749, %v2742
      %2815 = vst.msk [vmem:[#allocation3 + $0xc0] sm:$0xff] %vm749, %v2744
      %2816 = vst.msk [vmem:[#allocation3 + $0xc8] sm:$0xff] %vm749, %v2746
      %2817 = vst.msk [vmem:[#allocation3 + $0xd0] sm:$0xff] %vm749, %v2748
      %2818 = vst.msk [vmem:[#allocation3 + $0xd8] sm:$0xff] %vm749, %v2750
      %2819 = vst.msk [vmem:[#allocation3 + $0xe0] sm:$0xff] %vm749, %v2752
      %2820 = vst.msk [vmem:[#allocation3 + $0xe8] sm:$0xff] %vm749, %v2754
      %2821 = vst.msk [vmem:[#allocation3 + $0xf0] sm:$0xff] %vm749, %v2756
      %2822 = vst.msk [vmem:[#allocation3 + $0xf8] sm:$0xff] %vm749, %v2758
      %v2823 = vld [vmem:[%s234] sm:$0xff]
      %v2824 = vld [vmem:[%s234 + $0x8] sm:$0xff]
      %v2825 = vld [vmem:[%s234 + $0x18] sm:$0xff]
      %v2826 = vld [vmem:[%s234 + $0x20] sm:$0xff]
      %v2827 = vld [vmem:[%s234 + $0x30] sm:$0xff]
      %v2828 = vld [vmem:[%s234 + $0x38] sm:$0xff]
      %v2829 = vld [vmem:[%s234 + $0x48] sm:$0xff]
      %v2830 = vld [vmem:[%s234 + $0x50] sm:$0xff]
      %v2831 = vld [vmem:[%s234 + $0x60] sm:$0xff]
      %v2832 = vld [vmem:[%s234 + $0x68] sm:$0xff]
      %v2833 = vld [vmem:[%s234 + $0x78] sm:$0xff]
      %v2834 = vld [vmem:[%s234 + $0x80] sm:$0xff]
      %v2835 = vld [vmem:[%s234 + $0x90] sm:$0xff]
      %v2836 = vld [vmem:[%s234 + $0x98] sm:$0xff]
      %v2837 = vld [vmem:[%s234 + $0xa8] sm:$0xff]
      %v2838 = vld [vmem:[%s234 + $0xb0] sm:$0xff]
      %v2839 = vld [vmem:[%s234 + $0xc0] sm:$0xff]
      %v2840 = vld [vmem:[%s234 + $0xc8] sm:$0xff]
      %v2841 = vld [vmem:[%s234 + $0xd8] sm:$0xff]
      %v2842 = vld [vmem:[%s234 + $0xe0] sm:$0xff]
      %v2843 = vld [vmem:[%s234 + $0xf0] sm:$0xff]
      %v2844 = vld [vmem:[%s234 + $0xf8] sm:$0xff]
      %v2845 = vld [vmem:[%s234 + $0x108] sm:$0xff]
      %v2846 = vld [vmem:[%s234 + $0x110] sm:$0xff]
      %v2847 = vld [vmem:[%s234 + $0x120] sm:$0xff]
      %v2848 = vld [vmem:[%s234 + $0x128] sm:$0xff]
      %v2849 = vld [vmem:[%s234 + $0x138] sm:$0xff]
      %v2850 = vld [vmem:[%s234 + $0x140] sm:$0xff]
      %v2851 = vld [vmem:[%s234 + $0x150] sm:$0xff]
      %v2852 = vld [vmem:[%s234 + $0x158] sm:$0xff]
      %v2853 = vld [vmem:[%s234 + $0x168] sm:$0xff]
      %v2854 = vld [vmem:[%s234 + $0x170] sm:$0xff]
      %2887 = vrot.lane.b32.xlu0 %v2823, 12
      %v2888 = vpop.permute.xlu0 %2887
      %2889 = vrot.lane.b32.xlu0 %v2824, 12
      %v2890 = vpop.permute.xlu0 %2889
      %2891 = vrot.lane.b32.xlu0 %v2825, 12
      %v2892 = vpop.permute.xlu0 %2891
      %2893 = vrot.lane.b32.xlu0 %v2826, 12
      %v2894 = vpop.permute.xlu0 %2893
      %2895 = vrot.lane.b32.xlu0 %v2827, 12
      %v2896 = vpop.permute.xlu0 %2895
      %2897 = vrot.lane.b32.xlu0 %v2828, 12
      %v2898 = vpop.permute.xlu0 %2897
      %2899 = vrot.lane.b32.xlu0 %v2829, 12
      %v2900 = vpop.permute.xlu0 %2899
      %2901 = vrot.lane.b32.xlu0 %v2830, 12
      %v2902 = vpop.permute.xlu0 %2901
      %2903 = vrot.lane.b32.xlu0 %v2831, 12
      %v2904 = vpop.permute.xlu0 %2903
      %2905 = vrot.lane.b32.xlu0 %v2832, 12
      %v2906 = vpop.permute.xlu0 %2905
      %2907 = vrot.lane.b32.xlu0 %v2833, 12
      %v2908 = vpop.permute.xlu0 %2907
      %2909 = vrot.lane.b32.xlu0 %v2834, 12
      %v2910 = vpop.permute.xlu0 %2909
      %2911 = vrot.lane.b32.xlu0 %v2835, 12
      %v2912 = vpop.permute.xlu0 %2911
      %2913 = vrot.lane.b32.xlu0 %v2836, 12
      %v2914 = vpop.permute.xlu0 %2913
      %2915 = vrot.lane.b32.xlu0 %v2837, 12
      %v2916 = vpop.permute.xlu0 %2915
      %2917 = vrot.lane.b32.xlu0 %v2838, 12
      %v2918 = vpop.permute.xlu0 %2917
      %2919 = vrot.lane.b32.xlu0 %v2839, 12
      %v2920 = vpop.permute.xlu0 %2919
      %2921 = vrot.lane.b32.xlu0 %v2840, 12
      %v2922 = vpop.permute.xlu0 %2921
      %2923 = vrot.lane.b32.xlu0 %v2841, 12
      %v2924 = vpop.permute.xlu0 %2923
      %2925 = vrot.lane.b32.xlu0 %v2842, 12
      %v2926 = vpop.permute.xlu0 %2925
      %2927 = vrot.lane.b32.xlu0 %v2843, 12
      %v2928 = vpop.permute.xlu0 %2927
      %2929 = vrot.lane.b32.xlu0 %v2844, 12
      %v2930 = vpop.permute.xlu0 %2929
      %2931 = vrot.lane.b32.xlu0 %v2845, 12
      %v2932 = vpop.permute.xlu0 %2931
      %2933 = vrot.lane.b32.xlu0 %v2846, 12
      %v2934 = vpop.permute.xlu0 %2933
      %2935 = vrot.lane.b32.xlu0 %v2847, 12
      %v2936 = vpop.permute.xlu0 %2935
      %2937 = vrot.lane.b32.xlu0 %v2848, 12
      %v2938 = vpop.permute.xlu0 %2937
      %2939 = vrot.lane.b32.xlu0 %v2849, 12
      %v2940 = vpop.permute.xlu0 %2939
      %2941 = vrot.lane.b32.xlu0 %v2850, 12
      %v2942 = vpop.permute.xlu0 %2941
      %2943 = vrot.lane.b32.xlu0 %v2851, 12
      %v2944 = vpop.permute.xlu0 %2943
      %2945 = vrot.lane.b32.xlu0 %v2852, 12
      %v2946 = vpop.permute.xlu0 %2945
      %2947 = vrot.lane.b32.xlu0 %v2853, 12
      %v2948 = vpop.permute.xlu0 %2947
      %2949 = vrot.lane.b32.xlu0 %v2854, 12
      %v2950 = vpop.permute.xlu0 %2949
      %2983 = vst.msk [vmem:[#allocation3] sm:$0xff] %vm942, %v2888
      %2984 = vst.msk [vmem:[#allocation3 + $0x8] sm:$0xff] %vm942, %v2890
      %2985 = vst.msk [vmem:[#allocation3 + $0x10] sm:$0xff] %vm942, %v2892
      %2986 = vst.msk [vmem:[#allocation3 + $0x18] sm:$0xff] %vm942, %v2894
      %2987 = vst.msk [vmem:[#allocation3 + $0x20] sm:$0xff] %vm942, %v2896
      %2988 = vst.msk [vmem:[#allocation3 + $0x28] sm:$0xff] %vm942, %v2898
      %2989 = vst.msk [vmem:[#allocation3 + $0x30] sm:$0xff] %vm942, %v2900
      %2990 = vst.msk [vmem:[#allocation3 + $0x38] sm:$0xff] %vm942, %v2902
      %2991 = vst.msk [vmem:[#allocation3 + $0x40] sm:$0xff] %vm942, %v2904
      %2992 = vst.msk [vmem:[#allocation3 + $0x48] sm:$0xff] %vm942, %v2906
      %2993 = vst.msk [vmem:[#allocation3 + $0x50] sm:$0xff] %vm942, %v2908
      %2994 = vst.msk [vmem:[#allocation3 + $0x58] sm:$0xff] %vm942, %v2910
      %2995 = vst.msk [vmem:[#allocation3 + $0x60] sm:$0xff] %vm942, %v2912
      %2996 = vst.msk [vmem:[#allocation3 + $0x68] sm:$0xff] %vm942, %v2914
      %2997 = vst.msk [vmem:[#allocation3 + $0x70] sm:$0xff] %vm942, %v2916
      %2998 = vst.msk [vmem:[#allocation3 + $0x78] sm:$0xff] %vm942, %v2918
      %2999 = vst.msk [vmem:[#allocation3 + $0x80] sm:$0xff] %vm942, %v2920
      %3000 = vst.msk [vmem:[#allocation3 + $0x88] sm:$0xff] %vm942, %v2922
      %3001 = vst.msk [vmem:[#allocation3 + $0x90] sm:$0xff] %vm942, %v2924
      %3002 = vst.msk [vmem:[#allocation3 + $0x98] sm:$0xff] %vm942, %v2926
      %3003 = vst.msk [vmem:[#allocation3 + $0xa0] sm:$0xff] %vm942, %v2928
      %3004 = vst.msk [vmem:[#allocation3 + $0xa8] sm:$0xff] %vm942, %v2930
      %3005 = vst.msk [vmem:[#allocation3 + $0xb0] sm:$0xff] %vm942, %v2932
      %3006 = vst.msk [vmem:[#allocation3 + $0xb8] sm:$0xff] %vm942, %v2934
      %3007 = vst.msk [vmem:[#allocation3 + $0xc0] sm:$0xff] %vm942, %v2936
      %3008 = vst.msk [vmem:[#allocation3 + $0xc8] sm:$0xff] %vm942, %v2938
      %3009 = vst.msk [vmem:[#allocation3 + $0xd0] sm:$0xff] %vm942, %v2940
      %3010 = vst.msk [vmem:[#allocation3 + $0xd8] sm:$0xff] %vm942, %v2942
      %3011 = vst.msk [vmem:[#allocation3 + $0xe0] sm:$0xff] %vm942, %v2944
      %3012 = vst.msk [vmem:[#allocation3 + $0xe8] sm:$0xff] %vm942, %v2946
      %3013 = vst.msk [vmem:[#allocation3 + $0xf0] sm:$0xff] %vm942, %v2948
      %3014 = vst.msk [vmem:[#allocation3 + $0xf8] sm:$0xff] %vm942, %v2950
      %v3015 = vld [vmem:[%s234 + $0x1] sm:$0xff]
      %v3016 = vld [vmem:[%s234 + $0x9] sm:$0xff]
      %v3017 = vld [vmem:[%s234 + $0x19] sm:$0xff]
      %v3018 = vld [vmem:[%s234 + $0x21] sm:$0xff]
      %v3019 = vld [vmem:[%s234 + $0x31] sm:$0xff]
      %v3020 = vld [vmem:[%s234 + $0x39] sm:$0xff]
      %v3021 = vld [vmem:[%s234 + $0x49] sm:$0xff]
      %v3022 = vld [vmem:[%s234 + $0x51] sm:$0xff]
      %v3023 = vld [vmem:[%s234 + $0x61] sm:$0xff]
      %v3024 = vld [vmem:[%s234 + $0x69] sm:$0xff]
      %v3025 = vld [vmem:[%s234 + $0x79] sm:$0xff]
      %v3026 = vld [vmem:[%s234 + $0x81] sm:$0xff]
      %v3027 = vld [vmem:[%s234 + $0x91] sm:$0xff]
      %v3028 = vld [vmem:[%s234 + $0x99] sm:$0xff]
      %v3029 = vld [vmem:[%s234 + $0xa9] sm:$0xff]
      %v3030 = vld [vmem:[%s234 + $0xb1] sm:$0xff]
      %v3031 = vld [vmem:[%s234 + $0xc1] sm:$0xff]
      %v3032 = vld [vmem:[%s234 + $0xc9] sm:$0xff]
      %v3033 = vld [vmem:[%s234 + $0xd9] sm:$0xff]
      %v3034 = vld [vmem:[%s234 + $0xe1] sm:$0xff]
      %v3035 = vld [vmem:[%s234 + $0xf1] sm:$0xff]
      %v3036 = vld [vmem:[%s234 + $0xf9] sm:$0xff]
      %v3037 = vld [vmem:[%s234 + $0x109] sm:$0xff]
      %v3038 = vld [vmem:[%s234 + $0x111] sm:$0xff]
      %v3039 = vld [vmem:[%s234 + $0x121] sm:$0xff]
      %v3040 = vld [vmem:[%s234 + $0x129] sm:$0xff]
      %v3041 = vld [vmem:[%s234 + $0x139] sm:$0xff]
      %v3042 = vld [vmem:[%s234 + $0x141] sm:$0xff]
      %v3043 = vld [vmem:[%s234 + $0x151] sm:$0xff]
      %v3044 = vld [vmem:[%s234 + $0x159] sm:$0xff]
      %v3045 = vld [vmem:[%s234 + $0x169] sm:$0xff]
      %v3046 = vld [vmem:[%s234 + $0x171] sm:$0xff]
      %3079 = vrot.lane.b32.xlu0 %v3015, 16
      %v3080 = vpop.permute.xlu0 %3079
      %3081 = vrot.lane.b32.xlu0 %v3016, 16
      %v3082 = vpop.permute.xlu0 %3081
      %3083 = vrot.lane.b32.xlu0 %v3017, 16
      %v3084 = vpop.permute.xlu0 %3083
      %3085 = vrot.lane.b32.xlu0 %v3018, 16
      %v3086 = vpop.permute.xlu0 %3085
      %3087 = vrot.lane.b32.xlu0 %v3019, 16
      %v3088 = vpop.permute.xlu0 %3087
      %3089 = vrot.lane.b32.xlu0 %v3020, 16
      %v3090 = vpop.permute.xlu0 %3089
      %3091 = vrot.lane.b32.xlu0 %v3021, 16
      %v3092 = vpop.permute.xlu0 %3091
      %3093 = vrot.lane.b32.xlu0 %v3022, 16
      %v3094 = vpop.permute.xlu0 %3093
      %3095 = vrot.lane.b32.xlu0 %v3023, 16
      %v3096 = vpop.permute.xlu0 %3095
      %3097 = vrot.lane.b32.xlu0 %v3024, 16
      %v3098 = vpop.permute.xlu0 %3097
      %3099 = vrot.lane.b32.xlu0 %v3025, 16
      %v3100 = vpop.permute.xlu0 %3099
      %3101 = vrot.lane.b32.xlu0 %v3026, 16
      %v3102 = vpop.permute.xlu0 %3101
      %3103 = vrot.lane.b32.xlu0 %v3027, 16
      %v3104 = vpop.permute.xlu0 %3103
      %3105 = vrot.lane.b32.xlu0 %v3028, 16
      %v3106 = vpop.permute.xlu0 %3105
      %3107 = vrot.lane.b32.xlu0 %v3029, 16
      %v3108 = vpop.permute.xlu0 %3107
      %3109 = vrot.lane.b32.xlu0 %v3030, 16
      %v3110 = vpop.permute.xlu0 %3109
      %3111 = vrot.lane.b32.xlu0 %v3031, 16
      %v3112 = vpop.permute.xlu0 %3111
      %3113 = vrot.lane.b32.xlu0 %v3032, 16
      %v3114 = vpop.permute.xlu0 %3113
      %3115 = vrot.lane.b32.xlu0 %v3033, 16
      %v3116 = vpop.permute.xlu0 %3115
      %3117 = vrot.lane.b32.xlu0 %v3034, 16
      %v3118 = vpop.permute.xlu0 %3117
      %3119 = vrot.lane.b32.xlu0 %v3035, 16
      %v3120 = vpop.permute.xlu0 %3119
      %3121 = vrot.lane.b32.xlu0 %v3036, 16
      %v3122 = vpop.permute.xlu0 %3121
      %3123 = vrot.lane.b32.xlu0 %v3037, 16
      %v3124 = vpop.permute.xlu0 %3123
      %3125 = vrot.lane.b32.xlu0 %v3038, 16
      %v3126 = vpop.permute.xlu0 %3125
      %3127 = vrot.lane.b32.xlu0 %v3039, 16
      %v3128 = vpop.permute.xlu0 %3127
      %3129 = vrot.lane.b32.xlu0 %v3040, 16
      %v3130 = vpop.permute.xlu0 %3129
      %3131 = vrot.lane.b32.xlu0 %v3041, 16
      %v3132 = vpop.permute.xlu0 %3131
      %3133 = vrot.lane.b32.xlu0 %v3042, 16
      %v3134 = vpop.permute.xlu0 %3133
      %3135 = vrot.lane.b32.xlu0 %v3043, 16
      %v3136 = vpop.permute.xlu0 %3135
      %3137 = vrot.lane.b32.xlu0 %v3044, 16
      %v3138 = vpop.permute.xlu0 %3137
      %3139 = vrot.lane.b32.xlu0 %v3045, 16
      %v3140 = vpop.permute.xlu0 %3139
      %3141 = vrot.lane.b32.xlu0 %v3046, 16
      %v3142 = vpop.permute.xlu0 %3141
      %3175 = vst.msk [vmem:[#allocation3] sm:$0xff] %vm1135, %v3080
      %3176 = vst.msk [vmem:[#allocation3 + $0x8] sm:$0xff] %vm1135, %v3082
      %3177 = vst.msk [vmem:[#allocation3 + $0x10] sm:$0xff] %vm1135, %v3084
      %3178 = vst.msk [vmem:[#allocation3 + $0x18] sm:$0xff] %vm1135, %v3086
      %3179 = vst.msk [vmem:[#allocation3 + $0x20] sm:$0xff] %vm1135, %v3088
      %3180 = vst.msk [vmem:[#allocation3 + $0x28] sm:$0xff] %vm1135, %v3090
      %3181 = vst.msk [vmem:[#allocation3 + $0x30] sm:$0xff] %vm1135, %v3092
      %3182 = vst.msk [vmem:[#allocation3 + $0x38] sm:$0xff] %vm1135, %v3094
      %3183 = vst.msk [vmem:[#allocation3 + $0x40] sm:$0xff] %vm1135, %v3096
      %3184 = vst.msk [vmem:[#allocation3 + $0x48] sm:$0xff] %vm1135, %v3098
      %3185 = vst.msk [vmem:[#allocation3 + $0x50] sm:$0xff] %vm1135, %v3100
      %3186 = vst.msk [vmem:[#allocation3 + $0x58] sm:$0xff] %vm1135, %v3102
      %3187 = vst.msk [vmem:[#allocation3 + $0x60] sm:$0xff] %vm1135, %v3104
      %3188 = vst.msk [vmem:[#allocation3 + $0x68] sm:$0xff] %vm1135, %v3106
      %3189 = vst.msk [vmem:[#allocation3 + $0x70] sm:$0xff] %vm1135, %v3108
      %3190 = vst.msk [vmem:[#allocation3 + $0x78] sm:$0xff] %vm1135, %v3110
      %3191 = vst.msk [vmem:[#allocation3 + $0x80] sm:$0xff] %vm1135, %v3112
      %3192 = vst.msk [vmem:[#allocation3 + $0x88] sm:$0xff] %vm1135, %v3114
      %3193 = vst.msk [vmem:[#allocation3 + $0x90] sm:$0xff] %vm1135, %v3116
      %3194 = vst.msk [vmem:[#allocation3 + $0x98] sm:$0xff] %vm1135, %v3118
      %3195 = vst.msk [vmem:[#allocation3 + $0xa0] sm:$0xff] %vm1135, %v3120
      %3196 = vst.msk [vmem:[#allocation3 + $0xa8] sm:$0xff] %vm1135, %v3122
      %3197 = vst.msk [vmem:[#allocation3 + $0xb0] sm:$0xff] %vm1135, %v3124
      %3198 = vst.msk [vmem:[#allocation3 + $0xb8] sm:$0xff] %vm1135, %v3126
      %3199 = vst.msk [vmem:[#allocation3 + $0xc0] sm:$0xff] %vm1135, %v3128
      %3200 = vst.msk [vmem:[#allocation3 + $0xc8] sm:$0xff] %vm1135, %v3130
      %3201 = vst.msk [vmem:[#allocation3 + $0xd0] sm:$0xff] %vm1135, %v3132
      %3202 = vst.msk [vmem:[#allocation3 + $0xd8] sm:$0xff] %vm1135, %v3134
      %3203 = vst.msk [vmem:[#allocation3 + $0xe0] sm:$0xff] %vm1135, %v3136
      %3204 = vst.msk [vmem:[#allocation3 + $0xe8] sm:$0xff] %vm1135, %v3138
      %3205 = vst.msk [vmem:[#allocation3 + $0xf0] sm:$0xff] %vm1135, %v3140
      %3206 = vst.msk [vmem:[#allocation3 + $0xf8] sm:$0xff] %vm1135, %v3142
      %v3207 = vld [vmem:[%s234 + $0x2] sm:$0xff]
      %v3208 = vld [vmem:[%s234 + $0xa] sm:$0xff]
      %v3209 = vld [vmem:[%s234 + $0x1a] sm:$0xff]
      %v3210 = vld [vmem:[%s234 + $0x22] sm:$0xff]
      %v3211 = vld [vmem:[%s234 + $0x32] sm:$0xff]
      %v3212 = vld [vmem:[%s234 + $0x3a] sm:$0xff]
      %v3213 = vld [vmem:[%s234 + $0x4a] sm:$0xff]
      %v3214 = vld [vmem:[%s234 + $0x52] sm:$0xff]
      %v3215 = vld [vmem:[%s234 + $0x62] sm:$0xff]
      %v3216 = vld [vmem:[%s234 + $0x6a] sm:$0xff]
      %v3217 = vld [vmem:[%s234 + $0x7a] sm:$0xff]
      %v3218 = vld [vmem:[%s234 + $0x82] sm:$0xff]
      %v3219 = vld [vmem:[%s234 + $0x92] sm:$0xff]
      %v3220 = vld [vmem:[%s234 + $0x9a] sm:$0xff]
      %v3221 = vld [vmem:[%s234 + $0xaa] sm:$0xff]
      %v3222 = vld [vmem:[%s234 + $0xb2] sm:$0xff]
      %v3223 = vld [vmem:[%s234 + $0xc2] sm:$0xff]
      %v3224 = vld [vmem:[%s234 + $0xca] sm:$0xff]
      %v3225 = vld [vmem:[%s234 + $0xda] sm:$0xff]
      %v3226 = vld [vmem:[%s234 + $0xe2] sm:$0xff]
      %v3227 = vld [vmem:[%s234 + $0xf2] sm:$0xff]
      %v3228 = vld [vmem:[%s234 + $0xfa] sm:$0xff]
      %v3229 = vld [vmem:[%s234 + $0x10a] sm:$0xff]
      %v3230 = vld [vmem:[%s234 + $0x112] sm:$0xff]
      %v3231 = vld [vmem:[%s234 + $0x122] sm:$0xff]
      %v3232 = vld [vmem:[%s234 + $0x12a] sm:$0xff]
      %v3233 = vld [vmem:[%s234 + $0x13a] sm:$0xff]
      %v3234 = vld [vmem:[%s234 + $0x142] sm:$0xff]
      %v3235 = vld [vmem:[%s234 + $0x152] sm:$0xff]
      %v3236 = vld [vmem:[%s234 + $0x15a] sm:$0xff]
      %v3237 = vld [vmem:[%s234 + $0x16a] sm:$0xff]
      %v3238 = vld [vmem:[%s234 + $0x172] sm:$0xff]
      %3271 = vrot.lane.b32.xlu0 %v3207, 20
      %v3272 = vpop.permute.xlu0 %3271
      %3273 = vrot.lane.b32.xlu0 %v3208, 20
      %v3274 = vpop.permute.xlu0 %3273
      %3275 = vrot.lane.b32.xlu0 %v3209, 20
      %v3276 = vpop.permute.xlu0 %3275
      %3277 = vrot.lane.b32.xlu0 %v3210, 20
      %v3278 = vpop.permute.xlu0 %3277
      %3279 = vrot.lane.b32.xlu0 %v3211, 20
      %v3280 = vpop.permute.xlu0 %3279
      %3281 = vrot.lane.b32.xlu0 %v3212, 20
      %v3282 = vpop.permute.xlu0 %3281
      %3283 = vrot.lane.b32.xlu0 %v3213, 20
      %v3284 = vpop.permute.xlu0 %3283
      %3285 = vrot.lane.b32.xlu0 %v3214, 20
      %v3286 = vpop.permute.xlu0 %3285
      %3287 = vrot.lane.b32.xlu0 %v3215, 20
      %v3288 = vpop.permute.xlu0 %3287
      %3289 = vrot.lane.b32.xlu0 %v3216, 20
      %v3290 = vpop.permute.xlu0 %3289
      %3291 = vrot.lane.b32.xlu0 %v3217, 20
      %v3292 = vpop.permute.xlu0 %3291
      %3293 = vrot.lane.b32.xlu0 %v3218, 20
      %v3294 = vpop.permute.xlu0 %3293
      %3295 = vrot.lane.b32.xlu0 %v3219, 20
      %v3296 = vpop.permute.xlu0 %3295
      %3297 = vrot.lane.b32.xlu0 %v3220, 20
      %v3298 = vpop.permute.xlu0 %3297
      %3299 = vrot.lane.b32.xlu0 %v3221, 20
      %v3300 = vpop.permute.xlu0 %3299
      %3301 = vrot.lane.b32.xlu0 %v3222, 20
      %v3302 = vpop.permute.xlu0 %3301
      %3303 = vrot.lane.b32.xlu0 %v3223, 20
      %v3304 = vpop.permute.xlu0 %3303
      %3305 = vrot.lane.b32.xlu0 %v3224, 20
      %v3306 = vpop.permute.xlu0 %3305
      %3307 = vrot.lane.b32.xlu0 %v3225, 20
      %v3308 = vpop.permute.xlu0 %3307
      %3309 = vrot.lane.b32.xlu0 %v3226, 20
      %v3310 = vpop.permute.xlu0 %3309
      %3311 = vrot.lane.b32.xlu0 %v3227, 20
      %v3312 = vpop.permute.xlu0 %3311
      %3313 = vrot.lane.b32.xlu0 %v3228, 20
      %v3314 = vpop.permute.xlu0 %3313
      %3315 = vrot.lane.b32.xlu0 %v3229, 20
      %v3316 = vpop.permute.xlu0 %3315
      %3317 = vrot.lane.b32.xlu0 %v3230, 20
      %v3318 = vpop.permute.xlu0 %3317
      %3319 = vrot.lane.b32.xlu0 %v3231, 20
      %v3320 = vpop.permute.xlu0 %3319
      %3321 = vrot.lane.b32.xlu0 %v3232, 20
      %v3322 = vpop.permute.xlu0 %3321
      %3323 = vrot.lane.b32.xlu0 %v3233, 20
      %v3324 = vpop.permute.xlu0 %3323
      %3325 = vrot.lane.b32.xlu0 %v3234, 20
      %v3326 = vpop.permute.xlu0 %3325
      %3327 = vrot.lane.b32.xlu0 %v3235, 20
      %v3328 = vpop.permute.xlu0 %3327
      %3329 = vrot.lane.b32.xlu0 %v3236, 20
      %v3330 = vpop.permute.xlu0 %3329
      %3331 = vrot.lane.b32.xlu0 %v3237, 20
      %v3332 = vpop.permute.xlu0 %3331
      %3333 = vrot.lane.b32.xlu0 %v3238, 20
      %v3334 = vpop.permute.xlu0 %3333
      %3367 = vst.msk [vmem:[#allocation3] sm:$0xff] %vm1328, %v3272
      %3368 = vst.msk [vmem:[#allocation3 + $0x8] sm:$0xff] %vm1328, %v3274
      %3369 = vst.msk [vmem:[#allocation3 + $0x10] sm:$0xff] %vm1328, %v3276
      %3370 = vst.msk [vmem:[#allocation3 + $0x18] sm:$0xff] %vm1328, %v3278
      %3371 = vst.msk [vmem:[#allocation3 + $0x20] sm:$0xff] %vm1328, %v3280
      %3372 = vst.msk [vmem:[#allocation3 + $0x28] sm:$0xff] %vm1328, %v3282
      %3373 = vst.msk [vmem:[#allocation3 + $0x30] sm:$0xff] %vm1328, %v3284
      %3374 = vst.msk [vmem:[#allocation3 + $0x38] sm:$0xff] %vm1328, %v3286
      %3375 = vst.msk [vmem:[#allocation3 + $0x40] sm:$0xff] %vm1328, %v3288
      %3376 = vst.msk [vmem:[#allocation3 + $0x48] sm:$0xff] %vm1328, %v3290
      %3377 = vst.msk [vmem:[#allocation3 + $0x50] sm:$0xff] %vm1328, %v3292
      %3378 = vst.msk [vmem:[#allocation3 + $0x58] sm:$0xff] %vm1328, %v3294
      %3379 = vst.msk [vmem:[#allocation3 + $0x60] sm:$0xff] %vm1328, %v3296
      %3380 = vst.msk [vmem:[#allocation3 + $0x68] sm:$0xff] %vm1328, %v3298
      %3381 = vst.msk [vmem:[#allocation3 + $0x70] sm:$0xff] %vm1328, %v3300
      %3382 = vst.msk [vmem:[#allocation3 + $0x78] sm:$0xff] %vm1328, %v3302
      %3383 = vst.msk [vmem:[#allocation3 + $0x80] sm:$0xff] %vm1328, %v3304
      %3384 = vst.msk [vmem:[#allocation3 + $0x88] sm:$0xff] %vm1328, %v3306
      %3385 = vst.msk [vmem:[#allocation3 + $0x90] sm:$0xff] %vm1328, %v3308
      %3386 = vst.msk [vmem:[#allocation3 + $0x98] sm:$0xff] %vm1328, %v3310
      %3387 = vst.msk [vmem:[#allocation3 + $0xa0] sm:$0xff] %vm1328, %v3312
      %3388 = vst.msk [vmem:[#allocation3 + $0xa8] sm:$0xff] %vm1328, %v3314
      %3389 = vst.msk [vmem:[#allocation3 + $0xb0] sm:$0xff] %vm1328, %v3316
      %3390 = vst.msk [vmem:[#allocation3 + $0xb8] sm:$0xff] %vm1328, %v3318
      %3391 = vst.msk [vmem:[#allocation3 + $0xc0] sm:$0xff] %vm1328, %v3320
      %3392 = vst.msk [vmem:[#allocation3 + $0xc8] sm:$0xff] %vm1328, %v3322
      %3393 = vst.msk [vmem:[#allocation3 + $0xd0] sm:$0xff] %vm1328, %v3324
      %3394 = vst.msk [vmem:[#allocation3 + $0xd8] sm:$0xff] %vm1328, %v3326
      %3395 = vst.msk [vmem:[#allocation3 + $0xe0] sm:$0xff] %vm1328, %v3328
      %3396 = vst.msk [vmem:[#allocation3 + $0xe8] sm:$0xff] %vm1328, %v3330
      %3397 = vst.msk [vmem:[#allocation3 + $0xf0] sm:$0xff] %vm1328, %v3332
      %3398 = vst.msk [vmem:[#allocation3 + $0xf8] sm:$0xff] %vm1328, %v3334
      %v3399 = vld [vmem:[%s1361] sm:$0xff]
      %v3400 = vld [vmem:[%s1361 + $0x8] sm:$0xff]
      %v3401 = vld [vmem:[%s1361 + $0x18] sm:$0xff]
      %v3402 = vld [vmem:[%s1361 + $0x20] sm:$0xff]
      %v3403 = vld [vmem:[%s1361 + $0x30] sm:$0xff]
      %v3404 = vld [vmem:[%s1361 + $0x38] sm:$0xff]
      %v3405 = vld [vmem:[%s1361 + $0x48] sm:$0xff]
      %v3406 = vld [vmem:[%s1361 + $0x50] sm:$0xff]
      %v3407 = vld [vmem:[%s1361 + $0x60] sm:$0xff]
      %v3408 = vld [vmem:[%s1361 + $0x68] sm:$0xff]
      %v3409 = vld [vmem:[%s1361 + $0x78] sm:$0xff]
      %v3410 = vld [vmem:[%s1361 + $0x80] sm:$0xff]
      %v3411 = vld [vmem:[%s1361 + $0x90] sm:$0xff]
      %v3412 = vld [vmem:[%s1361 + $0x98] sm:$0xff]
      %v3413 = vld [vmem:[%s1361 + $0xa8] sm:$0xff]
      %v3414 = vld [vmem:[%s1361 + $0xb0] sm:$0xff]
      %v3415 = vld [vmem:[%s1361 + $0xc0] sm:$0xff]
      %v3416 = vld [vmem:[%s1361 + $0xc8] sm:$0xff]
      %v3417 = vld [vmem:[%s1361 + $0xd8] sm:$0xff]
      %v3418 = vld [vmem:[%s1361 + $0xe0] sm:$0xff]
      %v3419 = vld [vmem:[%s1361 + $0xf0] sm:$0xff]
      %v3420 = vld [vmem:[%s1361 + $0xf8] sm:$0xff]
      %v3421 = vld [vmem:[%s1361 + $0x108] sm:$0xff]
      %v3422 = vld [vmem:[%s1361 + $0x110] sm:$0xff]
      %v3423 = vld [vmem:[%s1361 + $0x120] sm:$0xff]
      %v3424 = vld [vmem:[%s1361 + $0x128] sm:$0xff]
      %v3425 = vld [vmem:[%s1361 + $0x138] sm:$0xff]
      %v3426 = vld [vmem:[%s1361 + $0x140] sm:$0xff]
      %v3427 = vld [vmem:[%s1361 + $0x150] sm:$0xff]
      %v3428 = vld [vmem:[%s1361 + $0x158] sm:$0xff]
      %v3429 = vld [vmem:[%s1361 + $0x168] sm:$0xff]
      %v3430 = vld [vmem:[%s1361 + $0x170] sm:$0xff]
      %3463 = vrot.lane.b32.xlu0 %v3399, 24
      %v3464 = vpop.permute.xlu0 %3463
      %3465 = vrot.lane.b32.xlu0 %v3400, 24
      %v3466 = vpop.permute.xlu0 %3465
      %3467 = vrot.lane.b32.xlu0 %v3401, 24
      %v3468 = vpop.permute.xlu0 %3467
      %3469 = vrot.lane.b32.xlu0 %v3402, 24
      %v3470 = vpop.permute.xlu0 %3469
      %3471 = vrot.lane.b32.xlu0 %v3403, 24
      %v3472 = vpop.permute.xlu0 %3471
      %3473 = vrot.lane.b32.xlu0 %v3404, 24
      %v3474 = vpop.permute.xlu0 %3473
      %3475 = vrot.lane.b32.xlu0 %v3405, 24
      %v3476 = vpop.permute.xlu0 %3475
      %3477 = vrot.lane.b32.xlu0 %v3406, 24
      %v3478 = vpop.permute.xlu0 %3477
      %3479 = vrot.lane.b32.xlu0 %v3407, 24
      %v3480 = vpop.permute.xlu0 %3479
      %3481 = vrot.lane.b32.xlu0 %v3408, 24
      %v3482 = vpop.permute.xlu0 %3481
      %3483 = vrot.lane.b32.xlu0 %v3409, 24
      %v3484 = vpop.permute.xlu0 %3483
      %3485 = vrot.lane.b32.xlu0 %v3410, 24
      %v3486 = vpop.permute.xlu0 %3485
      %3487 = vrot.lane.b32.xlu0 %v3411, 24
      %v3488 = vpop.permute.xlu0 %3487
      %3489 = vrot.lane.b32.xlu0 %v3412, 24
      %v3490 = vpop.permute.xlu0 %3489
      %3491 = vrot.lane.b32.xlu0 %v3413, 24
      %v3492 = vpop.permute.xlu0 %3491
      %3493 = vrot.lane.b32.xlu0 %v3414, 24
      %v3494 = vpop.permute.xlu0 %3493
      %3495 = vrot.lane.b32.xlu0 %v3415, 24
      %v3496 = vpop.permute.xlu0 %3495
      %3497 = vrot.lane.b32.xlu0 %v3416, 24
      %v3498 = vpop.permute.xlu0 %3497
      %3499 = vrot.lane.b32.xlu0 %v3417, 24
      %v3500 = vpop.permute.xlu0 %3499
      %3501 = vrot.lane.b32.xlu0 %v3418, 24
      %v3502 = vpop.permute.xlu0 %3501
      %3503 = vrot.lane.b32.xlu0 %v3419, 24
      %v3504 = vpop.permute.xlu0 %3503
      %3505 = vrot.lane.b32.xlu0 %v3420, 24
      %v3506 = vpop.permute.xlu0 %3505
      %3507 = vrot.lane.b32.xlu0 %v3421, 24
      %v3508 = vpop.permute.xlu0 %3507
      %3509 = vrot.lane.b32.xlu0 %v3422, 24
      %v3510 = vpop.permute.xlu0 %3509
      %3511 = vrot.lane.b32.xlu0 %v3423, 24
      %v3512 = vpop.permute.xlu0 %3511
      %3513 = vrot.lane.b32.xlu0 %v3424, 24
      %v3514 = vpop.permute.xlu0 %3513
      %3515 = vrot.lane.b32.xlu0 %v3425, 24
      %v3516 = vpop.permute.xlu0 %3515
      %3517 = vrot.lane.b32.xlu0 %v3426, 24
      %v3518 = vpop.permute.xlu0 %3517
      %3519 = vrot.lane.b32.xlu0 %v3427, 24
      %v3520 = vpop.permute.xlu0 %3519
      %3521 = vrot.lane.b32.xlu0 %v3428, 24
      %v3522 = vpop.permute.xlu0 %3521
      %3523 = vrot.lane.b32.xlu0 %v3429, 24
      %v3524 = vpop.permute.xlu0 %3523
      %3525 = vrot.lane.b32.xlu0 %v3430, 24
      %v3526 = vpop.permute.xlu0 %3525
      %3559 = vst.msk [vmem:[#allocation3] sm:$0xff] %vm1522, %v3464
      %3560 = vst.msk [vmem:[#allocation3 + $0x8] sm:$0xff] %vm1522, %v3466
      %3561 = vst.msk [vmem:[#allocation3 + $0x10] sm:$0xff] %vm1522, %v3468
      %3562 = vst.msk [vmem:[#allocation3 + $0x18] sm:$0xff] %vm1522, %v3470
      %3563 = vst.msk [vmem:[#allocation3 + $0x20] sm:$0xff] %vm1522, %v3472
      %3564 = vst.msk [vmem:[#allocation3 + $0x28] sm:$0xff] %vm1522, %v3474
      %3565 = vst.msk [vmem:[#allocation3 + $0x30] sm:$0xff] %vm1522, %v3476
      %3566 = vst.msk [vmem:[#allocation3 + $0x38] sm:$0xff] %vm1522, %v3478
      %3567 = vst.msk [vmem:[#allocation3 + $0x40] sm:$0xff] %vm1522, %v3480
      %3568 = vst.msk [vmem:[#allocation3 + $0x48] sm:$0xff] %vm1522, %v3482
      %3569 = vst.msk [vmem:[#allocation3 + $0x50] sm:$0xff] %vm1522, %v3484
      %3570 = vst.msk [vmem:[#allocation3 + $0x58] sm:$0xff] %vm1522, %v3486
      %3571 = vst.msk [vmem:[#allocation3 + $0x60] sm:$0xff] %vm1522, %v3488
      %3572 = vst.msk [vmem:[#allocation3 + $0x68] sm:$0xff] %vm1522, %v3490
      %3573 = vst.msk [vmem:[#allocation3 + $0x70] sm:$0xff] %vm1522, %v3492
      %3574 = vst.msk [vmem:[#allocation3 + $0x78] sm:$0xff] %vm1522, %v3494
      %3575 = vst.msk [vmem:[#allocation3 + $0x80] sm:$0xff] %vm1522, %v3496
      %3576 = vst.msk [vmem:[#allocation3 + $0x88] sm:$0xff] %vm1522, %v3498
      %3577 = vst.msk [vmem:[#allocation3 + $0x90] sm:$0xff] %vm1522, %v3500
      %3578 = vst.msk [vmem:[#allocation3 + $0x98] sm:$0xff] %vm1522, %v3502
      %3579 = vst.msk [vmem:[#allocation3 + $0xa0] sm:$0xff] %vm1522, %v3504
      %3580 = vst.msk [vmem:[#allocation3 + $0xa8] sm:$0xff] %vm1522, %v3506
      %3581 = vst.msk [vmem:[#allocation3 + $0xb0] sm:$0xff] %vm1522, %v3508
      %3582 = vst.msk [vmem:[#allocation3 + $0xb8] sm:$0xff] %vm1522, %v3510
      %3583 = vst.msk [vmem:[#allocation3 + $0xc0] sm:$0xff] %vm1522, %v3512
      %3584 = vst.msk [vmem:[#allocation3 + $0xc8] sm:$0xff] %vm1522, %v3514
      %3585 = vst.msk [vmem:[#allocation3 + $0xd0] sm:$0xff] %vm1522, %v3516
      %3586 = vst.msk [vmem:[#allocation3 + $0xd8] sm:$0xff] %vm1522, %v3518
      %3587 = vst.msk [vmem:[#allocation3 + $0xe0] sm:$0xff] %vm1522, %v3520
      %3588 = vst.msk [vmem:[#allocation3 + $0xe8] sm:$0xff] %vm1522, %v3522
      %3589 = vst.msk [vmem:[#allocation3 + $0xf0] sm:$0xff] %vm1522, %v3524
      %3590 = vst.msk [vmem:[#allocation3 + $0xf8] sm:$0xff] %vm1522, %v3526
      %v3591 = vld [vmem:[%s1361 + $0x1] sm:$0xff]
      %v3592 = vld [vmem:[%s1361 + $0x9] sm:$0xff]
      %v3593 = vld [vmem:[%s1361 + $0x19] sm:$0xff]
      %v3594 = vld [vmem:[%s1361 + $0x21] sm:$0xff]
      %v3595 = vld [vmem:[%s1361 + $0x31] sm:$0xff]
      %v3596 = vld [vmem:[%s1361 + $0x39] sm:$0xff]
      %v3597 = vld [vmem:[%s1361 + $0x49] sm:$0xff]
      %v3598 = vld [vmem:[%s1361 + $0x51] sm:$0xff]
      %v3599 = vld [vmem:[%s1361 + $0x61] sm:$0xff]
      %v3600 = vld [vmem:[%s1361 + $0x69] sm:$0xff]
      %v3601 = vld [vmem:[%s1361 + $0x79] sm:$0xff]
      %v3602 = vld [vmem:[%s1361 + $0x81] sm:$0xff]
      %v3603 = vld [vmem:[%s1361 + $0x91] sm:$0xff]
      %v3604 = vld [vmem:[%s1361 + $0x99] sm:$0xff]
      %v3605 = vld [vmem:[%s1361 + $0xa9] sm:$0xff]
      %v3606 = vld [vmem:[%s1361 + $0xb1] sm:$0xff]
      %v3607 = vld [vmem:[%s1361 + $0xc1] sm:$0xff]
      %v3608 = vld [vmem:[%s1361 + $0xc9] sm:$0xff]
      %v3609 = vld [vmem:[%s1361 + $0xd9] sm:$0xff]
      %v3610 = vld [vmem:[%s1361 + $0xe1] sm:$0xff]
      %v3611 = vld [vmem:[%s1361 + $0xf1] sm:$0xff]
      %v3612 = vld [vmem:[%s1361 + $0xf9] sm:$0xff]
      %v3613 = vld [vmem:[%s1361 + $0x109] sm:$0xff]
      %v3614 = vld [vmem:[%s1361 + $0x111] sm:$0xff]
      %v3615 = vld [vmem:[%s1361 + $0x121] sm:$0xff]
      %v3616 = vld [vmem:[%s1361 + $0x129] sm:$0xff]
      %v3617 = vld [vmem:[%s1361 + $0x139] sm:$0xff]
      %v3618 = vld [vmem:[%s1361 + $0x141] sm:$0xff]
      %v3619 = vld [vmem:[%s1361 + $0x151] sm:$0xff]
      %v3620 = vld [vmem:[%s1361 + $0x159] sm:$0xff]
      %v3621 = vld [vmem:[%s1361 + $0x169] sm:$0xff]
      %v3622 = vld [vmem:[%s1361 + $0x171] sm:$0xff]
      %3655 = vrot.lane.b32.xlu0 %v3591, 28
      %v3656 = vpop.permute.xlu0 %3655
      %3657 = vrot.lane.b32.xlu0 %v3592, 28
      %v3658 = vpop.permute.xlu0 %3657
      %3659 = vrot.lane.b32.xlu0 %v3593, 28
      %v3660 = vpop.permute.xlu0 %3659
      %3661 = vrot.lane.b32.xlu0 %v3594, 28
      %v3662 = vpop.permute.xlu0 %3661
      %3663 = vrot.lane.b32.xlu0 %v3595, 28
      %v3664 = vpop.permute.xlu0 %3663
      %3665 = vrot.lane.b32.xlu0 %v3596, 28
      %v3666 = vpop.permute.xlu0 %3665
      %3667 = vrot.lane.b32.xlu0 %v3597, 28
      %v3668 = vpop.permute.xlu0 %3667
      %3669 = vrot.lane.b32.xlu0 %v3598, 28
      %v3670 = vpop.permute.xlu0 %3669
      %3671 = vrot.lane.b32.xlu0 %v3599, 28
      %v3672 = vpop.permute.xlu0 %3671
      %3673 = vrot.lane.b32.xlu0 %v3600, 28
      %v3674 = vpop.permute.xlu0 %3673
      %3675 = vrot.lane.b32.xlu0 %v3601, 28
      %v3676 = vpop.permute.xlu0 %3675
      %3677 = vrot.lane.b32.xlu0 %v3602, 28
      %v3678 = vpop.permute.xlu0 %3677
      %3679 = vrot.lane.b32.xlu0 %v3603, 28
      %v3680 = vpop.permute.xlu0 %3679
      %3681 = vrot.lane.b32.xlu0 %v3604, 28
      %v3682 = vpop.permute.xlu0 %3681
      %3683 = vrot.lane.b32.xlu0 %v3605, 28
      %v3684 = vpop.permute.xlu0 %3683
      %3685 = vrot.lane.b32.xlu0 %v3606, 28
      %v3686 = vpop.permute.xlu0 %3685
      %3687 = vrot.lane.b32.xlu0 %v3607, 28
      %v3688 = vpop.permute.xlu0 %3687
      %3689 = vrot.lane.b32.xlu0 %v3608, 28
      %v3690 = vpop.permute.xlu0 %3689
      %3691 = vrot.lane.b32.xlu0 %v3609, 28
      %v3692 = vpop.permute.xlu0 %3691
      %3693 = vrot.lane.b32.xlu0 %v3610, 28
      %v3694 = vpop.permute.xlu0 %3693
      %3695 = vrot.lane.b32.xlu0 %v3611, 28
      %v3696 = vpop.permute.xlu0 %3695
      %3697 = vrot.lane.b32.xlu0 %v3612, 28
      %v3698 = vpop.permute.xlu0 %3697
      %3699 = vrot.lane.b32.xlu0 %v3613, 28
      %v3700 = vpop.permute.xlu0 %3699
      %3701 = vrot.lane.b32.xlu0 %v3614, 28
      %v3702 = vpop.permute.xlu0 %3701
      %3703 = vrot.lane.b32.xlu0 %v3615, 28
      %v3704 = vpop.permute.xlu0 %3703
      %3705 = vrot.lane.b32.xlu0 %v3616, 28
      %v3706 = vpop.permute.xlu0 %3705
      %3707 = vrot.lane.b32.xlu0 %v3617, 28
      %v3708 = vpop.permute.xlu0 %3707
      %3709 = vrot.lane.b32.xlu0 %v3618, 28
      %v3710 = vpop.permute.xlu0 %3709
      %3711 = vrot.lane.b32.xlu0 %v3619, 28
      %v3712 = vpop.permute.xlu0 %3711
      %3713 = vrot.lane.b32.xlu0 %v3620, 28
      %v3714 = vpop.permute.xlu0 %3713
      %3715 = vrot.lane.b32.xlu0 %v3621, 28
      %v3716 = vpop.permute.xlu0 %3715
      %3717 = vrot.lane.b32.xlu0 %v3622, 28
      %v3718 = vpop.permute.xlu0 %3717
      %3751 = vst.msk [vmem:[#allocation3] sm:$0xff] %vm1715, %v3656
      %3752 = vst.msk [vmem:[#allocation3 + $0x8] sm:$0xff] %vm1715, %v3658
      %3753 = vst.msk [vmem:[#allocation3 + $0x10] sm:$0xff] %vm1715, %v3660
      %3754 = vst.msk [vmem:[#allocation3 + $0x18] sm:$0xff] %vm1715, %v3662
      %3755 = vst.msk [vmem:[#allocation3 + $0x20] sm:$0xff] %vm1715, %v3664
      %3756 = vst.msk [vmem:[#allocation3 + $0x28] sm:$0xff] %vm1715, %v3666
      %3757 = vst.msk [vmem:[#allocation3 + $0x30] sm:$0xff] %vm1715, %v3668
      %3758 = vst.msk [vmem:[#allocation3 + $0x38] sm:$0xff] %vm1715, %v3670
      %3759 = vst.msk [vmem:[#allocation3 + $0x40] sm:$0xff] %vm1715, %v3672
      %3760 = vst.msk [vmem:[#allocation3 + $0x48] sm:$0xff] %vm1715, %v3674
      %3761 = vst.msk [vmem:[#allocation3 + $0x50] sm:$0xff] %vm1715, %v3676
      %3762 = vst.msk [vmem:[#allocation3 + $0x58] sm:$0xff] %vm1715, %v3678
      %3763 = vst.msk [vmem:[#allocation3 + $0x60] sm:$0xff] %vm1715, %v3680
      %3764 = vst.msk [vmem:[#allocation3 + $0x68] sm:$0xff] %vm1715, %v3682
      %3765 = vst.msk [vmem:[#allocation3 + $0x70] sm:$0xff] %vm1715, %v3684
      %3766 = vst.msk [vmem:[#allocation3 + $0x78] sm:$0xff] %vm1715, %v3686
      %3767 = vst.msk [vmem:[#allocation3 + $0x80] sm:$0xff] %vm1715, %v3688
      %3768 = vst.msk [vmem:[#allocation3 + $0x88] sm:$0xff] %vm1715, %v3690
      %3769 = vst.msk [vmem:[#allocation3 + $0x90] sm:$0xff] %vm1715, %v3692
      %3770 = vst.msk [vmem:[#allocation3 + $0x98] sm:$0xff] %vm1715, %v3694
      %3771 = vst.msk [vmem:[#allocation3 + $0xa0] sm:$0xff] %vm1715, %v3696
      %3772 = vst.msk [vmem:[#allocation3 + $0xa8] sm:$0xff] %vm1715, %v3698
      %3773 = vst.msk [vmem:[#allocation3 + $0xb0] sm:$0xff] %vm1715, %v3700
      %3774 = vst.msk [vmem:[#allocation3 + $0xb8] sm:$0xff] %vm1715, %v3702
      %3775 = vst.msk [vmem:[#allocation3 + $0xc0] sm:$0xff] %vm1715, %v3704
      %3776 = vst.msk [vmem:[#allocation3 + $0xc8] sm:$0xff] %vm1715, %v3706
      %3777 = vst.msk [vmem:[#allocation3 + $0xd0] sm:$0xff] %vm1715, %v3708
      %3778 = vst.msk [vmem:[#allocation3 + $0xd8] sm:$0xff] %vm1715, %v3710
      %3779 = vst.msk [vmem:[#allocation3 + $0xe0] sm:$0xff] %vm1715, %v3712
      %3780 = vst.msk [vmem:[#allocation3 + $0xe8] sm:$0xff] %vm1715, %v3714
      %3781 = vst.msk [vmem:[#allocation3 + $0xf0] sm:$0xff] %vm1715, %v3716
      %3782 = vst.msk [vmem:[#allocation3 + $0xf8] sm:$0xff] %vm1715, %v3718
      %v3783 = vld [vmem:[%s1361 + $0x2] sm:$0xff]
      %v3784 = vld [vmem:[%s1361 + $0xa] sm:$0xff]
      %v3785 = vld [vmem:[%s1361 + $0x1a] sm:$0xff]
      %v3786 = vld [vmem:[%s1361 + $0x22] sm:$0xff]
      %v3787 = vld [vmem:[%s1361 + $0x32] sm:$0xff]
      %v3788 = vld [vmem:[%s1361 + $0x3a] sm:$0xff]
      %v3789 = vld [vmem:[%s1361 + $0x4a] sm:$0xff]
      %v3790 = vld [vmem:[%s1361 + $0x52] sm:$0xff]
      %v3791 = vld [vmem:[%s1361 + $0x62] sm:$0xff]
      %v3792 = vld [vmem:[%s1361 + $0x6a] sm:$0xff]
      %v3793 = vld [vmem:[%s1361 + $0x7a] sm:$0xff]
      %v3794 = vld [vmem:[%s1361 + $0x82] sm:$0xff]
      %v3795 = vld [vmem:[%s1361 + $0x92] sm:$0xff]
      %v3796 = vld [vmem:[%s1361 + $0x9a] sm:$0xff]
      %v3797 = vld [vmem:[%s1361 + $0xaa] sm:$0xff]
      %v3798 = vld [vmem:[%s1361 + $0xb2] sm:$0xff]
      %v3799 = vld [vmem:[%s1361 + $0xc2] sm:$0xff]
      %v3800 = vld [vmem:[%s1361 + $0xca] sm:$0xff]
      %v3801 = vld [vmem:[%s1361 + $0xda] sm:$0xff]
      %v3802 = vld [vmem:[%s1361 + $0xe2] sm:$0xff]
      %v3803 = vld [vmem:[%s1361 + $0xf2] sm:$0xff]
      %v3804 = vld [vmem:[%s1361 + $0xfa] sm:$0xff]
      %v3805 = vld [vmem:[%s1361 + $0x10a] sm:$0xff]
      %v3806 = vld [vmem:[%s1361 + $0x112] sm:$0xff]
      %v3807 = vld [vmem:[%s1361 + $0x122] sm:$0xff]
      %v3808 = vld [vmem:[%s1361 + $0x12a] sm:$0xff]
      %v3809 = vld [vmem:[%s1361 + $0x13a] sm:$0xff]
      %v3810 = vld [vmem:[%s1361 + $0x142] sm:$0xff]
      %v3811 = vld [vmem:[%s1361 + $0x152] sm:$0xff]
      %v3812 = vld [vmem:[%s1361 + $0x15a] sm:$0xff]
      %v3813 = vld [vmem:[%s1361 + $0x16a] sm:$0xff]
      %v3814 = vld [vmem:[%s1361 + $0x172] sm:$0xff]
      %3847 = vrot.lane.b32.xlu0 %v3783, 32
      %v3848 = vpop.permute.xlu0 %3847
      %3849 = vrot.lane.b32.xlu0 %v3784, 32
      %v3850 = vpop.permute.xlu0 %3849
      %3851 = vrot.lane.b32.xlu0 %v3785, 32
      %v3852 = vpop.permute.xlu0 %3851
      %3853 = vrot.lane.b32.xlu0 %v3786, 32
      %v3854 = vpop.permute.xlu0 %3853
      %3855 = vrot.lane.b32.xlu0 %v3787, 32
      %v3856 = vpop.permute.xlu0 %3855
      %3857 = vrot.lane.b32.xlu0 %v3788, 32
      %v3858 = vpop.permute.xlu0 %3857
      %3859 = vrot.lane.b32.xlu0 %v3789, 32
      %v3860 = vpop.permute.xlu0 %3859
      %3861 = vrot.lane.b32.xlu0 %v3790, 32
      %v3862 = vpop.permute.xlu0 %3861
      %3863 = vrot.lane.b32.xlu0 %v3791, 32
      %v3864 = vpop.permute.xlu0 %3863
      %3865 = vrot.lane.b32.xlu0 %v3792, 32
      %v3866 = vpop.permute.xlu0 %3865
      %3867 = vrot.lane.b32.xlu0 %v3793, 32
      %v3868 = vpop.permute.xlu0 %3867
      %3869 = vrot.lane.b32.xlu0 %v3794, 32
      %v3870 = vpop.permute.xlu0 %3869
      %3871 = vrot.lane.b32.xlu0 %v3795, 32
      %v3872 = vpop.permute.xlu0 %3871
      %3873 = vrot.lane.b32.xlu0 %v3796, 32
      %v3874 = vpop.permute.xlu0 %3873
      %3875 = vrot.lane.b32.xlu0 %v3797, 32
      %v3876 = vpop.permute.xlu0 %3875
      %3877 = vrot.lane.b32.xlu0 %v3798, 32
      %v3878 = vpop.permute.xlu0 %3877
      %3879 = vrot.lane.b32.xlu0 %v3799, 32
      %v3880 = vpop.permute.xlu0 %3879
      %3881 = vrot.lane.b32.xlu0 %v3800, 32
      %v3882 = vpop.permute.xlu0 %3881
      %3883 = vrot.lane.b32.xlu0 %v3801, 32
      %v3884 = vpop.permute.xlu0 %3883
      %3885 = vrot.lane.b32.xlu0 %v3802, 32
      %v3886 = vpop.permute.xlu0 %3885
      %3887 = vrot.lane.b32.xlu0 %v3803, 32
      %v3888 = vpop.permute.xlu0 %3887
      %3889 = vrot.lane.b32.xlu0 %v3804, 32
      %v3890 = vpop.permute.xlu0 %3889
      %3891 = vrot.lane.b32.xlu0 %v3805, 32
      %v3892 = vpop.permute.xlu0 %3891
      %3893 = vrot.lane.b32.xlu0 %v3806, 32
      %v3894 = vpop.permute.xlu0 %3893
      %3895 = vrot.lane.b32.xlu0 %v3807, 32
      %v3896 = vpop.permute.xlu0 %3895
      %3897 = vrot.lane.b32.xlu0 %v3808, 32
      %v3898 = vpop.permute.xlu0 %3897
      %3899 = vrot.lane.b32.xlu0 %v3809, 32
      %v3900 = vpop.permute.xlu0 %3899
      %3901 = vrot.lane.b32.xlu0 %v3810, 32
      %v3902 = vpop.permute.xlu0 %3901
      %3903 = vrot.lane.b32.xlu0 %v3811, 32
      %v3904 = vpop.permute.xlu0 %3903
      %3905 = vrot.lane.b32.xlu0 %v3812, 32
      %v3906 = vpop.permute.xlu0 %3905
      %3907 = vrot.lane.b32.xlu0 %v3813, 32
      %v3908 = vpop.permute.xlu0 %3907
      %3909 = vrot.lane.b32.xlu0 %v3814, 32
      %v3910 = vpop.permute.xlu0 %3909
      %3943 = vst.msk [vmem:[#allocation3] sm:$0xff] %vm1908, %v3848
      %3944 = vst.msk [vmem:[#allocation3 + $0x8] sm:$0xff] %vm1908, %v3850
      %3945 = vst.msk [vmem:[#allocation3 + $0x10] sm:$0xff] %vm1908, %v3852
      %3946 = vst.msk [vmem:[#allocation3 + $0x18] sm:$0xff] %vm1908, %v3854
      %3947 = vst.msk [vmem:[#allocation3 + $0x20] sm:$0xff] %vm1908, %v3856
      %3948 = vst.msk [vmem:[#allocation3 + $0x28] sm:$0xff] %vm1908, %v3858
      %3949 = vst.msk [vmem:[#allocation3 + $0x30] sm:$0xff] %vm1908, %v3860
      %3950 = vst.msk [vmem:[#allocation3 + $0x38] sm:$0xff] %vm1908, %v3862
      %3951 = vst.msk [vmem:[#allocation3 + $0x40] sm:$0xff] %vm1908, %v3864
      %3952 = vst.msk [vmem:[#allocation3 + $0x48] sm:$0xff] %vm1908, %v3866
      %3953 = vst.msk [vmem:[#allocation3 + $0x50] sm:$0xff] %vm1908, %v3868
      %3954 = vst.msk [vmem:[#allocation3 + $0x58] sm:$0xff] %vm1908, %v3870
      %3955 = vst.msk [vmem:[#allocation3 + $0x60] sm:$0xff] %vm1908, %v3872
      %3956 = vst.msk [vmem:[#allocation3 + $0x68] sm:$0xff] %vm1908, %v3874
      %3957 = vst.msk [vmem:[#allocation3 + $0x70] sm:$0xff] %vm1908, %v3876
      %3958 = vst.msk [vmem:[#allocation3 + $0x78] sm:$0xff] %vm1908, %v3878
      %3959 = vst.msk [vmem:[#allocation3 + $0x80] sm:$0xff] %vm1908, %v3880
      %3960 = vst.msk [vmem:[#allocation3 + $0x88] sm:$0xff] %vm1908, %v3882
      %3961 = vst.msk [vmem:[#allocation3 + $0x90] sm:$0xff] %vm1908, %v3884
      %3962 = vst.msk [vmem:[#allocation3 + $0x98] sm:$0xff] %vm1908, %v3886
      %3963 = vst.msk [vmem:[#allocation3 + $0xa0] sm:$0xff] %vm1908, %v3888
      %3964 = vst.msk [vmem:[#allocation3 + $0xa8] sm:$0xff] %vm1908, %v3890
      %3965 = vst.msk [vmem:[#allocation3 + $0xb0] sm:$0xff] %vm1908, %v3892
      %3966 = vst.msk [vmem:[#allocation3 + $0xb8] sm:$0xff] %vm1908, %v3894
      %3967 = vst.msk [vmem:[#allocation3 + $0xc0] sm:$0xff] %vm1908, %v3896
      %3968 = vst.msk [vmem:[#allocation3 + $0xc8] sm:$0xff] %vm1908, %v3898
      %3969 = vst.msk [vmem:[#allocation3 + $0xd0] sm:$0xff] %vm1908, %v3900
      %3970 = vst.msk [vmem:[#allocation3 + $0xd8] sm:$0xff] %vm1908, %v3902
      %3971 = vst.msk [vmem:[#allocation3 + $0xe0] sm:$0xff] %vm1908, %v3904
      %3972 = vst.msk [vmem:[#allocation3 + $0xe8] sm:$0xff] %vm1908, %v3906
      %3973 = vst.msk [vmem:[#allocation3 + $0xf0] sm:$0xff] %vm1908, %v3908
      %3974 = vst.msk [vmem:[#allocation3 + $0xf8] sm:$0xff] %vm1908, %v3910
      %v3975 = vld [vmem:[#allocation3] sm:$0xff]
      %v3976 = vld [vmem:[#allocation3 + $0x8] sm:$0xff]
      %v3977 = vld [vmem:[#allocation3 + $0x10] sm:$0xff]
      %v3978 = vld [vmem:[#allocation3 + $0x18] sm:$0xff]
      %v3979 = vld [vmem:[#allocation3 + $0x20] sm:$0xff]
      %v3980 = vld [vmem:[#allocation3 + $0x28] sm:$0xff]
      %v3981 = vld [vmem:[#allocation3 + $0x30] sm:$0xff]
      %v3982 = vld [vmem:[#allocation3 + $0x38] sm:$0xff]
      %v3983 = vld [vmem:[#allocation3 + $0x40] sm:$0xff]
      %v3984 = vld [vmem:[#allocation3 + $0x48] sm:$0xff]
      %v3985 = vld [vmem:[#allocation3 + $0x50] sm:$0xff]
      %v3986 = vld [vmem:[#allocation3 + $0x58] sm:$0xff]
      %v3987 = vld [vmem:[#allocation3 + $0x60] sm:$0xff]
      %v3988 = vld [vmem:[#allocation3 + $0x68] sm:$0xff]
      %v3989 = vld [vmem:[#allocation3 + $0x70] sm:$0xff]
      %v3990 = vld [vmem:[#allocation3 + $0x78] sm:$0xff]
      %v3991 = vld [vmem:[#allocation3 + $0x80] sm:$0xff]
      %v3992 = vld [vmem:[#allocation3 + $0x88] sm:$0xff]
      %v3993 = vld [vmem:[#allocation3 + $0x90] sm:$0xff]
      %v3994 = vld [vmem:[#allocation3 + $0x98] sm:$0xff]
      %v3995 = vld [vmem:[#allocation3 + $0xa0] sm:$0xff]
      %v3996 = vld [vmem:[#allocation3 + $0xa8] sm:$0xff]
      %v3997 = vld [vmem:[#allocation3 + $0xb0] sm:$0xff]
      %v3998 = vld [vmem:[#allocation3 + $0xb8] sm:$0xff]
      %v3999 = vld [vmem:[#allocation3 + $0xc0] sm:$0xff]
      %v4000 = vld [vmem:[#allocation3 + $0xc8] sm:$0xff]
      %v4001 = vld [vmem:[#allocation3 + $0xd0] sm:$0xff]
      %v4002 = vld [vmem:[#allocation3 + $0xd8] sm:$0xff]
      %v4003 = vld [vmem:[#allocation3 + $0xe0] sm:$0xff]
      %v4004 = vld [vmem:[#allocation3 + $0xe8] sm:$0xff]
      %v4005 = vld [vmem:[#allocation3 + $0xf0] sm:$0xff]
      %v4006 = vld [vmem:[#allocation3 + $0xf8] sm:$0xff]
      %v4007 = vld [vmem:[%s3] sm:$0xff]
      %v4008 = vld [vmem:[%s3 + $0x8] sm:$0xff]
      %v4009 = vld [vmem:[%s3 + $0x10] sm:$0xff]
      %v4010 = vld [vmem:[%s3 + $0x18] sm:$0xff]
      %v4011 = vld [vmem:[%s3 + $0x20] sm:$0xf]
      %v4012 = vld [vmem:[%s4] sm:$0x1]
      %v4014 = vlaneseq
      %v4015 = vshrl.u32 %v4014, 7
      %v4016 = vsub.s32 0, %v4015
      %v4017 = vrot.slane %v4012, %v4016
      %v4020 = vsel %vm1985, %v3975, 0
      %v4023 = vsel %vm1985, %v3976, 0
      %v4026 = vsel %vm1985, %v3977, 0
      %v4029 = vsel %vm1985, %v3978, 0
      %v4032 = vsel %vm1985, %v3979, 0
      %v4035 = vsel %vm1985, %v3980, 0
      %v4038 = vsel %vm1985, %v3981, 0
      %v4041 = vsel %vm1985, %v3982, 0
      %v4044 = vsel %vm1985, %v3983, 0
      %v4047 = vsel %vm1985, %v3984, 0
      %v4050 = vsel %vm1985, %v3985, 0
      %v4053 = vsel %vm1985, %v3986, 0
      %v4056 = vsel %vm1985, %v3987, 0
      %v4059 = vsel %vm1985, %v3988, 0
      %v4062 = vsel %vm1985, %v3989, 0
      %v4065 = vsel %vm1985, %v3990, 0
      %v4068 = vsel %vm1985, %v3991, 0
      %v4071 = vsel %vm1985, %v3992, 0
      %v4074 = vsel %vm1985, %v3993, 0
      %v4077 = vsel %vm1985, %v3994, 0
      %v4080 = vsel %vm1985, %v3995, 0
      %v4083 = vsel %vm1985, %v3996, 0
      %v4086 = vsel %vm1985, %v3997, 0
      %v4089 = vsel %vm1985, %v3998, 0
      %v4092 = vsel %vm1985, %v3999, 0
      %v4095 = vsel %vm1985, %v4000, 0
      %v4098 = vsel %vm1985, %v4001, 0
      %v4101 = vsel %vm1985, %v4002, 0
      %v4104 = vsel %vm1985, %v4003, 0
      %v4107 = vsel %vm1985, %v4004, 0
      %v4110 = vsel %vm1985, %v4005, 0
      %v4113 = vsel %vm1985, %v4006, 0
      %v4116 = vsel %vm2082, %v4011, 0
      %4118 = vmatprep.subr.mxu0 0.0
      %4119 = vmatpush1.msra.mxu0 %v4007
      %4120 = vmatprep.subr.mxu0 0.0
      %4121 = vmatpush1.msra.mxu0 %v4008
      %4122 = vmatprep.subr.mxu0 0.0
      %4123 = vmatpush1.msra.mxu0 %v4009
      %4124 = vmatprep.subr.mxu0 0.0
      %4125 = vmatpush1.msra.mxu0 %v4010
      %4126 = vmatprep.subr.mxu0 0.0
      %4127 = vmatpush1.msra.mxu0 %v4116
      %4128 = vmatprep.subr.mxu0 0.0
      %4129 = vmatpush1.msra.mxu0 0.0
      %4130 = vmatprep.subr.mxu0 0.0
      %4131 = vmatpush1.msra.mxu0 0.0
      %4132 = vmatprep.subr.mxu0 0.0
      %4133 = vmatpush1.msra.mxu0 0.0
      %4134 = vmatprep.subr.mxu0 0.0
      %4135 = vmatpush1.msra.mxu0 0.0
      %4136 = vmatprep.subr.mxu0 0.0
      %4137 = vmatpush1.msra.mxu0 0.0
      %4138 = vmatprep.subr.mxu0 0.0
      %4139 = vmatpush1.msra.mxu0 0.0
      %4140 = vmatprep.subr.mxu0 0.0
      %4141 = vmatpush1.msra.mxu0 0.0
      %4142 = vmatprep.subr.mxu0 0.0
      %4143 = vmatpush1.msra.mxu0 0.0
      %4144 = vmatprep.subr.mxu0 0.0
      %4145 = vmatpush1.msra.mxu0 0.0
      %4146 = vmatprep.subr.mxu0 0.0
      %4147 = vmatpush1.msra.mxu0 0.0
      %4148 = vmatprep.subr.mxu0 0.0
      %4149 = vmatpush1.msra.mxu0 0.0
      %4150 = vmatprep.subr.mxu0 0.0
      %4151 = vmatpush1.msra.mxu0 0.0
      %4152 = vmatprep.subr.mxu0 0.0
      %4153 = vmatpush1.msra.mxu0 0.0
      %4154 = vmatprep.subr.mxu0 0.0
      %4155 = vmatpush1.msra.mxu0 0.0
      %4156 = vmatprep.subr.mxu0 0.0
      %4157 = vmatpush1.msra.mxu0 0.0
      %4158 = vmatprep.subr.mxu0 0.0
      %4159 = vmatpush1.msra.mxu0 0.0
      %4160 = vmatprep.subr.mxu0 0.0
      %4161 = vmatpush1.msra.mxu0 0.0
      %4162 = vmatprep.subr.mxu0 0.0
      %4163 = vmatpush1.msra.mxu0 0.0
      %4164 = vmatprep.subr.mxu0 0.0
      %4165 = vmatpush1.msra.mxu0 0.0
      %4166 = vmatprep.subr.mxu0 0.0
      %4167 = vmatpush1.msra.mxu0 0.0
      %4168 = vmatprep.subr.mxu0 0.0
      %4169 = vmatpush1.msra.mxu0 0.0
      %4170 = vmatprep.subr.mxu0 0.0
      %4171 = vmatpush1.msra.mxu0 0.0
      %4172 = vmatprep.subr.mxu0 0.0
      %4173 = vmatpush1.msra.mxu0 0.0
      %4174 = vmatprep.subr.mxu0 0.0
      %4175 = vmatpush1.msra.mxu0 0.0
      %4176 = vmatprep.subr.mxu0 0.0
      %4177 = vmatpush1.msra.mxu0 0.0
      %4178 = vmatprep.subr.mxu0 0.0
      %4179 = vmatpush1.msra.mxu0 0.0
      %4180 = vmatprep.subr.mxu0 0.0
      %4181 = vmatpush1.msra.mxu0 0.0
      %4182 = vmatprep.mubr.f32.mxu0 0.0
      %4183 = vmatmul.mubr.f32.gmra.mrb[0].mxu0 %v4020
      %v4184 = vpop.f32.mrb[0].mxu0
      %v4185 = vadd.f32 %v4017, %v4184
      %v4186 = vpop.f32.mrb[0].mxu0
      %4187 = vmatprep.mubr.f32.mxu0 0.0
      %4188 = vmatmul.mubr.f32.gmra.mrb[0].mxu0 %v4023
      %v4189 = vpop.f32.mrb[0].mxu0
      %v4190 = vadd.f32 %v4017, %v4189
      %v4191 = vpop.f32.mrb[0].mxu0
      %4192 = vmatprep.mubr.f32.mxu0 0.0
      %4193 = vmatmul.mubr.f32.gmra.mrb[0].mxu0 %v4026
      %v4194 = vpop.f32.mrb[0].mxu0
      %v4195 = vadd.f32 %v4017, %v4194
      %v4196 = vpop.f32.mrb[0].mxu0
      %4197 = vmatprep.mubr.f32.mxu0 0.0
      %4198 = vmatmul.mubr.f32.gmra.mrb[0].mxu0 %v4029
      %v4199 = vpop.f32.mrb[0].mxu0
      %v4200 = vadd.f32 %v4017, %v4199
      %v4201 = vpop.f32.mrb[0].mxu0
      %4202 = vmatprep.mubr.f32.mxu0 0.0
      %4203 = vmatmul.mubr.f32.gmra.mrb[0].mxu0 %v4032
      %v4204 = vpop.f32.mrb[0].mxu0
      %v4205 = vadd.f32 %v4017, %v4204
      %v4206 = vpop.f32.mrb[0].mxu0
      %4207 = vmatprep.mubr.f32.mxu0 0.0
      %4208 = vmatmul.mubr.f32.gmra.mrb[0].mxu0 %v4035
      %v4209 = vpop.f32.mrb[0].mxu0
      %v4210 = vadd.f32 %v4017, %v4209
      %v4211 = vpop.f32.mrb[0].mxu0
      %4212 = vmatprep.mubr.f32.mxu0 0.0
      %4213 = vmatmul.mubr.f32.gmra.mrb[0].mxu0 %v4038
      %v4214 = vpop.f32.mrb[0].mxu0
      %v4215 = vadd.f32 %v4017, %v4214
      %v4216 = vpop.f32.mrb[0].mxu0
      %4217 = vmatprep.mubr.f32.mxu0 0.0
      %4218 = vmatmul.mubr.f32.gmra.mrb[0].mxu0 %v4041
      %v4219 = vpop.f32.mrb[0].mxu0
      %v4220 = vadd.f32 %v4017, %v4219
      %v4221 = vpop.f32.mrb[0].mxu0
      %4222 = vmatprep.mubr.f32.mxu0 0.0
      %4223 = vmatmul.mubr.f32.gmra.mrb[0].mxu0 %v4044
      %v4224 = vpop.f32.mrb[0].mxu0
      %v4225 = vadd.f32 %v4017, %v4224
      %v4226 = vpop.f32.mrb[0].mxu0
      %4227 = vmatprep.mubr.f32.mxu0 0.0
      %4228 = vmatmul.mubr.f32.gmra.mrb[0].mxu0 %v4047
      %v4229 = vpop.f32.mrb[0].mxu0
      %v4230 = vadd.f32 %v4017, %v4229
      %v4231 = vpop.f32.mrb[0].mxu0
      %4232 = vmatprep.mubr.f32.mxu0 0.0
      %4233 = vmatmul.mubr.f32.gmra.mrb[0].mxu0 %v4050
      %v4234 = vpop.f32.mrb[0].mxu0
      %v4235 = vadd.f32 %v4017, %v4234
      %v4236 = vpop.f32.mrb[0].mxu0
      %4237 = vmatprep.mubr.f32.mxu0 0.0
      %4238 = vmatmul.mubr.f32.gmra.mrb[0].mxu0 %v4053
      %v4239 = vpop.f32.mrb[0].mxu0
      %v4240 = vadd.f32 %v4017, %v4239
      %v4241 = vpop.f32.mrb[0].mxu0
      %4242 = vmatprep.mubr.f32.mxu0 0.0
      %4243 = vmatmul.mubr.f32.gmra.mrb[0].mxu0 %v4056
      %v4244 = vpop.f32.mrb[0].mxu0
      %v4245 = vadd.f32 %v4017, %v4244
      %v4246 = vpop.f32.mrb[0].mxu0
      %4247 = vmatprep.mubr.f32.mxu0 0.0
      %4248 = vmatmul.mubr.f32.gmra.mrb[0].mxu0 %v4059
      %v4249 = vpop.f32.mrb[0].mxu0
      %v4250 = vadd.f32 %v4017, %v4249
      %v4251 = vpop.f32.mrb[0].mxu0
      %4252 = vmatprep.mubr.f32.mxu0 0.0
      %4253 = vmatmul.mubr.f32.gmra.mrb[0].mxu0 %v4062
      %v4254 = vpop.f32.mrb[0].mxu0
      %v4255 = vadd.f32 %v4017, %v4254
      %v4256 = vpop.f32.mrb[0].mxu0
      %4257 = vmatprep.mubr.f32.mxu0 0.0
      %4258 = vmatmul.mubr.f32.gmra.mrb[0].mxu0 %v4065
      %v4259 = vpop.f32.mrb[0].mxu0
      %v4260 = vadd.f32 %v4017, %v4259
      %v4261 = vpop.f32.mrb[0].mxu0
      %4262 = vmatprep.mubr.f32.mxu0 0.0
      %4263 = vmatmul.mubr.f32.gmra.mrb[0].mxu0 %v4068
      %v4264 = vpop.f32.mrb[0].mxu0
      %v4265 = vadd.f32 %v4017, %v4264
      %v4266 = vpop.f32.mrb[0].mxu0
      %4267 = vmatprep.mubr.f32.mxu0 0.0
      %4268 = vmatmul.mubr.f32.gmra.mrb[0].mxu0 %v4071
      %v4269 = vpop.f32.mrb[0].mxu0
      %v4270 = vadd.f32 %v4017, %v4269
      %v4271 = vpop.f32.mrb[0].mxu0
      %4272 = vmatprep.mubr.f32.mxu0 0.0
      %4273 = vmatmul.mubr.f32.gmra.mrb[0].mxu0 %v4074
      %v4274 = vpop.f32.mrb[0].mxu0
      %v4275 = vadd.f32 %v4017, %v4274
      %v4276 = vpop.f32.mrb[0].mxu0
      %4277 = vmatprep.mubr.f32.mxu0 0.0
      %4278 = vmatmul.mubr.f32.gmra.mrb[0].mxu0 %v4077
      %v4279 = vpop.f32.mrb[0].mxu0
      %v4280 = vadd.f32 %v4017, %v4279
      %v4281 = vpop.f32.mrb[0].mxu0
      %4282 = vmatprep.mubr.f32.mxu0 0.0
      %4283 = vmatmul.mubr.f32.gmra.mrb[0].mxu0 %v4080
      %v4284 = vpop.f32.mrb[0].mxu0
      %v4285 = vadd.f32 %v4017, %v4284
      %v4286 = vpop.f32.mrb[0].mxu0
      %4287 = vmatprep.mubr.f32.mxu0 0.0
      %4288 = vmatmul.mubr.f32.gmra.mrb[0].mxu0 %v4083
      %v4289 = vpop.f32.mrb[0].mxu0
      %v4290 = vadd.f32 %v4017, %v4289
      %v4291 = vpop.f32.mrb[0].mxu0
      %4292 = vmatprep.mubr.f32.mxu0 0.0
      %4293 = vmatmul.mubr.f32.gmra.mrb[0].mxu0 %v4086
      %v4294 = vpop.f32.mrb[0].mxu0
      %v4295 = vadd.f32 %v4017, %v4294
      %v4296 = vpop.f32.mrb[0].mxu0
      %4297 = vmatprep.mubr.f32.mxu0 0.0
      %4298 = vmatmul.mubr.f32.gmra.mrb[0].mxu0 %v4089
      %v4299 = vpop.f32.mrb[0].mxu0
      %v4300 = vadd.f32 %v4017, %v4299
      %v4301 = vpop.f32.mrb[0].mxu0
      %4302 = vmatprep.mubr.f32.mxu0 0.0
      %4303 = vmatmul.mubr.f32.gmra.mrb[0].mxu0 %v4092
      %v4304 = vpop.f32.mrb[0].mxu0
      %v4305 = vadd.f32 %v4017, %v4304
      %v4306 = vpop.f32.mrb[0].mxu0
      %4307 = vmatprep.mubr.f32.mxu0 0.0
      %4308 = vmatmul.mubr.f32.gmra.mrb[0].mxu0 %v4095
      %v4309 = vpop.f32.mrb[0].mxu0
      %v4310 = vadd.f32 %v4017, %v4309
      %v4311 = vpop.f32.mrb[0].mxu0
      %4312 = vmatprep.mubr.f32.mxu0 0.0
      %4313 = vmatmul.mubr.f32.gmra.mrb[0].mxu0 %v4098
      %v4314 = vpop.f32.mrb[0].mxu0
      %v4315 = vadd.f32 %v4017, %v4314
      %v4316 = vpop.f32.mrb[0].mxu0
      %4317 = vmatprep.mubr.f32.mxu0 0.0
      %4318 = vmatmul.mubr.f32.gmra.mrb[0].mxu0 %v4101
      %v4319 = vpop.f32.mrb[0].mxu0
      %v4320 = vadd.f32 %v4017, %v4319
      %v4321 = vpop.f32.mrb[0].mxu0
      %4322 = vmatprep.mubr.f32.mxu0 0.0
      %4323 = vmatmul.mubr.f32.gmra.mrb[0].mxu0 %v4104
      %v4324 = vpop.f32.mrb[0].mxu0
      %v4325 = vadd.f32 %v4017, %v4324
      %v4326 = vpop.f32.mrb[0].mxu0
      %4327 = vmatprep.mubr.f32.mxu0 0.0
      %4328 = vmatmul.mubr.f32.gmra.mrb[0].mxu0 %v4107
      %v4329 = vpop.f32.mrb[0].mxu0
      %v4330 = vadd.f32 %v4017, %v4329
      %v4331 = vpop.f32.mrb[0].mxu0
      %4332 = vmatprep.mubr.f32.mxu0 0.0
      %4333 = vmatmul.mubr.f32.gmra.mrb[0].mxu0 %v4110
      %v4334 = vpop.f32.mrb[0].mxu0
      %v4335 = vadd.f32 %v4017, %v4334
      %v4336 = vpop.f32.mrb[0].mxu0
      %4337 = vmatprep.mubr.f32.mxu0 0.0
      %4338 = vmatmul.mubr.f32.gmra.mrb[0].mxu0 %v4113
      %v4339 = vpop.f32.mrb[0].mxu0
      %v4340 = vadd.f32 %v4017, %v4339
      %v4341 = vpop.f32.mrb[0].mxu0
      %4342 = vdwg.mxu0
      %v4343 = vadd.f32 %v4185, %v268
      %v4344 = vadd.f32 %v4190, %v269
      %v4345 = vadd.f32 %v4195, %v270
      %v4346 = vadd.f32 %v4200, %v271
      %v4347 = vadd.f32 %v4205, %v272
      %v4348 = vadd.f32 %v4210, %v273
      %v4349 = vadd.f32 %v4215, %v274
      %v4350 = vadd.f32 %v4220, %v275
      %v4351 = vadd.f32 %v4225, %v276
      %v4352 = vadd.f32 %v4230, %v277
      %v4353 = vadd.f32 %v4235, %v278
      %v4354 = vadd.f32 %v4240, %v279
      %v4355 = vadd.f32 %v4245, %v280
      %v4356 = vadd.f32 %v4250, %v281
      %v4357 = vadd.f32 %v4255, %v282
      %v4358 = vadd.f32 %v4260, %v283
      %v4359 = vadd.f32 %v4265, %v284
      %v4360 = vadd.f32 %v4270, %v285
      %v4361 = vadd.f32 %v4275, %v286
      %v4362 = vadd.f32 %v4280, %v287
      %v4363 = vadd.f32 %v4285, %v288
      %v4364 = vadd.f32 %v4290, %v289
      %v4365 = vadd.f32 %v4295, %v290
      %v4366 = vadd.f32 %v4300, %v291
      %v4367 = vadd.f32 %v4305, %v292
      %v4368 = vadd.f32 %v4310, %v293
      %v4369 = vadd.f32 %v4315, %v294
      %v4370 = vadd.f32 %v4320, %v295
      %v4371 = vadd.f32 %v4325, %v296
      %v4372 = vadd.f32 %v4330, %v297
      %v4373 = vadd.f32 %v4335, %v298
      %v4374 = vadd.f32 %v4340, %v299
      %v4375 = vmax.f32 %v4343, 0.0
      %v4376 = vmax.f32 %v4344, 0.0
      %v4377 = vmax.f32 %v4345, 0.0
      %v4378 = vmax.f32 %v4346, 0.0
      %v4379 = vmax.f32 %v4347, 0.0
      %v4380 = vmax.f32 %v4348, 0.0
      %v4381 = vmax.f32 %v4349, 0.0
      %v4382 = vmax.f32 %v4350, 0.0
      %v4383 = vmax.f32 %v4351, 0.0
      %v4384 = vmax.f32 %v4352, 0.0
      %v4385 = vmax.f32 %v4353, 0.0
      %v4386 = vmax.f32 %v4354, 0.0
      %v4387 = vmax.f32 %v4355, 0.0
      %v4388 = vmax.f32 %v4356, 0.0
      %v4389 = vmax.f32 %v4357, 0.0
      %v4390 = vmax.f32 %v4358, 0.0
      %v4391 = vmax.f32 %v4359, 0.0
      %v4392 = vmax.f32 %v4360, 0.0
      %v4393 = vmax.f32 %v4361, 0.0
      %v4394 = vmax.f32 %v4362, 0.0
      %v4395 = vmax.f32 %v4363, 0.0
      %v4396 = vmax.f32 %v4364, 0.0
      %v4397 = vmax.f32 %v4365, 0.0
      %v4398 = vmax.f32 %v4366, 0.0
      %v4399 = vmax.f32 %v4367, 0.0
      %v4400 = vmax.f32 %v4368, 0.0
      %v4401 = vmax.f32 %v4369, 0.0
      %v4402 = vmax.f32 %v4370, 0.0
      %v4403 = vmax.f32 %v4371, 0.0
      %v4404 = vmax.f32 %v4372, 0.0
      %v4405 = vmax.f32 %v4373, 0.0
      %v4406 = vmax.f32 %v4374, 0.0
      %4407 = vst.msk [vmem:[%s224] sm:$0xff] %vm225, %v4375
      %4408 = vst.msk [vmem:[%s224 + $0x8] sm:$0xff] %vm225, %v4376
      %4409 = vst.msk [vmem:[%s224 + $0x10] sm:$0xff] %vm225, %v4377
      %4410 = vst.msk [vmem:[%s224 + $0x18] sm:$0xff] %vm225, %v4378
      %4411 = vst.msk [vmem:[%s224 + $0x20] sm:$0xff] %vm225, %v4379
      %4412 = vst.msk [vmem:[%s224 + $0x28] sm:$0xff] %vm225, %v4380
      %4413 = vst.msk [vmem:[%s224 + $0x30] sm:$0xff] %vm225, %v4381
      %4414 = vst.msk [vmem:[%s224 + $0x38] sm:$0xff] %vm225, %v4382
      %4415 = vst.msk [vmem:[%s224 + $0x40] sm:$0xff] %vm225, %v4383
      %4416 = vst.msk [vmem:[%s224 + $0x48] sm:$0xff] %vm225, %v4384
      %4417 = vst.msk [vmem:[%s224 + $0x50] sm:$0xff] %vm225, %v4385
      %4418 = vst.msk [vmem:[%s224 + $0x58] sm:$0xff] %vm225, %v4386
      %4419 = vst.msk [vmem:[%s224 + $0x60] sm:$0xff] %vm225, %v4387
      %4420 = vst.msk [vmem:[%s224 + $0x68] sm:$0xff] %vm225, %v4388
      %4421 = vst.msk [vmem:[%s224 + $0x70] sm:$0xff] %vm225, %v4389
      %4422 = vst.msk [vmem:[%s224 + $0x78] sm:$0xff] %vm225, %v4390
      %4423 = vst.msk [vmem:[%s224 + $0x80] sm:$0xff] %vm225, %v4391
      %4424 = vst.msk [vmem:[%s224 + $0x88] sm:$0xff] %vm225, %v4392
      %4425 = vst.msk [vmem:[%s224 + $0x90] sm:$0xff] %vm225, %v4393
      %4426 = vst.msk [vmem:[%s224 + $0x98] sm:$0xff] %vm225, %v4394
      %4427 = vst.msk [vmem:[%s224 + $0xa0] sm:$0xff] %vm225, %v4395
      %4428 = vst.msk [vmem:[%s224 + $0xa8] sm:$0xff] %vm225, %v4396
      %4429 = vst.msk [vmem:[%s224 + $0xb0] sm:$0xff] %vm225, %v4397
      %4430 = vst.msk [vmem:[%s224 + $0xb8] sm:$0xff] %vm225, %v4398
      %4431 = vst.msk [vmem:[%s224 + $0xc0] sm:$0xff] %vm225, %v4399
      %4432 = vst.msk [vmem:[%s224 + $0xc8] sm:$0xff] %vm225, %v4400
      %4433 = vst.msk [vmem:[%s224 + $0xd0] sm:$0xff] %vm225, %v4401
      %4434 = vst.msk [vmem:[%s224 + $0xd8] sm:$0xff] %vm225, %v4402
      %4435 = vst.msk [vmem:[%s224 + $0xe0] sm:$0xff] %vm225, %v4403
      %4436 = vst.msk [vmem:[%s224 + $0xe8] sm:$0xff] %vm225, %v4404
      %4437 = vst.msk [vmem:[%s224 + $0xf0] sm:$0xff] %vm225, %v4405
      %4438 = vst.msk [vmem:[%s224 + $0xf8] sm:$0xff] %vm225, %v4406
      %p4439 = scmp.lt.s32.totalorder %s16, 1
      %s4440 = scalar_select %p4439, %s16, 1
      %s4441 = smul.addr %s4440, 32
      %s4442 = smul.addr %s4441, 8
      %s4443 = scalar_lea.vmem %s5, %s4442
      // Predicated region
      $region41: #{tpu_custom_call.1} parent=39 // pred_check
        %p4444 = pneg %p144
      $region42: #{tpu_custom_call.1} parent=39 // pred_check_branch
        %4446 = sbr.rel (%p4444) target = $region44
      $region43: #{tpu_custom_call.1} parent=39 // pred_region
        _
      $region44: #{tpu_custom_call.1} parent=39 // pred_fallthru
        _
    $region40: #{tpu_custom_call.1} parent=5 // pred_fallthru
      _
    %p4447 = scmp.le.s32.totalorder 2, %s11
    // Predicated region
    $region45: #{tpu_custom_call.1} parent=5 // pred_check
      %p4448 = pneg %p4447
    $region46: #{tpu_custom_call.1} parent=5 // pred_check_branch
      %4450 = sbr.rel (%p4448) target = $region48
    $region47: #{tpu_custom_call.1} parent=5 // pred_region
      %s4451 = ssub.s32 %s11, 2
      // Predicated region
      $region49: #{tpu_custom_call.1} parent=47 // pred_check
        %p4452 = pneg %p150
      $region50: #{tpu_custom_call.1} parent=47 // pred_check_branch
        %4454 = sbr.rel (%p4452) target = $region52
      $region51: #{tpu_custom_call.1} parent=47 // pred_region
        %p4455 = scmp.lt.s32.totalorder %s17, 1
        %s4456 = scalar_select %p4455, %s17, 1
        %s4457 = smul.addr %s4456, 32
        %s4458 = smul.addr %s4457, 8
        %s4459 = scalar_lea.vmem %s5, %s4458
      $region52: #{tpu_custom_call.1} parent=47 // pred_fallthru
        _
    $region48: #{tpu_custom_call.1} parent=5 // pred_fallthru
      _
  $region6: #{tpu_custom_call.1} parent=0 // loop_footer
    %s15 = sadd.s32 1, %s11
  $region7: #{tpu_custom_call.1} parent=0 // loop_footer_branch
    %10 = sbr.rel target = $region3
  $region8: #{tpu_custom_call.1} parent=0 // loop_exit
    _

</llo_original>
